<compile_context>
chip_gen: v6e
topology: v6e:2x2x1
jax: 0.10.0
libtpu: 0.0.40
codegen_flags: <defaults>
</compile_context>

<pallas_src>
import functools

import jax
import jax.numpy as jnp
from jax.experimental import pallas as pl
from jax.experimental.pallas import tpu as pltpu


def _bottleneck_kernel(x_ref, w1d_ref, b1d_ref, w2_ref, b2_ref, w3_ref, b3_ref,
                       o_ref, *, h, w, cb, has_downsample):
    """One batch element.  x_ref: (HW, Cin).  All BN already folded."""
    hw = h * w
    xf = x_ref[...]                                                # (HW, Cin)

    # Fused conv1 (+ optional downsample) 1x1 conv, frozen-BN folded in.
    t = jnp.dot(xf, w1d_ref[...], preferred_element_type=jnp.float32)
    t = t + b1d_ref[...]                                           # (HW, Cb[+Cout])
    h1 = jnp.maximum(t[:, :cb], 0.0)                               # relu(bn1(conv1 x))
    if has_downsample:
        residual = t[:, cb:]                                       # bnD(convD x)
    else:
        residual = xf.astype(jnp.float32)

    # 3x3 conv (pad=1, stride=1) as 9 shifted matmuls on the flat layout.
    # Row r <-> (y, x) = (r // w, r % w); tap (dy, dx) reads h1[r + dy*w + dx],
    # masked where the x coordinate would wrap across the row boundary.
    x_col = jax.lax.broadcasted_iota(jnp.int32, (hw, 1), 0) % w
    acc = jnp.zeros((hw, cb), jnp.float32)
    for dy in (-1, 0, 1):
        for dx in (-1, 0, 1):
            off = dy * w + dx
            k = (dy + 1) * 3 + (dx + 1)
            if off > 0:
                shifted = jnp.concatenate(
                    [h1[off:, :], jnp.zeros((off, cb), jnp.float32)], axis=0)
            elif off < 0:
                shifted = jnp.concatenate(
                    [jnp.zeros((-off, cb), jnp.float32), h1[:hw + off, :]],
                    axis=0)
            else:
                shifted = h1
            if dx == -1:
                shifted = jnp.where(x_col == 0, 0.0, shifted)
            elif dx == 1:
                shifted = jnp.where(x_col == w - 1, 0.0, shifted)
            acc = acc + jnp.dot(shifted, w2_ref[k],
                                preferred_element_type=jnp.float32)
    h2 = jnp.maximum(acc + b2_ref[...], 0.0)                       # relu(bn2(conv2 .))

    # conv3 + bn3, residual add, final relu.
    z = jnp.dot(h2, w3_ref[...], preferred_element_type=jnp.float32)
    z = z + b3_ref[...]
    o_ref[...] = jnp.maximum(z + residual, 0.0).astype(o_ref.dtype)


def _fold_bn(weight_io, bn):
    """Fold FrozenBatchNorm2d into a 1x1-conv matrix (in, out) -> (W', bias)."""
    gamma, beta, mean, var = bn
    scale = gamma / jnp.sqrt(var)          # FrozenBatchNorm2d: var.rsqrt(), no eps
    return weight_io * scale[None, :], beta - mean * scale


def bottleneck_pallas(x_nchw, w1, bn1, w2_oihw, bn2, w3, bn3, wd=None, bnd=None,
                      *, stride=1, num_groups=1):
    """x_nchw: (B, Cin, H, W).
       w1: (Cin, Cb), w2_oihw: (Cb, Cb, 3, 3) torch OIHW, w3: (Cb, Cout),
       wd: (Cin, Cout) or None.  bn*: (gamma, beta, running_mean, running_var)."""
    assert stride == 1, "TODO(synk): stride > 1 not implemented"
    assert num_groups == 1, "TODO(synk): grouped 3x3 conv not implemented"

    b, cin, h, w = x_nchw.shape
    cb = w1.shape[1]
    cout = w3.shape[1]
    hw = h * w
    has_ds = wd is not None

    # Fold frozen BN into weights / biases.
    w1f, b1f = _fold_bn(w1, bn1)
    w3f, b3f = _fold_bn(w3, bn3)
    g2, be2, m2, v2 = bn2
    s2 = g2 / jnp.sqrt(v2)
    b2f = be2 - m2 * s2
    w2f = w2_oihw * s2[:, None, None, None]                    # scale out-channels
    w2k = jnp.transpose(w2f, (2, 3, 1, 0)).reshape(9, cb, cb)  # (ky,kx,ci,co)->(9,ci,co)

    if has_ds:
        wdf, bdf = _fold_bn(wd, bnd)
        w_fused = jnp.concatenate([w1f, wdf], axis=1)          # (Cin, Cb+Cout)
        b_fused = jnp.concatenate([b1f, bdf], axis=0)
    else:
        w_fused, b_fused = w1f, b1f
    cf = w_fused.shape[1]

    # NCHW -> (B, HW, Cin)
    x_flat = jnp.transpose(x_nchw, (0, 2, 3, 1)).reshape(b, hw, cin)

    kernel = functools.partial(_bottleneck_kernel, h=h, w=w, cb=cb,
                               has_downsample=has_ds)

    flops = 2 * b * hw * (cin * cf + 9 * cb * cb + cb * cout)
    bytes_accessed = 4 * (b * hw * (cin + cout)
                          + w_fused.size + w2k.size + w3f.size
                          + cf + cb + cout)

    out_flat = pl.pallas_call(
        kernel,
        out_shape=jax.ShapeDtypeStruct((b, hw, cout), x_nchw.dtype),
        grid_spec=pltpu.PrefetchScalarGridSpec(
            num_scalar_prefetch=0,
            grid=(b,),
            in_specs=[
                pl.BlockSpec((None, hw, cin), lambda i: (i, 0, 0)),   # x (per batch)
                pl.BlockSpec((cin, cf), lambda i: (0, 0)),            # fused W1|Wd
                pl.BlockSpec((1, cf), lambda i: (0, 0)),              # fused bias
                pl.BlockSpec((9, cb, cb), lambda i: (0, 0, 0)),       # 3x3 taps
                pl.BlockSpec((1, cb), lambda i: (0, 0)),              # bn2 bias
                pl.BlockSpec((cb, cout), lambda i: (0, 0)),           # W3
                pl.BlockSpec((1, cout), lambda i: (0, 0)),            # bn3 bias
            ],
            out_specs=pl.BlockSpec((None, hw, cout), lambda i: (i, 0, 0)),
        ),
        compiler_params=pltpu.CompilerParams(
            dimension_semantics=("parallel",)),
        cost_estimate=pl.CostEstimate(flops=int(flops), transcendentals=0,
                                      bytes_accessed=int(bytes_accessed)),
    )(x_flat, w_fused, b_fused.reshape(1, cf), w2k, b2f.reshape(1, cb),
      w3f, b3f.reshape(1, cout))

    # (B, HW, Cout) -> NCHW
    return jnp.transpose(out_flat.reshape(b, h, w, cout), (0, 3, 1, 2))


def bottleneck_reference(x, w1, bn1, w2_oihw, bn2, w3, bn3, wd=None, bnd=None):
    """Pure-JAX reference following the PyTorch forward op-by-op (NCHW)."""
    def fbn(t, p):
        g, be, m, v = p
        s = g / jnp.sqrt(v)
        return t * s[None, :, None, None] + (be - m * s)[None, :, None, None]

    out = jnp.einsum('bchw,co->bohw', x, w1)
    out = jax.nn.relu(fbn(out, bn1))
    out = jax.lax.conv_general_dilated(
        out, w2_oihw, window_strides=(1, 1), padding=((1, 1), (1, 1)),
        dimension_numbers=('NCHW', 'OIHW', 'NCHW'))
    out = jax.nn.relu(fbn(out, bn2))
    out = jnp.einsum('bchw,co->bohw', out, w3)
    out = fbn(out, bn3)
    if wd is not None:
        residual = fbn(jnp.einsum('bchw,co->bohw', x, wd), bnd)
    else:
        residual = x
    return jax.nn.relu(out + residual)


if __name__ == "__main__":
    B, CIN, CB, COUT, H, W = 2, 16, 8, 32, 16, 16

    key = jax.random.PRNGKey(0)
    ks = jax.random.split(key, 12)

    def make_bn(k, c):
        k1, k2, k3, k4 = jax.random.split(k, 4)
        gamma = 1.0 + 0.1 * jax.random.normal(k1, (c,), dtype=jnp.float32)
        beta = 0.1 * jax.random.normal(k2, (c,), dtype=jnp.float32)
        mean = 0.1 * jax.random.normal(k3, (c,), dtype=jnp.float32)
        var = 1.0 + 0.1 * jax.random.uniform(k4, (c,), dtype=jnp.float32)
        return (gamma, beta, mean, var)

    # ---- config 1: in_channels != out_channels -> downsample branch active ----
    x = jax.random.normal(ks[0], (B, CIN, H, W), dtype=jnp.float32)
    w1 = 0.2 * jax.random.normal(ks[1], (CIN, CB), dtype=jnp.float32)
    w2 = 0.2 * jax.random.normal(ks[2], (CB, CB, 3, 3), dtype=jnp.float32)  # OIHW
    w3 = 0.2 * jax.random.normal(ks[3], (CB, COUT), dtype=jnp.float32)
    wd = 0.2 * jax.random.normal(ks[4], (CIN, COUT), dtype=jnp.float32)
    bn1, bn2, bn3, bnd = (make_bn(ks[5], CB), make_bn(ks[6], CB),
                          make_bn(ks[7], COUT), make_bn(ks[8], COUT))

    out = jax.block_until_ready(
        bottleneck_pallas(x, w1, bn1, w2, bn2, w3, bn3, wd, bnd))
    ref = bottleneck_reference(x, w1, bn1, w2, bn2, w3, bn3, wd, bnd)
    assert out.shape == (B, COUT, H, W)
    assert jnp.allclose(out, ref, atol=2e-4, rtol=2e-4), float(
        jnp.max(jnp.abs(out - ref)))

    # ---- config 2: in_channels == out_channels -> identity shortcut ----
    CIN2, CB2 = COUT, 8
    x2 = jax.random.normal(ks[9], (B, CIN2, H, W), dtype=jnp.float32)
    w1b = 0.2 * jax.random.normal(ks[10], (CIN2, CB2), dtype=jnp.float32)
    w2b = 0.2 * jax.random.normal(ks[11], (CB2, CB2, 3, 3), dtype=jnp.float32)
    w3b = 0.2 * jax.random.normal(ks[1], (CB2, CIN2), dtype=jnp.float32)
    bn1b, bn2b, bn3b = make_bn(ks[2], CB2), make_bn(ks[3], CB2), make_bn(ks[4], CIN2)

    out2 = jax.block_until_ready(
        bottleneck_pallas(x2, w1b, bn1b, w2b, bn2b, w3b, bn3b))
    ref2 = bottleneck_reference(x2, w1b, bn1b, w2b, bn2b, w3b, bn3b)
    assert out2.shape == (B, CIN2, H, W)
    assert jnp.allclose(out2, ref2, atol=2e-4, rtol=2e-4), float(
        jnp.max(jnp.abs(out2 - ref2)))

    print("KERNEL_OK")
</pallas_src>

<mosaic_0001>
module attributes {stable_mosaic.version = 11 : i64} {
  func.func @_bottleneck_kernel(%arg0: i32, %arg1: memref<1x256x16xf32, #tpu.memory_space<vmem>>, %arg2: memref<16x40xf32, #tpu.memory_space<vmem>>, %arg3: memref<1x40xf32, #tpu.memory_space<vmem>>, %arg4: memref<9x8x8xf32, #tpu.memory_space<vmem>>, %arg5: memref<1x8xf32, #tpu.memory_space<vmem>>, %arg6: memref<8x32xf32, #tpu.memory_space<vmem>>, %arg7: memref<1x32xf32, #tpu.memory_space<vmem>>, %arg8: memref<1x256x32xf32, #tpu.memory_space<vmem>>) attributes {dimension_semantics = [#tpu.dimension_semantics<parallel>], iteration_bounds = array<i64: 2>, scalar_prefetch = 0 : i64, scratch_operands = 0 : i64, tpu.core_type = #tpu.core_type<tc>, window_params = [{transform_indices = @transform_0, window_bounds = array<i64: 1, 256, 16>}, {pipeline_mode = #tpu.pipeline_mode<synchronous>, transform_indices = @transform_1, window_bounds = array<i64: 16, 40>}, {pipeline_mode = #tpu.pipeline_mode<synchronous>, transform_indices = @transform_2, window_bounds = array<i64: 1, 40>}, {pipeline_mode = #tpu.pipeline_mode<synchronous>, transform_indices = @transform_3, window_bounds = array<i64: 9, 8, 8>}, {pipeline_mode = #tpu.pipeline_mode<synchronous>, transform_indices = @transform_4, window_bounds = array<i64: 1, 8>}, {pipeline_mode = #tpu.pipeline_mode<synchronous>, transform_indices = @transform_5, window_bounds = array<i64: 8, 32>}, {pipeline_mode = #tpu.pipeline_mode<synchronous>, transform_indices = @transform_6, window_bounds = array<i64: 1, 32>}, {transform_indices = @transform_7, window_bounds = array<i64: 1, 256, 32>}]} {
    %c0 = arith.constant 0 : index
    %c0_0 = arith.constant 0 : index
    %c0_1 = arith.constant 0 : index
    %0 = vector.load %arg1[%c0, %c0_0, %c0_1] : memref<1x256x16xf32, #tpu.memory_space<vmem>>, vector<1x256x16xf32>
    %1 = vector.shape_cast %0 : vector<1x256x16xf32> to vector<256x16xf32>
    %c0_2 = arith.constant 0 : index
    %c0_3 = arith.constant 0 : index
    %2 = vector.load %arg2[%c0_2, %c0_3] : memref<16x40xf32, #tpu.memory_space<vmem>>, vector<16x40xf32>
    %cst = arith.constant dense<0.000000e+00> : vector<256x40xf32>
    %3 = tpu.matmul %1, %2, %cst {dimension_numbers = #tpu.dot_dimension_numbers<[1], [0], [0], [1], [0, 0, 1, 1], [], []>} : vector<256x16xf32>, vector<16x40xf32>, vector<256x40xf32> -> vector<256x40xf32>
    %c0_4 = arith.constant 0 : index
    %c0_5 = arith.constant 0 : index
    %4 = vector.load %arg3[%c0_4, %c0_5] : memref<1x40xf32, #tpu.memory_space<vmem>>, vector<1x40xf32>
    %5 = vector.broadcast %4 : vector<1x40xf32> to vector<256x40xf32>
    %6 = arith.addf %3, %5 : vector<256x40xf32>
    %7 = vector.extract_strided_slice %6 {offsets = [0, 0], sizes = [256, 8], strides = [1, 1]} : vector<256x40xf32> to vector<256x8xf32>
    %cst_6 = arith.constant 0.000000e+00 : f32
    %8 = vector.broadcast %cst_6 : f32 to vector<256x8xf32>
    %9 = arith.maximumf %7, %8 : vector<256x8xf32>
    %10 = vector.extract_strided_slice %6 {offsets = [0, 8], sizes = [256, 32], strides = [1, 1]} : vector<256x40xf32> to vector<256x32xf32>
    %11 = tpu.iota {dimensions = array<i32: 0>} : vector<256x1xi32>
    %c16_i32 = arith.constant 16 : i32
    %c0_i32 = arith.constant 0 : i32
    %12 = arith.cmpi eq, %c16_i32, %c0_i32 : i32
    %c1_i32 = arith.constant 1 : i32
    %13 = arith.select %12, %c1_i32, %c16_i32 : i32
    %14 = vector.broadcast %13 : i32 to vector<256x1xi32>
    %15 = arith.remsi %11, %14 : vector<256x1xi32>
    %c0_i32_7 = arith.constant 0 : i32
    %16 = vector.broadcast %c0_i32_7 : i32 to vector<256x1xi32>
    %17 = arith.cmpi ne, %15, %16 : vector<256x1xi32>
    %c0_i32_8 = arith.constant 0 : i32
    %18 = vector.broadcast %c0_i32_8 : i32 to vector<256x1xi32>
    %19 = arith.cmpi slt, %15, %18 : vector<256x1xi32>
    %c0_i32_9 = arith.constant 0 : i32
    %20 = arith.cmpi slt, %13, %c0_i32_9 : i32
    %21 = vector.broadcast %20 : i1 to vector<256x1xi1>
    %22 = vector.broadcast %21 : vector<256x1xi1> to vector<256x1xi1>
    %23 = arith.xori %19, %22 : vector<256x1xi1>
    %24 = arith.andi %23, %17 : vector<256x1xi1>
    %25 = vector.broadcast %13 : i32 to vector<256x1xi32>
    %26 = arith.addi %15, %25 : vector<256x1xi32>
    %27 = arith.select %24, %26, %15 : vector<256x1xi1>, vector<256x1xi32>
    %cst_10 = arith.constant 0.000000e+00 : f32
    %28 = vector.broadcast %cst_10 : f32 to vector<256x8xf32>
    %cst_11 = arith.constant 0.000000e+00 : f32
    %29 = vector.broadcast %cst_11 : f32 to vector<17x8xf32>
    %30 = vector.extract_strided_slice %9 {offsets = [0, 0], sizes = [239, 8], strides = [1, 1]} : vector<256x8xf32> to vector<239x8xf32>
    %31 = tpu.concatenate %29, %30 in 0 : vector<17x8xf32>, vector<239x8xf32> -> vector<256x8xf32>
    %c0_i32_12 = arith.constant 0 : i32
    %32 = vector.broadcast %c0_i32_12 : i32 to vector<256x1xi32>
    %33 = arith.cmpi eq, %27, %32 : vector<256x1xi32>
    %cst_13 = arith.constant 0.000000e+00 : f32
    %34 = vector.shape_cast %33 : vector<256x1xi1> to vector<256x1xi1>
    %35 = vector.broadcast %34 : vector<256x1xi1> to vector<256x8xi1>
    %36 = vector.broadcast %cst_13 : f32 to vector<256x8xf32>
    %37 = arith.select %35, %36, %31 : vector<256x8xi1>, vector<256x8xf32>
    %c0_14 = arith.constant 0 : index
    %c0_15 = arith.constant 0 : index
    %c0_16 = arith.constant 0 : index
    %38 = vector.load %arg4[%c0_14, %c0_15, %c0_16] : memref<9x8x8xf32, #tpu.memory_space<vmem>>, vector<1x8x8xf32>
    %39 = vector.shape_cast %38 : vector<1x8x8xf32> to vector<8x8xf32>
    %cst_17 = arith.constant dense<0.000000e+00> : vector<256x8xf32>
    %40 = tpu.matmul %37, %39, %cst_17 {dimension_numbers = #tpu.dot_dimension_numbers<[1], [0], [0], [1], [0, 0, 1, 1], [], []>} : vector<256x8xf32>, vector<8x8xf32>, vector<256x8xf32> -> vector<256x8xf32>
    %41 = arith.addf %28, %40 : vector<256x8xf32>
    %cst_18 = arith.constant 0.000000e+00 : f32
    %42 = vector.broadcast %cst_18 : f32 to vector<16x8xf32>
    %43 = vector.extract_strided_slice %9 {offsets = [0, 0], sizes = [240, 8], strides = [1, 1]} : vector<256x8xf32> to vector<240x8xf32>
    %44 = tpu.concatenate %42, %43 in 0 : vector<16x8xf32>, vector<240x8xf32> -> vector<256x8xf32>
    %c1 = arith.constant 1 : index
    %c0_19 = arith.constant 0 : index
    %c0_20 = arith.constant 0 : index
    %45 = vector.load %arg4[%c1, %c0_19, %c0_20] : memref<9x8x8xf32, #tpu.memory_space<vmem>>, vector<1x8x8xf32>
    %46 = vector.shape_cast %45 : vector<1x8x8xf32> to vector<8x8xf32>
    %cst_21 = arith.constant dense<0.000000e+00> : vector<256x8xf32>
    %47 = tpu.matmul %44, %46, %cst_21 {dimension_numbers = #tpu.dot_dimension_numbers<[1], [0], [0], [1], [0, 0, 1, 1], [], []>} : vector<256x8xf32>, vector<8x8xf32>, vector<256x8xf32> -> vector<256x8xf32>
    %48 = arith.addf %41, %47 : vector<256x8xf32>
    %cst_22 = arith.constant 0.000000e+00 : f32
    %49 = vector.broadcast %cst_22 : f32 to vector<15x8xf32>
    %50 = vector.extract_strided_slice %9 {offsets = [0, 0], sizes = [241, 8], strides = [1, 1]} : vector<256x8xf32> to vector<241x8xf32>
    %51 = tpu.concatenate %49, %50 in 0 : vector<15x8xf32>, vector<241x8xf32> -> vector<256x8xf32>
    %c15_i32 = arith.constant 15 : i32
    %52 = vector.broadcast %c15_i32 : i32 to vector<256x1xi32>
    %53 = arith.cmpi eq, %27, %52 : vector<256x1xi32>
    %cst_23 = arith.constant 0.000000e+00 : f32
    %54 = vector.shape_cast %53 : vector<256x1xi1> to vector<256x1xi1>
    %55 = vector.broadcast %54 : vector<256x1xi1> to vector<256x8xi1>
    %56 = vector.broadcast %cst_23 : f32 to vector<256x8xf32>
    %57 = arith.select %55, %56, %51 : vector<256x8xi1>, vector<256x8xf32>
    %c2 = arith.constant 2 : index
    %c0_24 = arith.constant 0 : index
    %c0_25 = arith.constant 0 : index
    %58 = vector.load %arg4[%c2, %c0_24, %c0_25] : memref<9x8x8xf32, #tpu.memory_space<vmem>>, vector<1x8x8xf32>
    %59 = vector.shape_cast %58 : vector<1x8x8xf32> to vector<8x8xf32>
    %cst_26 = arith.constant dense<0.000000e+00> : vector<256x8xf32>
    %60 = tpu.matmul %57, %59, %cst_26 {dimension_numbers = #tpu.dot_dimension_numbers<[1], [0], [0], [1], [0, 0, 1, 1], [], []>} : vector<256x8xf32>, vector<8x8xf32>, vector<256x8xf32> -> vector<256x8xf32>
    %61 = arith.addf %48, %60 : vector<256x8xf32>
    %cst_27 = arith.constant 0.000000e+00 : f32
    %62 = vector.broadcast %cst_27 : f32 to vector<1x8xf32>
    %63 = vector.extract_strided_slice %9 {offsets = [0, 0], sizes = [255, 8], strides = [1, 1]} : vector<256x8xf32> to vector<255x8xf32>
    %64 = tpu.concatenate %62, %63 in 0 : vector<1x8xf32>, vector<255x8xf32> -> vector<256x8xf32>
    %c0_i32_28 = arith.constant 0 : i32
    %65 = vector.broadcast %c0_i32_28 : i32 to vector<256x1xi32>
    %66 = arith.cmpi eq, %27, %65 : vector<256x1xi32>
    %cst_29 = arith.constant 0.000000e+00 : f32
    %67 = vector.shape_cast %66 : vector<256x1xi1> to vector<256x1xi1>
    %68 = vector.broadcast %67 : vector<256x1xi1> to vector<256x8xi1>
    %69 = vector.broadcast %cst_29 : f32 to vector<256x8xf32>
    %70 = arith.select %68, %69, %64 : vector<256x8xi1>, vector<256x8xf32>
    %c3 = arith.constant 3 : index
    %c0_30 = arith.constant 0 : index
    %c0_31 = arith.constant 0 : index
    %71 = vector.load %arg4[%c3, %c0_30, %c0_31] : memref<9x8x8xf32, #tpu.memory_space<vmem>>, vector<1x8x8xf32>
    %72 = vector.shape_cast %71 : vector<1x8x8xf32> to vector<8x8xf32>
    %cst_32 = arith.constant dense<0.000000e+00> : vector<256x8xf32>
    %73 = tpu.matmul %70, %72, %cst_32 {dimension_numbers = #tpu.dot_dimension_numbers<[1], [0], [0], [1], [0, 0, 1, 1], [], []>} : vector<256x8xf32>, vector<8x8xf32>, vector<256x8xf32> -> vector<256x8xf32>
    %74 = arith.addf %61, %73 : vector<256x8xf32>
    %c4 = arith.constant 4 : index
    %c0_33 = arith.constant 0 : index
    %c0_34 = arith.constant 0 : index
    %75 = vector.load %arg4[%c4, %c0_33, %c0_34] : memref<9x8x8xf32, #tpu.memory_space<vmem>>, vector<1x8x8xf32>
    %76 = vector.shape_cast %75 : vector<1x8x8xf32> to vector<8x8xf32>
    %cst_35 = arith.constant dense<0.000000e+00> : vector<256x8xf32>
    %77 = tpu.matmul %9, %76, %cst_35 {dimension_numbers = #tpu.dot_dimension_numbers<[1], [0], [0], [1], [0, 0, 1, 1], [], []>} : vector<256x8xf32>, vector<8x8xf32>, vector<256x8xf32> -> vector<256x8xf32>
    %78 = arith.addf %74, %77 : vector<256x8xf32>
    %79 = vector.extract_strided_slice %9 {offsets = [1, 0], sizes = [255, 8], strides = [1, 1]} : vector<256x8xf32> to vector<255x8xf32>
    %cst_36 = arith.constant 0.000000e+00 : f32
    %80 = vector.broadcast %cst_36 : f32 to vector<1x8xf32>
    %81 = tpu.concatenate %79, %80 in 0 : vector<255x8xf32>, vector<1x8xf32> -> vector<256x8xf32>
    %c15_i32_37 = arith.constant 15 : i32
    %82 = vector.broadcast %c15_i32_37 : i32 to vector<256x1xi32>
    %83 = arith.cmpi eq, %27, %82 : vector<256x1xi32>
    %cst_38 = arith.constant 0.000000e+00 : f32
    %84 = vector.shape_cast %83 : vector<256x1xi1> to vector<256x1xi1>
    %85 = vector.broadcast %84 : vector<256x1xi1> to vector<256x8xi1>
    %86 = vector.broadcast %cst_38 : f32 to vector<256x8xf32>
    %87 = arith.select %85, %86, %81 : vector<256x8xi1>, vector<256x8xf32>
    %c5 = arith.constant 5 : index
    %c0_39 = arith.constant 0 : index
    %c0_40 = arith.constant 0 : index
    %88 = vector.load %arg4[%c5, %c0_39, %c0_40] : memref<9x8x8xf32, #tpu.memory_space<vmem>>, vector<1x8x8xf32>
    %89 = vector.shape_cast %88 : vector<1x8x8xf32> to vector<8x8xf32>
    %cst_41 = arith.constant dense<0.000000e+00> : vector<256x8xf32>
    %90 = tpu.matmul %87, %89, %cst_41 {dimension_numbers = #tpu.dot_dimension_numbers<[1], [0], [0], [1], [0, 0, 1, 1], [], []>} : vector<256x8xf32>, vector<8x8xf32>, vector<256x8xf32> -> vector<256x8xf32>
    %91 = arith.addf %78, %90 : vector<256x8xf32>
    %92 = vector.extract_strided_slice %9 {offsets = [15, 0], sizes = [241, 8], strides = [1, 1]} : vector<256x8xf32> to vector<241x8xf32>
    %cst_42 = arith.constant 0.000000e+00 : f32
    %93 = vector.broadcast %cst_42 : f32 to vector<15x8xf32>
    %94 = tpu.concatenate %92, %93 in 0 : vector<241x8xf32>, vector<15x8xf32> -> vector<256x8xf32>
    %c0_i32_43 = arith.constant 0 : i32
    %95 = vector.broadcast %c0_i32_43 : i32 to vector<256x1xi32>
    %96 = arith.cmpi eq, %27, %95 : vector<256x1xi32>
    %cst_44 = arith.constant 0.000000e+00 : f32
    %97 = vector.shape_cast %96 : vector<256x1xi1> to vector<256x1xi1>
    %98 = vector.broadcast %97 : vector<256x1xi1> to vector<256x8xi1>
    %99 = vector.broadcast %cst_44 : f32 to vector<256x8xf32>
    %100 = arith.select %98, %99, %94 : vector<256x8xi1>, vector<256x8xf32>
    %c6 = arith.constant 6 : index
    %c0_45 = arith.constant 0 : index
    %c0_46 = arith.constant 0 : index
    %101 = vector.load %arg4[%c6, %c0_45, %c0_46] : memref<9x8x8xf32, #tpu.memory_space<vmem>>, vector<1x8x8xf32>
    %102 = vector.shape_cast %101 : vector<1x8x8xf32> to vector<8x8xf32>
    %cst_47 = arith.constant dense<0.000000e+00> : vector<256x8xf32>
    %103 = tpu.matmul %100, %102, %cst_47 {dimension_numbers = #tpu.dot_dimension_numbers<[1], [0], [0], [1], [0, 0, 1, 1], [], []>} : vector<256x8xf32>, vector<8x8xf32>, vector<256x8xf32> -> vector<256x8xf32>
    %104 = arith.addf %91, %103 : vector<256x8xf32>
    %105 = vector.extract_strided_slice %9 {offsets = [16, 0], sizes = [240, 8], strides = [1, 1]} : vector<256x8xf32> to vector<240x8xf32>
    %cst_48 = arith.constant 0.000000e+00 : f32
    %106 = vector.broadcast %cst_48 : f32 to vector<16x8xf32>
    %107 = tpu.concatenate %105, %106 in 0 : vector<240x8xf32>, vector<16x8xf32> -> vector<256x8xf32>
    %c7 = arith.constant 7 : index
    %c0_49 = arith.constant 0 : index
    %c0_50 = arith.constant 0 : index
    %108 = vector.load %arg4[%c7, %c0_49, %c0_50] : memref<9x8x8xf32, #tpu.memory_space<vmem>>, vector<1x8x8xf32>
    %109 = vector.shape_cast %108 : vector<1x8x8xf32> to vector<8x8xf32>
    %cst_51 = arith.constant dense<0.000000e+00> : vector<256x8xf32>
    %110 = tpu.matmul %107, %109, %cst_51 {dimension_numbers = #tpu.dot_dimension_numbers<[1], [0], [0], [1], [0, 0, 1, 1], [], []>} : vector<256x8xf32>, vector<8x8xf32>, vector<256x8xf32> -> vector<256x8xf32>
    %111 = arith.addf %104, %110 : vector<256x8xf32>
    %112 = vector.extract_strided_slice %9 {offsets = [17, 0], sizes = [239, 8], strides = [1, 1]} : vector<256x8xf32> to vector<239x8xf32>
    %cst_52 = arith.constant 0.000000e+00 : f32
    %113 = vector.broadcast %cst_52 : f32 to vector<17x8xf32>
    %114 = tpu.concatenate %112, %113 in 0 : vector<239x8xf32>, vector<17x8xf32> -> vector<256x8xf32>
    %c15_i32_53 = arith.constant 15 : i32
    %115 = vector.broadcast %c15_i32_53 : i32 to vector<256x1xi32>
    %116 = arith.cmpi eq, %27, %115 : vector<256x1xi32>
    %cst_54 = arith.constant 0.000000e+00 : f32
    %117 = vector.shape_cast %116 : vector<256x1xi1> to vector<256x1xi1>
    %118 = vector.broadcast %117 : vector<256x1xi1> to vector<256x8xi1>
    %119 = vector.broadcast %cst_54 : f32 to vector<256x8xf32>
    %120 = arith.select %118, %119, %114 : vector<256x8xi1>, vector<256x8xf32>
    %c8 = arith.constant 8 : index
    %c0_55 = arith.constant 0 : index
    %c0_56 = arith.constant 0 : index
    %121 = vector.load %arg4[%c8, %c0_55, %c0_56] : memref<9x8x8xf32, #tpu.memory_space<vmem>>, vector<1x8x8xf32>
    %122 = vector.shape_cast %121 : vector<1x8x8xf32> to vector<8x8xf32>
    %cst_57 = arith.constant dense<0.000000e+00> : vector<256x8xf32>
    %123 = tpu.matmul %120, %122, %cst_57 {dimension_numbers = #tpu.dot_dimension_numbers<[1], [0], [0], [1], [0, 0, 1, 1], [], []>} : vector<256x8xf32>, vector<8x8xf32>, vector<256x8xf32> -> vector<256x8xf32>
    %124 = arith.addf %111, %123 : vector<256x8xf32>
    %c0_58 = arith.constant 0 : index
    %c0_59 = arith.constant 0 : index
    %125 = vector.load %arg5[%c0_58, %c0_59] : memref<1x8xf32, #tpu.memory_space<vmem>>, vector<1x8xf32>
    %126 = vector.broadcast %125 : vector<1x8xf32> to vector<256x8xf32>
    %127 = arith.addf %124, %126 : vector<256x8xf32>
    %cst_60 = arith.constant 0.000000e+00 : f32
    %128 = vector.broadcast %cst_60 : f32 to vector<256x8xf32>
    %129 = arith.maximumf %127, %128 : vector<256x8xf32>
    %c0_61 = arith.constant 0 : index
    %c0_62 = arith.constant 0 : index
    %130 = vector.load %arg6[%c0_61, %c0_62] : memref<8x32xf32, #tpu.memory_space<vmem>>, vector<8x32xf32>
    %cst_63 = arith.constant dense<0.000000e+00> : vector<256x32xf32>
    %131 = tpu.matmul %129, %130, %cst_63 {dimension_numbers = #tpu.dot_dimension_numbers<[1], [0], [0], [1], [0, 0, 1, 1], [], []>} : vector<256x8xf32>, vector<8x32xf32>, vector<256x32xf32> -> vector<256x32xf32>
    %c0_64 = arith.constant 0 : index
    %c0_65 = arith.constant 0 : index
    %132 = vector.load %arg7[%c0_64, %c0_65] : memref<1x32xf32, #tpu.memory_space<vmem>>, vector<1x32xf32>
    %133 = vector.broadcast %132 : vector<1x32xf32> to vector<256x32xf32>
    %134 = arith.addf %131, %133 : vector<256x32xf32>
    %135 = arith.addf %134, %10 : vector<256x32xf32>
    %cst_66 = arith.constant 0.000000e+00 : f32
    %136 = vector.broadcast %cst_66 : f32 to vector<256x32xf32>
    %137 = arith.maximumf %135, %136 : vector<256x32xf32>
    %c0_67 = arith.constant 0 : index
    %c0_68 = arith.constant 0 : index
    %c0_69 = arith.constant 0 : index
    %138 = vector.load %arg8[%c0_67, %c0_68, %c0_69] : memref<1x256x32xf32, #tpu.memory_space<vmem>>, vector<1x256x32xf32>
    %139 = vector.shape_cast %138 : vector<1x256x32xf32> to vector<256x32xf32>
    %140 = vector.shape_cast %137 : vector<256x32xf32> to vector<1x256x32xf32>
    tpu.vector_store %arg8[%c0_67, %c0_68, %c0_69], %140 {strides = array<i32>} : memref<1x256x32xf32, #tpu.memory_space<vmem>>, vector<1x256x32xf32>,
    return
  }
  func.func @transform_0(%arg0: i32) -> (i32, i32, i32) {
    %c0_i32 = arith.constant 0 : i32
    %c0_i32_0 = arith.constant 0 : i32
    %c0_i32_1 = arith.constant 0 : i32
    return %arg0, %c0_i32, %c0_i32_0 : i32, i32, i32
  }
  func.func @transform_1(%arg0: i32) -> (i32, i32) {
    %c0_i32 = arith.constant 0 : i32
    %c0_i32_0 = arith.constant 0 : i32
    %c0_i32_1 = arith.constant 0 : i32
    return %c0_i32, %c0_i32_0 : i32, i32
  }
  func.func @transform_2(%arg0: i32) -> (i32, i32) {
    %c0_i32 = arith.constant 0 : i32
    %c0_i32_0 = arith.constant 0 : i32
    %c0_i32_1 = arith.constant 0 : i32
    return %c0_i32, %c0_i32_0 : i32, i32
  }
  func.func @transform_3(%arg0: i32) -> (i32, i32, i32) {
    %c0_i32 = arith.constant 0 : i32
    %c0_i32_0 = arith.constant 0 : i32
    %c0_i32_1 = arith.constant 0 : i32
    %c0_i32_2 = arith.constant 0 : i32
    return %c0_i32, %c0_i32_0, %c0_i32_1 : i32, i32, i32
  }
  func.func @transform_4(%arg0: i32) -> (i32, i32) {
    %c0_i32 = arith.constant 0 : i32
    %c0_i32_0 = arith.constant 0 : i32
    %c0_i32_1 = arith.constant 0 : i32
    return %c0_i32, %c0_i32_0 : i32, i32
  }
  func.func @transform_5(%arg0: i32) -> (i32, i32) {
    %c0_i32 = arith.constant 0 : i32
    %c0_i32_0 = arith.constant 0 : i32
    %c0_i32_1 = arith.constant 0 : i32
    return %c0_i32, %c0_i32_0 : i32, i32
  }
  func.func @transform_6(%arg0: i32) -> (i32, i32) {
    %c0_i32 = arith.constant 0 : i32
    %c0_i32_0 = arith.constant 0 : i32
    %c0_i32_1 = arith.constant 0 : i32
    return %c0_i32, %c0_i32_0 : i32, i32
  }
  func.func @transform_7(%arg0: i32) -> (i32, i32, i32) {
    %c0_i32 = arith.constant 0 : i32
    %c0_i32_0 = arith.constant 0 : i32
    %c0_i32_1 = arith.constant 0 : i32
    return %arg0, %c0_i32, %c0_i32_0 : i32, i32, i32
  }
}

</mosaic_0001>

<llo_original>
// kernel: tpu_custom_call.1
$region0: #{tpu_custom_call.1}
  #allocation0 [shape = 'u32[]', space=smem, size = 0x4, offset = 0x4, fixed_abs, tag = 'smem constant byte address 0x4 - core index']
  #allocation1 [shape = 'u32[144,128]{1,0:T(1,128)}', space=vmem, size = 0x12000, scoped, tag = 'internal scratch']
  %s0 = inlined_call_operand.vmem [shape: f32[2,256,16], index: 0, kind: input, shape index: {}]
  %s1 = inlined_call_operand.vmem [shape: f32[16,40], index: 1, kind: input, shape index: {}]
  %s2 = inlined_call_operand.vmem [shape: f32[1,40], index: 2, kind: input, shape index: {}]
  %s3 = inlined_call_operand.vmem [shape: f32[9,8,8], index: 3, kind: input, shape index: {}]
  %s4 = inlined_call_operand.vmem [shape: f32[1,8], index: 4, kind: input, shape index: {}]
  %s5 = inlined_call_operand.vmem [shape: f32[8,32], index: 5, kind: input, shape index: {}]
  %s6 = inlined_call_operand.vmem [shape: f32[1,32], index: 6, kind: input, shape index: {}]
  %s7 = inlined_call_operand.vmem [shape: f32[2,256,32], index: 7, kind: output, shape index: {}]
  %s8 = sld [smem:[#allocation0]]
  $region61: #{tpu_custom_call.1} parent=0
    _
  %s10 = ssub.s32 1, %s8
  %s11 = scalar_select 0, %s10, %s8
  loop: start=0, step=1, limit=4
  $region2: #{tpu_custom_call.1} parent=0 // loop_pre_header
    _
  $region3: #{tpu_custom_call.1} parent=0 // loop_header
    %s13 = sphi 0, %s17
    %p14 = scmp.ge.s32.totalorder %s13, 4
    %s23 = sphi 0, %s25
    %s26 = sphi 0, %s23
    %s27 = sphi 0, %s26
    %s43 = sphi 0, %s27
    %s47 = sphi 0, %s47
    %s49 = sphi 0, %s47
    %s50 = sphi 0, %s49
    %s64 = sphi 0, %s50
    %s68 = sphi 0, %s68
    %s70 = sphi 0, %s68
    %s71 = sphi 0, %s70
    %s85 = sphi 0, %s71
    %s89 = sphi 0, %s89
    %s91 = sphi 0, %s89
    %s92 = sphi 0, %s91
    %s106 = sphi 0, %s92
    %s110 = sphi 0, %s110
    %s112 = sphi 0, %s110
    %s113 = sphi 0, %s112
    %s127 = sphi 0, %s113
    %s131 = sphi 0, %s131
    %s133 = sphi 0, %s131
    %s134 = sphi 0, %s133
    %s148 = sphi 0, %s134
    %s152 = sphi 0, %s152
    %s154 = sphi 0, %s152
    %s155 = sphi 0, %s154
    %s169 = sphi 0, %s155
    %s175 = sphi 0, %s177
    %s178 = sphi 0, %s175
    %s179 = sphi 0, %s178
    %s195 = sphi 0, %s179
  $region4: #{tpu_custom_call.1} parent=0 // loop_header_branch
    %16 = sbr.rel (%p14) target = $region8
  $region5: #{tpu_custom_call.1} parent=0 // loop_body
    %s18 = ssub.s32 %s13, 1
    %s19 = ssub.s32 %s13, 2
    %s20 = sadd.s32 %s13, 1
    %s21 = ssub.s32 %s13, %s20
    %p22 = scmp.eq.s32.totalorder %s21, 0
    %s24 = sadd.s32 %s23, 1
    %s25 = scalar_select %p22, %s23, %s24
    %p28 = pneg %p22
    %p29 = scmp.eq.s32.totalorder %s13, 1
    %p30 = por %p28, %p29
    %p31 = scmp.ne.s32.totalorder %s23, %s26
    %p32 = scmp.eq.s32.totalorder %s13, 0
    %p33 = por %p31, %p32
    %p34 = scmp.ne.s32.totalorder %s23, %s26
    %p35 = scmp.eq.s32.totalorder %s18, 1
    %p36 = por %p34, %p35
    %p37 = scmp.ne.s32.totalorder %s26, %s27
    %p38 = scmp.eq.s32.totalorder %s18, 0
    %p39 = por %p37, %p38
    %p40 = scmp.ne.s32.totalorder %s26, %s27
    %p41 = scmp.eq.s32.totalorder %s19, 1
    %p42 = por %p40, %p41
    %p44 = scmp.ne.s32.totalorder %s27, %s43
    %p45 = scmp.eq.s32.totalorder %s19, 0
    %p46 = por %p44, %p45
    %s48 = sadd.s32 %s47, 1
    %p51 = scmp.eq.s32.totalorder %s13, 1
    %p52 = scmp.ne.s32.totalorder %s47, %s49
    %p53 = scmp.eq.s32.totalorder %s13, 0
    %p54 = por %p52, %p53
    %p55 = scmp.ne.s32.totalorder %s47, %s49
    %p56 = scmp.eq.s32.totalorder %s18, 1
    %p57 = por %p55, %p56
    %p58 = scmp.ne.s32.totalorder %s49, %s50
    %p59 = scmp.eq.s32.totalorder %s18, 0
    %p60 = por %p58, %p59
    %p61 = scmp.ne.s32.totalorder %s49, %s50
    %p62 = scmp.eq.s32.totalorder %s19, 1
    %p63 = por %p61, %p62
    %p65 = scmp.ne.s32.totalorder %s50, %s64
    %p66 = scmp.eq.s32.totalorder %s19, 0
    %p67 = por %p65, %p66
    %s69 = sadd.s32 %s68, 1
    %p72 = scmp.eq.s32.totalorder %s13, 1
    %p73 = scmp.ne.s32.totalorder %s68, %s70
    %p74 = scmp.eq.s32.totalorder %s13, 0
    %p75 = por %p73, %p74
    %p76 = scmp.ne.s32.totalorder %s68, %s70
    %p77 = scmp.eq.s32.totalorder %s18, 1
    %p78 = por %p76, %p77
    %p79 = scmp.ne.s32.totalorder %s70, %s71
    %p80 = scmp.eq.s32.totalorder %s18, 0
    %p81 = por %p79, %p80
    %p82 = scmp.ne.s32.totalorder %s70, %s71
    %p83 = scmp.eq.s32.totalorder %s19, 1
    %p84 = por %p82, %p83
    %p86 = scmp.ne.s32.totalorder %s71, %s85
    %p87 = scmp.eq.s32.totalorder %s19, 0
    %p88 = por %p86, %p87
    %s90 = sadd.s32 %s89, 1
    %p93 = scmp.eq.s32.totalorder %s13, 1
    %p94 = scmp.ne.s32.totalorder %s89, %s91
    %p95 = scmp.eq.s32.totalorder %s13, 0
    %p96 = por %p94, %p95
    %p97 = scmp.ne.s32.totalorder %s89, %s91
    %p98 = scmp.eq.s32.totalorder %s18, 1
    %p99 = por %p97, %p98
    %p100 = scmp.ne.s32.totalorder %s91, %s92
    %p101 = scmp.eq.s32.totalorder %s18, 0
    %p102 = por %p100, %p101
    %p103 = scmp.ne.s32.totalorder %s91, %s92
    %p104 = scmp.eq.s32.totalorder %s19, 1
    %p105 = por %p103, %p104
    %p107 = scmp.ne.s32.totalorder %s92, %s106
    %p108 = scmp.eq.s32.totalorder %s19, 0
    %p109 = por %p107, %p108
    %s111 = sadd.s32 %s110, 1
    %p114 = scmp.eq.s32.totalorder %s13, 1
    %p115 = scmp.ne.s32.totalorder %s110, %s112
    %p116 = scmp.eq.s32.totalorder %s13, 0
    %p117 = por %p115, %p116
    %p118 = scmp.ne.s32.totalorder %s110, %s112
    %p119 = scmp.eq.s32.totalorder %s18, 1
    %p120 = por %p118, %p119
    %p121 = scmp.ne.s32.totalorder %s112, %s113
    %p122 = scmp.eq.s32.totalorder %s18, 0
    %p123 = por %p121, %p122
    %p124 = scmp.ne.s32.totalorder %s112, %s113
    %p125 = scmp.eq.s32.totalorder %s19, 1
    %p126 = por %p124, %p125
    %p128 = scmp.ne.s32.totalorder %s113, %s127
    %p129 = scmp.eq.s32.totalorder %s19, 0
    %p130 = por %p128, %p129
    %s132 = sadd.s32 %s131, 1
    %p135 = scmp.eq.s32.totalorder %s13, 1
    %p136 = scmp.ne.s32.totalorder %s131, %s133
    %p137 = scmp.eq.s32.totalorder %s13, 0
    %p138 = por %p136, %p137
    %p139 = scmp.ne.s32.totalorder %s131, %s133
    %p140 = scmp.eq.s32.totalorder %s18, 1
    %p141 = por %p139, %p140
    %p142 = scmp.ne.s32.totalorder %s133, %s134
    %p143 = scmp.eq.s32.totalorder %s18, 0
    %p144 = por %p142, %p143
    %p145 = scmp.ne.s32.totalorder %s133, %s134
    %p146 = scmp.eq.s32.totalorder %s19, 1
    %p147 = por %p145, %p146
    %p149 = scmp.ne.s32.totalorder %s134, %s148
    %p150 = scmp.eq.s32.totalorder %s19, 0
    %p151 = por %p149, %p150
    %s153 = sadd.s32 %s152, 1
    %p156 = scmp.eq.s32.totalorder %s13, 1
    %p157 = scmp.ne.s32.totalorder %s152, %s154
    %p158 = scmp.eq.s32.totalorder %s13, 0
    %p159 = por %p157, %p158
    %p160 = scmp.ne.s32.totalorder %s152, %s154
    %p161 = scmp.eq.s32.totalorder %s18, 1
    %p162 = por %p160, %p161
    %p163 = scmp.ne.s32.totalorder %s154, %s155
    %p164 = scmp.eq.s32.totalorder %s18, 0
    %p165 = por %p163, %p164
    %p166 = scmp.ne.s32.totalorder %s154, %s155
    %p167 = scmp.eq.s32.totalorder %s19, 1
    %p168 = por %p166, %p167
    %p170 = scmp.ne.s32.totalorder %s155, %s169
    %p171 = scmp.eq.s32.totalorder %s19, 0
    %p172 = por %p170, %p171
    %s173 = ssub.s32 %s13, %s20
    %p174 = scmp.eq.s32.totalorder %s173, 0
    %s176 = sadd.s32 %s175, 1
    %s177 = scalar_select %p174, %s175, %s176
    %p180 = pneg %p174
    %p181 = scmp.eq.s32.totalorder %s13, 1
    %p182 = por %p180, %p181
    %p183 = scmp.ne.s32.totalorder %s175, %s178
    %p184 = scmp.eq.s32.totalorder %s13, 0
    %p185 = por %p183, %p184
    %p186 = scmp.ne.s32.totalorder %s175, %s178
    %p187 = scmp.eq.s32.totalorder %s18, 1
    %p188 = por %p186, %p187
    %p189 = scmp.ne.s32.totalorder %s178, %s179
    %p190 = scmp.eq.s32.totalorder %s18, 0
    %p191 = por %p189, %p190
    %p192 = scmp.ne.s32.totalorder %s178, %s179
    %p193 = scmp.eq.s32.totalorder %s19, 1
    %p194 = por %p192, %p193
    %p196 = scmp.ne.s32.totalorder %s179, %s195
    %p197 = scmp.eq.s32.totalorder %s19, 0
    %p198 = por %p196, %p197
    %p199 = scmp.le.s32.totalorder 1, %s13
    %p200 = scmp.lt.s32.totalorder %s13, 3
    %p201 = pnand %p199, %p200
    %p202 = pneg %p201
    // Predicated region
    $region9: #{tpu_custom_call.1} parent=5 // pred_check
      _
    $region10: #{tpu_custom_call.1} parent=5 // pred_check_branch
      %204 = sbr.rel (%p201) target = $region12
    $region11: #{tpu_custom_call.1} parent=5 // pred_region
      %s205 = ssub.s32 %s13, 1
      // Predicated region
      $region13: #{tpu_custom_call.1} parent=11 // pred_check
        %p206 = pneg %p60
      $region14: #{tpu_custom_call.1} parent=11 // pred_check_branch
        %208 = sbr.rel (%p206) target = $region16
      $region15: #{tpu_custom_call.1} parent=11 // pred_region
        _
      $region16: #{tpu_custom_call.1} parent=11 // pred_fallthru
        _
      // Predicated region
      $region17: #{tpu_custom_call.1} parent=11 // pred_check
        %p209 = pneg %p81
      $region18: #{tpu_custom_call.1} parent=11 // pred_check_branch
        %211 = sbr.rel (%p209) target = $region20
      $region19: #{tpu_custom_call.1} parent=11 // pred_region
        _
      $region20: #{tpu_custom_call.1} parent=11 // pred_fallthru
        _
      // Predicated region
      $region21: #{tpu_custom_call.1} parent=11 // pred_check
        %p212 = pneg %p102
      $region22: #{tpu_custom_call.1} parent=11 // pred_check_branch
        %214 = sbr.rel (%p212) target = $region24
      $region23: #{tpu_custom_call.1} parent=11 // pred_region
        _
      $region24: #{tpu_custom_call.1} parent=11 // pred_fallthru
        _
      // Predicated region
      $region25: #{tpu_custom_call.1} parent=11 // pred_check
        %p215 = pneg %p123
      $region26: #{tpu_custom_call.1} parent=11 // pred_check_branch
        %217 = sbr.rel (%p215) target = $region28
      $region27: #{tpu_custom_call.1} parent=11 // pred_region
        _
      $region28: #{tpu_custom_call.1} parent=11 // pred_fallthru
        _
      // Predicated region
      $region29: #{tpu_custom_call.1} parent=11 // pred_check
        %p218 = pneg %p144
      $region30: #{tpu_custom_call.1} parent=11 // pred_check_branch
        %220 = sbr.rel (%p218) target = $region32
      $region31: #{tpu_custom_call.1} parent=11 // pred_region
        _
      $region32: #{tpu_custom_call.1} parent=11 // pred_fallthru
        _
      // Predicated region
      $region33: #{tpu_custom_call.1} parent=11 // pred_check
        %p221 = pneg %p165
      $region34: #{tpu_custom_call.1} parent=11 // pred_check_branch
        %223 = sbr.rel (%p221) target = $region36
      $region35: #{tpu_custom_call.1} parent=11 // pred_region
        _
      $region36: #{tpu_custom_call.1} parent=11 // pred_fallthru
        _
    $region12: #{tpu_custom_call.1} parent=5 // pred_fallthru
      _
    %p224 = scmp.lt.s32.totalorder %s13, 2
    // Predicated region
    $region37: #{tpu_custom_call.1} parent=5 // pred_check
      %p225 = pneg %p224
    $region38: #{tpu_custom_call.1} parent=5 // pred_check_branch
      %227 = sbr.rel (%p225) target = $region40
    $region39: #{tpu_custom_call.1} parent=5 // pred_region
      // Predicated region
      $region41: #{tpu_custom_call.1} parent=39 // pred_check
        %p228 = pneg %p33
      $region42: #{tpu_custom_call.1} parent=39 // pred_check_branch
        %230 = sbr.rel (%p228) target = $region44
      $region43: #{tpu_custom_call.1} parent=39 // pred_region
        %p231 = scmp.lt.s32.totalorder %s13, 1
        %s232 = scalar_select %p231, %s13, 1
        %s233 = smul.addr %s232, 32
        %s234 = smul.addr %s233, 8
        %s235 = scalar_lea.vmem %s0, %s234
      $region44: #{tpu_custom_call.1} parent=39 // pred_fallthru
        _
    $region40: #{tpu_custom_call.1} parent=5 // pred_fallthru
      _
    %p236 = scmp.le.s32.totalorder 1, %s13
    %p237 = scmp.lt.s32.totalorder %s13, 3
    %p238 = pnand %p236, %p237
    %p239 = pneg %p238
    // Predicated region
    $region45: #{tpu_custom_call.1} parent=5 // pred_check
      _
    $region46: #{tpu_custom_call.1} parent=5 // pred_check_branch
      %241 = sbr.rel (%p238) target = $region48
    $region47: #{tpu_custom_call.1} parent=5 // pred_region
      %s242 = ssub.s32 %s13, 1
      %p243 = scmp.lt.s32.totalorder %s18, 1
      %s244 = scalar_select %p243, %s18, 1
      %s245 = smul.addr %s244, 32
      %s246 = smul.addr %s245, 8
      %s247 = scalar_lea.vmem %s0, %s246
      %p248 = pneg %p39
      %p249 = pneg %p36
      %p250 = pneg %p60
      %p251 = pneg %p57
      %p252 = pneg %p81
      %p253 = pneg %p78
      %p254 = pneg %p102
      %p255 = pneg %p99
      %p256 = pneg %p123
      %p257 = pneg %p120
      %p258 = pneg %p144
      %p259 = pneg %p141
      %p260 = pneg %p165
      %p261 = pneg %p162
      %p262 = pneg %p191
      %p263 = pneg %p188
      %p264 = scmp.lt.s32.totalorder %s18, 1
      %s265 = scalar_select %p264, %s18, 1
      %s266 = smul.addr %s265, 32
      %s267 = smul.addr %s266, 8
      %s268 = scalar_lea.vmem %s7, %s267
      %p269 = scmp.lt.s32.totalorder %s18, 1
      %s270 = scalar_select %p269, %s18, 1
      %s271 = smul.addr %s270, 32
      %s272 = smul.addr %s271, 8
      %s273 = scalar_lea.vmem %s0, %s272
      %p274 = scmp.lt.s32.totalorder %s18, 1
      %s275 = scalar_select %p274, %s18, 1
      %s276 = smul.addr %s275, 32
      %s277 = smul.addr %s276, 8
      %s278 = scalar_lea.vmem %s7, %s277
      %v279 = vld [vmem:[%s273] sm:$0xff]
      %v280 = vld [vmem:[%s273 + $0x8] sm:$0xff]
      %v281 = vld [vmem:[%s273 + $0x10] sm:$0xff]
      %v282 = vld [vmem:[%s273 + $0x18] sm:$0xff]
      %v283 = vld [vmem:[%s273 + $0x20] sm:$0xff]
      %v284 = vld [vmem:[%s273 + $0x28] sm:$0xff]
      %v285 = vld [vmem:[%s273 + $0x30] sm:$0xff]
      %v286 = vld [vmem:[%s273 + $0x38] sm:$0xff]
      %v287 = vld [vmem:[%s273 + $0x40] sm:$0xff]
      %v288 = vld [vmem:[%s273 + $0x48] sm:$0xff]
      %v289 = vld [vmem:[%s273 + $0x50] sm:$0xff]
      %v290 = vld [vmem:[%s273 + $0x58] sm:$0xff]
      %v291 = vld [vmem:[%s273 + $0x60] sm:$0xff]
      %v292 = vld [vmem:[%s273 + $0x68] sm:$0xff]
      %v293 = vld [vmem:[%s273 + $0x70] sm:$0xff]
      %v294 = vld [vmem:[%s273 + $0x78] sm:$0xff]
      %v295 = vld [vmem:[%s273 + $0x80] sm:$0xff]
      %v296 = vld [vmem:[%s273 + $0x88] sm:$0xff]
      %v297 = vld [vmem:[%s273 + $0x90] sm:$0xff]
      %v298 = vld [vmem:[%s273 + $0x98] sm:$0xff]
      %v299 = vld [vmem:[%s273 + $0xa0] sm:$0xff]
      %v300 = vld [vmem:[%s273 + $0xa8] sm:$0xff]
      %v301 = vld [vmem:[%s273 + $0xb0] sm:$0xff]
      %v302 = vld [vmem:[%s273 + $0xb8] sm:$0xff]
      %v303 = vld [vmem:[%s273 + $0xc0] sm:$0xff]
      %v304 = vld [vmem:[%s273 + $0xc8] sm:$0xff]
      %v305 = vld [vmem:[%s273 + $0xd0] sm:$0xff]
      %v306 = vld [vmem:[%s273 + $0xd8] sm:$0xff]
      %v307 = vld [vmem:[%s273 + $0xe0] sm:$0xff]
      %v308 = vld [vmem:[%s273 + $0xe8] sm:$0xff]
      %v309 = vld [vmem:[%s273 + $0xf0] sm:$0xff]
      %v310 = vld [vmem:[%s273 + $0xf8] sm:$0xff]
      %v311 = vld [vmem:[%s1] sm:$0xff]
      %v312 = vld [vmem:[%s1 + $0x8] sm:$0xff]
      %v313 = vld [vmem:[%s2] sm:$0x1]
      %v315 = vlaneseq
      %v316 = vshrl.u32 %v315, 7
      %v317 = vsub.s32 0, %v316
      %v318 = vrot.slane %v313, %v317
      %vm320 = vcmask 130048
      %v322 = vsel %vm320, %v279, 0
      %v325 = vsel %vm320, %v280, 0
      %v328 = vsel %vm320, %v281, 0
      %v331 = vsel %vm320, %v282, 0
      %v334 = vsel %vm320, %v283, 0
      %v337 = vsel %vm320, %v284, 0
      %v340 = vsel %vm320, %v285, 0
      %v343 = vsel %vm320, %v286, 0
      %v346 = vsel %vm320, %v287, 0
      %v349 = vsel %vm320, %v288, 0
      %v352 = vsel %vm320, %v289, 0
      %v355 = vsel %vm320, %v290, 0
      %v358 = vsel %vm320, %v291, 0
      %v361 = vsel %vm320, %v292, 0
      %v364 = vsel %vm320, %v293, 0
      %v367 = vsel %vm320, %v294, 0
      %v370 = vsel %vm320, %v295, 0
      %v373 = vsel %vm320, %v296, 0
      %v376 = vsel %vm320, %v297, 0
      %v379 = vsel %vm320, %v298, 0
      %v382 = vsel %vm320, %v299, 0
      %v385 = vsel %vm320, %v300, 0
      %v388 = vsel %vm320, %v301, 0
      %v391 = vsel %vm320, %v302, 0
      %v394 = vsel %vm320, %v303, 0
      %v397 = vsel %vm320, %v304, 0
      %v400 = vsel %vm320, %v305, 0
      %v403 = vsel %vm320, %v306, 0
      %v406 = vsel %vm320, %v307, 0
      %v409 = vsel %vm320, %v308, 0
      %v412 = vsel %vm320, %v309, 0
      %v415 = vsel %vm320, %v310, 0
      %417 = vmatprep.subr.mxu0 0.0
      %418 = vmatpush1.msra.mxu0 0.0
      %419 = vmatprep.subr.mxu0 0.0
      %420 = vmatpush1.msra.mxu0 0.0
      %421 = vmatprep.subr.mxu0 0.0
      %422 = vmatpush1.msra.mxu0 0.0
      %423 = vmatprep.subr.mxu0 0.0
      %424 = vmatpush1.msra.mxu0 0.0
      %425 = vmatprep.subr.mxu0 0.0
      %426 = vmatpush1.msra.mxu0 0.0
      %427 = vmatprep.subr.mxu0 0.0
      %428 = vmatpush1.msra.mxu0 0.0
      %429 = vmatprep.subr.mxu0 0.0
      %430 = vmatpush1.msra.mxu0 0.0
      %431 = vmatprep.subr.mxu0 0.0
      %432 = vmatpush1.msra.mxu0 0.0
      %433 = vmatprep.subr.mxu0 0.0
      %434 = vmatpush1.msra.mxu0 0.0
      %435 = vmatprep.subr.mxu0 0.0
      %436 = vmatpush1.msra.mxu0 0.0
      %437 = vmatprep.subr.mxu0 0.0
      %438 = vmatpush1.msra.mxu0 0.0
      %439 = vmatprep.subr.mxu0 0.0
      %440 = vmatpush1.msra.mxu0 0.0
      %441 = vmatprep.subr.mxu0 0.0
      %442 = vmatpush1.msra.mxu0 0.0
      %443 = vmatprep.subr.mxu0 0.0
      %444 = vmatpush1.msra.mxu0 0.0
      %445 = vmatprep.subr.mxu0 0.0
      %446 = vmatpush1.msra.mxu0 %v312
      %447 = vmatprep.subr.mxu0 0.0
      %448 = vmatpush1.msra.mxu0 %v311
      %449 = vmatprep.subr.mxu0 0.0
      %450 = vmatpush2.msra.mxu0 0.0
      %451 = vmatprep.subr.mxu0 0.0
      %452 = vmatpush2.msra.mxu0 0.0
      %453 = vmatprep.subr.mxu0 0.0
      %454 = vmatpush2.msra.mxu0 0.0
      %455 = vmatprep.subr.mxu0 0.0
      %456 = vmatpush2.msra.mxu0 0.0
      %457 = vmatprep.subr.mxu0 0.0
      %458 = vmatpush2.msra.mxu0 0.0
      %459 = vmatprep.subr.mxu0 0.0
      %460 = vmatpush2.msra.mxu0 0.0
      %461 = vmatprep.subr.mxu0 0.0
      %462 = vmatpush2.msra.mxu0 0.0
      %463 = vmatprep.subr.mxu0 0.0
      %464 = vmatpush2.msra.mxu0 0.0
      %465 = vmatprep.subr.mxu0 0.0
      %466 = vmatpush2.msra.mxu0 0.0
      %467 = vmatprep.subr.mxu0 0.0
      %468 = vmatpush2.msra.mxu0 0.0
      %469 = vmatprep.subr.mxu0 0.0
      %470 = vmatpush2.msra.mxu0 0.0
      %471 = vmatprep.subr.mxu0 0.0
      %472 = vmatpush2.msra.mxu0 0.0
      %473 = vmatprep.subr.mxu0 0.0
      %474 = vmatpush2.msra.mxu0 0.0
      %475 = vmatprep.subr.mxu0 0.0
      %476 = vmatpush2.msra.mxu0 0.0
      %477 = vmatprep.subr.mxu0 0.0
      %478 = vmatpush2.msra.mxu0 0.0
      %479 = vmatprep.subr.mxu0 0.0
      %480 = vmatpush2.msra.mxu0 0.0
      %481 = vmatprep.mubr.f32.mxu0 0.0
      %482 = vmatmul.mubr.f32.gmra.mxu0 %v322
      %v483 = vpop.f32.mrf.mxu0
      %v484 = vadd.f32 %v318, %v483
      %v485 = vpop.f32.mrf.mxu0
      %486 = vmatprep.mubr.f32.mxu0 0.0
      %487 = vmatmul.mubr.f32.gmra.mxu0 %v325
      %v488 = vpop.f32.mrf.mxu0
      %v489 = vadd.f32 %v318, %v488
      %v490 = vpop.f32.mrf.mxu0
      %491 = vmatprep.mubr.f32.mxu0 0.0
      %492 = vmatmul.mubr.f32.gmra.mxu0 %v328
      %v493 = vpop.f32.mrf.mxu0
      %v494 = vadd.f32 %v318, %v493
      %v495 = vpop.f32.mrf.mxu0
      %496 = vmatprep.mubr.f32.mxu0 0.0
      %497 = vmatmul.mubr.f32.gmra.mxu0 %v331
      %v498 = vpop.f32.mrf.mxu0
      %v499 = vadd.f32 %v318, %v498
      %v500 = vpop.f32.mrf.mxu0
      %501 = vmatprep.mubr.f32.mxu0 0.0
      %502 = vmatmul.mubr.f32.gmra.mxu0 %v334
      %v503 = vpop.f32.mrf.mxu0
      %v504 = vadd.f32 %v318, %v503
      %v505 = vpop.f32.mrf.mxu0
      %506 = vmatprep.mubr.f32.mxu0 0.0
      %507 = vmatmul.mubr.f32.gmra.mxu0 %v337
      %v508 = vpop.f32.mrf.mxu0
      %v509 = vadd.f32 %v318, %v508
      %v510 = vpop.f32.mrf.mxu0
      %511 = vmatprep.mubr.f32.mxu0 0.0
      %512 = vmatmul.mubr.f32.gmra.mxu0 %v340
      %v513 = vpop.f32.mrf.mxu0
      %v514 = vadd.f32 %v318, %v513
      %v515 = vpop.f32.mrf.mxu0
      %516 = vmatprep.mubr.f32.mxu0 0.0
      %517 = vmatmul.mubr.f32.gmra.mxu0 %v343
      %v518 = vpop.f32.mrf.mxu0
      %v519 = vadd.f32 %v318, %v518
      %v520 = vpop.f32.mrf.mxu0
      %521 = vmatprep.mubr.f32.mxu0 0.0
      %522 = vmatmul.mubr.f32.gmra.mxu0 %v346
      %v523 = vpop.f32.mrf.mxu0
      %v524 = vadd.f32 %v318, %v523
      %v525 = vpop.f32.mrf.mxu0
      %526 = vmatprep.mubr.f32.mxu0 0.0
      %527 = vmatmul.mubr.f32.gmra.mxu0 %v349
      %v528 = vpop.f32.mrf.mxu0
      %v529 = vadd.f32 %v318, %v528
      %v530 = vpop.f32.mrf.mxu0
      %531 = vmatprep.mubr.f32.mxu0 0.0
      %532 = vmatmul.mubr.f32.gmra.mxu0 %v352
      %v533 = vpop.f32.mrf.mxu0
      %v534 = vadd.f32 %v318, %v533
      %v535 = vpop.f32.mrf.mxu0
      %536 = vmatprep.mubr.f32.mxu0 0.0
      %537 = vmatmul.mubr.f32.gmra.mxu0 %v355
      %v538 = vpop.f32.mrf.mxu0
      %v539 = vadd.f32 %v318, %v538
      %v540 = vpop.f32.mrf.mxu0
      %541 = vmatprep.mubr.f32.mxu0 0.0
      %542 = vmatmul.mubr.f32.gmra.mxu0 %v358
      %v543 = vpop.f32.mrf.mxu0
      %v544 = vadd.f32 %v318, %v543
      %v545 = vpop.f32.mrf.mxu0
      %546 = vmatprep.mubr.f32.mxu0 0.0
      %547 = vmatmul.mubr.f32.gmra.mxu0 %v361
      %v548 = vpop.f32.mrf.mxu0
      %v549 = vadd.f32 %v318, %v548
      %v550 = vpop.f32.mrf.mxu0
      %551 = vmatprep.mubr.f32.mxu0 0.0
      %552 = vmatmul.mubr.f32.gmra.mxu0 %v364
      %v553 = vpop.f32.mrf.mxu0
      %v554 = vadd.f32 %v318, %v553
      %v555 = vpop.f32.mrf.mxu0
      %556 = vmatprep.mubr.f32.mxu0 0.0
      %557 = vmatmul.mubr.f32.gmra.mxu0 %v367
      %v558 = vpop.f32.mrf.mxu0
      %v559 = vadd.f32 %v318, %v558
      %v560 = vpop.f32.mrf.mxu0
      %561 = vmatprep.mubr.f32.mxu0 0.0
      %562 = vmatmul.mubr.f32.gmra.mxu0 %v370
      %v563 = vpop.f32.mrf.mxu0
      %v564 = vadd.f32 %v318, %v563
      %v565 = vpop.f32.mrf.mxu0
      %566 = vmatprep.mubr.f32.mxu0 0.0
      %567 = vmatmul.mubr.f32.gmra.mxu0 %v373
      %v568 = vpop.f32.mrf.mxu0
      %v569 = vadd.f32 %v318, %v568
      %v570 = vpop.f32.mrf.mxu0
      %571 = vmatprep.mubr.f32.mxu0 0.0
      %572 = vmatmul.mubr.f32.gmra.mxu0 %v376
      %v573 = vpop.f32.mrf.mxu0
      %v574 = vadd.f32 %v318, %v573
      %v575 = vpop.f32.mrf.mxu0
      %576 = vmatprep.mubr.f32.mxu0 0.0
      %577 = vmatmul.mubr.f32.gmra.mxu0 %v379
      %v578 = vpop.f32.mrf.mxu0
      %v579 = vadd.f32 %v318, %v578
      %v580 = vpop.f32.mrf.mxu0
      %581 = vmatprep.mubr.f32.mxu0 0.0
      %582 = vmatmul.mubr.f32.gmra.mxu0 %v382
      %v583 = vpop.f32.mrf.mxu0
      %v584 = vadd.f32 %v318, %v583
      %v585 = vpop.f32.mrf.mxu0
      %586 = vmatprep.mubr.f32.mxu0 0.0
      %587 = vmatmul.mubr.f32.gmra.mxu0 %v385
      %v588 = vpop.f32.mrf.mxu0
      %v589 = vadd.f32 %v318, %v588
      %v590 = vpop.f32.mrf.mxu0
      %591 = vmatprep.mubr.f32.mxu0 0.0
      %592 = vmatmul.mubr.f32.gmra.mxu0 %v388
      %v593 = vpop.f32.mrf.mxu0
      %v594 = vadd.f32 %v318, %v593
      %v595 = vpop.f32.mrf.mxu0
      %596 = vmatprep.mubr.f32.mxu0 0.0
      %597 = vmatmul.mubr.f32.gmra.mxu0 %v391
      %v598 = vpop.f32.mrf.mxu0
      %v599 = vadd.f32 %v318, %v598
      %v600 = vpop.f32.mrf.mxu0
      %601 = vmatprep.mubr.f32.mxu0 0.0
      %602 = vmatmul.mubr.f32.gmra.mxu0 %v394
      %v603 = vpop.f32.mrf.mxu0
      %v604 = vadd.f32 %v318, %v603
      %v605 = vpop.f32.mrf.mxu0
      %606 = vmatprep.mubr.f32.mxu0 0.0
      %607 = vmatmul.mubr.f32.gmra.mxu0 %v397
      %v608 = vpop.f32.mrf.mxu0
      %v609 = vadd.f32 %v318, %v608
      %v610 = vpop.f32.mrf.mxu0
      %611 = vmatprep.mubr.f32.mxu0 0.0
      %612 = vmatmul.mubr.f32.gmra.mxu0 %v400
      %v613 = vpop.f32.mrf.mxu0
      %v614 = vadd.f32 %v318, %v613
      %v615 = vpop.f32.mrf.mxu0
      %616 = vmatprep.mubr.f32.mxu0 0.0
      %617 = vmatmul.mubr.f32.gmra.mxu0 %v403
      %v618 = vpop.f32.mrf.mxu0
      %v619 = vadd.f32 %v318, %v618
      %v620 = vpop.f32.mrf.mxu0
      %621 = vmatprep.mubr.f32.mxu0 0.0
      %622 = vmatmul.mubr.f32.gmra.mxu0 %v406
      %v623 = vpop.f32.mrf.mxu0
      %v624 = vadd.f32 %v318, %v623
      %v625 = vpop.f32.mrf.mxu0
      %626 = vmatprep.mubr.f32.mxu0 0.0
      %627 = vmatmul.mubr.f32.gmra.mxu0 %v409
      %v628 = vpop.f32.mrf.mxu0
      %v629 = vadd.f32 %v318, %v628
      %v630 = vpop.f32.mrf.mxu0
      %631 = vmatprep.mubr.f32.mxu0 0.0
      %632 = vmatmul.mubr.f32.gmra.mxu0 %v412
      %v633 = vpop.f32.mrf.mxu0
      %v634 = vadd.f32 %v318, %v633
      %v635 = vpop.f32.mrf.mxu0
      %636 = vmatprep.mubr.f32.mxu0 0.0
      %637 = vmatmul.mubr.f32.gmra.mxu0 %v415
      %v638 = vpop.f32.mrf.mxu0
      %v639 = vadd.f32 %v318, %v638
      %v640 = vpop.f32.mrf.mxu0
      %641 = vdwg.mxu0
      %v642 = vmax.f32 %v484, 0.0
      %v643 = vmax.f32 %v489, 0.0
      %v644 = vmax.f32 %v494, 0.0
      %v645 = vmax.f32 %v499, 0.0
      %v646 = vmax.f32 %v504, 0.0
      %v647 = vmax.f32 %v509, 0.0
      %v648 = vmax.f32 %v514, 0.0
      %v649 = vmax.f32 %v519, 0.0
      %v650 = vmax.f32 %v524, 0.0
      %v651 = vmax.f32 %v529, 0.0
      %v652 = vmax.f32 %v534, 0.0
      %v653 = vmax.f32 %v539, 0.0
      %v654 = vmax.f32 %v544, 0.0
      %v655 = vmax.f32 %v549, 0.0
      %v656 = vmax.f32 %v554, 0.0
      %v657 = vmax.f32 %v559, 0.0
      %v658 = vmax.f32 %v564, 0.0
      %v659 = vmax.f32 %v569, 0.0
      %v660 = vmax.f32 %v574, 0.0
      %v661 = vmax.f32 %v579, 0.0
      %v662 = vmax.f32 %v584, 0.0
      %v663 = vmax.f32 %v589, 0.0
      %v664 = vmax.f32 %v594, 0.0
      %v665 = vmax.f32 %v599, 0.0
      %v666 = vmax.f32 %v604, 0.0
      %v667 = vmax.f32 %v609, 0.0
      %v668 = vmax.f32 %v614, 0.0
      %v669 = vmax.f32 %v619, 0.0
      %v670 = vmax.f32 %v624, 0.0
      %v671 = vmax.f32 %v629, 0.0
      %v672 = vmax.f32 %v634, 0.0
      %v673 = vmax.f32 %v639, 0.0
      %v674 = vlaneseq
      %v675 = vshrl.u32 %v674, 7
      %v676 = vadd.s32 %v675, 8
      %v677 = vadd.s32 %v675, 16
      %v678 = vadd.s32 %v675, 24
      %v679 = vadd.s32 %v675, 32
      %v680 = vadd.s32 %v675, 40
      %v681 = vadd.s32 %v675, 48
      %v682 = vadd.s32 %v675, 56
      %v683 = vadd.s32 %v675, 64
      %v684 = vadd.s32 %v675, 72
      %v685 = vadd.s32 %v675, 80
      %v686 = vadd.s32 %v675, 88
      %v687 = vadd.s32 %v675, 96
      %v688 = vadd.s32 %v675, 104
      %v689 = vadd.s32 %v675, 112
      %v690 = vadd.s32 %v675, 120
      %v691 = vadd.s32 %v675, 128
      %v692 = vadd.s32 %v675, 136
      %v693 = vadd.s32 %v675, 144
      %v694 = vadd.s32 %v675, 152
      %v695 = vadd.s32 %v675, 160
      %v696 = vadd.s32 %v675, 168
      %v697 = vadd.s32 %v675, 176
      %v698 = vadd.s32 %v675, 184
      %v699 = vadd.s32 %v675, 192
      %v700 = vadd.s32 %v675, 200
      %v701 = vadd.s32 %v675, 208
      %v702 = vadd.s32 %v675, 216
      %v703 = vadd.s32 %v675, 224
      %v704 = vadd.s32 %v675, 232
      %v705 = vadd.s32 %v675, 240
      %v706 = vadd.s32 %v675, 248
      %vm707 = vcmp.lt.s32.totalorder %v675, 0
      %v708 = vsub.s32 0, %v675
      %v709 = vsel %vm707, %v708, %v675
      %v710 = vshrl.u32 %v709, 4
      %v711 = vand.u32 %v709, 15
      %v712 = vsub.s32 0, %v711
      %v713 = vsel %vm707, %v712, %v711
      %vm714 = vcmp.lt.s32.totalorder %v676, 0
      %v715 = vsub.s32 0, %v676
      %v716 = vsel %vm714, %v715, %v676
      %v717 = vshrl.u32 %v716, 4
      %v718 = vand.u32 %v716, 15
      %v719 = vsub.s32 0, %v718
      %v720 = vsel %vm714, %v719, %v718
      %vm721 = vcmp.lt.s32.totalorder %v677, 0
      %v722 = vsub.s32 0, %v677
      %v723 = vsel %vm721, %v722, %v677
      %v724 = vshrl.u32 %v723, 4
      %v725 = vand.u32 %v723, 15
      %v726 = vsub.s32 0, %v725
      %v727 = vsel %vm721, %v726, %v725
      %vm728 = vcmp.lt.s32.totalorder %v678, 0
      %v729 = vsub.s32 0, %v678
      %v730 = vsel %vm728, %v729, %v678
      %v731 = vshrl.u32 %v730, 4
      %v732 = vand.u32 %v730, 15
      %v733 = vsub.s32 0, %v732
      %v734 = vsel %vm728, %v733, %v732
      %vm735 = vcmp.lt.s32.totalorder %v679, 0
      %v736 = vsub.s32 0, %v679
      %v737 = vsel %vm735, %v736, %v679
      %v738 = vshrl.u32 %v737, 4
      %v739 = vand.u32 %v737, 15
      %v740 = vsub.s32 0, %v739
      %v741 = vsel %vm735, %v740, %v739
      %vm742 = vcmp.lt.s32.totalorder %v680, 0
      %v743 = vsub.s32 0, %v680
      %v744 = vsel %vm742, %v743, %v680
      %v745 = vshrl.u32 %v744, 4
      %v746 = vand.u32 %v744, 15
      %v747 = vsub.s32 0, %v746
      %v748 = vsel %vm742, %v747, %v746
      %vm749 = vcmp.lt.s32.totalorder %v681, 0
      %v750 = vsub.s32 0, %v681
      %v751 = vsel %vm749, %v750, %v681
      %v752 = vshrl.u32 %v751, 4
      %v753 = vand.u32 %v751, 15
      %v754 = vsub.s32 0, %v753
      %v755 = vsel %vm749, %v754, %v753
      %vm756 = vcmp.lt.s32.totalorder %v682, 0
      %v757 = vsub.s32 0, %v682
      %v758 = vsel %vm756, %v757, %v682
      %v759 = vshrl.u32 %v758, 4
      %v760 = vand.u32 %v758, 15
      %v761 = vsub.s32 0, %v760
      %v762 = vsel %vm756, %v761, %v760
      %vm763 = vcmp.lt.s32.totalorder %v683, 0
      %v764 = vsub.s32 0, %v683
      %v765 = vsel %vm763, %v764, %v683
      %v766 = vshrl.u32 %v765, 4
      %v767 = vand.u32 %v765, 15
      %v768 = vsub.s32 0, %v767
      %v769 = vsel %vm763, %v768, %v767
      %vm770 = vcmp.lt.s32.totalorder %v684, 0
      %v771 = vsub.s32 0, %v684
      %v772 = vsel %vm770, %v771, %v684
      %v773 = vshrl.u32 %v772, 4
      %v774 = vand.u32 %v772, 15
      %v775 = vsub.s32 0, %v774
      %v776 = vsel %vm770, %v775, %v774
      %vm777 = vcmp.lt.s32.totalorder %v685, 0
      %v778 = vsub.s32 0, %v685
      %v779 = vsel %vm777, %v778, %v685
      %v780 = vshrl.u32 %v779, 4
      %v781 = vand.u32 %v779, 15
      %v782 = vsub.s32 0, %v781
      %v783 = vsel %vm777, %v782, %v781
      %vm784 = vcmp.lt.s32.totalorder %v686, 0
      %v785 = vsub.s32 0, %v686
      %v786 = vsel %vm784, %v785, %v686
      %v787 = vshrl.u32 %v786, 4
      %v788 = vand.u32 %v786, 15
      %v789 = vsub.s32 0, %v788
      %v790 = vsel %vm784, %v789, %v788
      %vm791 = vcmp.lt.s32.totalorder %v687, 0
      %v792 = vsub.s32 0, %v687
      %v793 = vsel %vm791, %v792, %v687
      %v794 = vshrl.u32 %v793, 4
      %v795 = vand.u32 %v793, 15
      %v796 = vsub.s32 0, %v795
      %v797 = vsel %vm791, %v796, %v795
      %vm798 = vcmp.lt.s32.totalorder %v688, 0
      %v799 = vsub.s32 0, %v688
      %v800 = vsel %vm798, %v799, %v688
      %v801 = vshrl.u32 %v800, 4
      %v802 = vand.u32 %v800, 15
      %v803 = vsub.s32 0, %v802
      %v804 = vsel %vm798, %v803, %v802
      %vm805 = vcmp.lt.s32.totalorder %v689, 0
      %v806 = vsub.s32 0, %v689
      %v807 = vsel %vm805, %v806, %v689
      %v808 = vshrl.u32 %v807, 4
      %v809 = vand.u32 %v807, 15
      %v810 = vsub.s32 0, %v809
      %v811 = vsel %vm805, %v810, %v809
      %vm812 = vcmp.lt.s32.totalorder %v690, 0
      %v813 = vsub.s32 0, %v690
      %v814 = vsel %vm812, %v813, %v690
      %v815 = vshrl.u32 %v814, 4
      %v816 = vand.u32 %v814, 15
      %v817 = vsub.s32 0, %v816
      %v818 = vsel %vm812, %v817, %v816
      %vm819 = vcmp.lt.s32.totalorder %v691, 0
      %v820 = vsub.s32 0, %v691
      %v821 = vsel %vm819, %v820, %v691
      %v822 = vshrl.u32 %v821, 4
      %v823 = vand.u32 %v821, 15
      %v824 = vsub.s32 0, %v823
      %v825 = vsel %vm819, %v824, %v823
      %vm826 = vcmp.lt.s32.totalorder %v692, 0
      %v827 = vsub.s32 0, %v692
      %v828 = vsel %vm826, %v827, %v692
      %v829 = vshrl.u32 %v828, 4
      %v830 = vand.u32 %v828, 15
      %v831 = vsub.s32 0, %v830
      %v832 = vsel %vm826, %v831, %v830
      %vm833 = vcmp.lt.s32.totalorder %v693, 0
      %v834 = vsub.s32 0, %v693
      %v835 = vsel %vm833, %v834, %v693
      %v836 = vshrl.u32 %v835, 4
      %v837 = vand.u32 %v835, 15
      %v838 = vsub.s32 0, %v837
      %v839 = vsel %vm833, %v838, %v837
      %vm840 = vcmp.lt.s32.totalorder %v694, 0
      %v841 = vsub.s32 0, %v694
      %v842 = vsel %vm840, %v841, %v694
      %v843 = vshrl.u32 %v842, 4
      %v844 = vand.u32 %v842, 15
      %v845 = vsub.s32 0, %v844
      %v846 = vsel %vm840, %v845, %v844
      %vm847 = vcmp.lt.s32.totalorder %v695, 0
      %v848 = vsub.s32 0, %v695
      %v849 = vsel %vm847, %v848, %v695
      %v850 = vshrl.u32 %v849, 4
      %v851 = vand.u32 %v849, 15
      %v852 = vsub.s32 0, %v851
      %v853 = vsel %vm847, %v852, %v851
      %vm854 = vcmp.lt.s32.totalorder %v696, 0
      %v855 = vsub.s32 0, %v696
      %v856 = vsel %vm854, %v855, %v696
      %v857 = vshrl.u32 %v856, 4
      %v858 = vand.u32 %v856, 15
      %v859 = vsub.s32 0, %v858
      %v860 = vsel %vm854, %v859, %v858
      %vm861 = vcmp.lt.s32.totalorder %v697, 0
      %v862 = vsub.s32 0, %v697
      %v863 = vsel %vm861, %v862, %v697
      %v864 = vshrl.u32 %v863, 4
      %v865 = vand.u32 %v863, 15
      %v866 = vsub.s32 0, %v865
      %v867 = vsel %vm861, %v866, %v865
      %vm868 = vcmp.lt.s32.totalorder %v698, 0
      %v869 = vsub.s32 0, %v698
      %v870 = vsel %vm868, %v869, %v698
      %v871 = vshrl.u32 %v870, 4
      %v872 = vand.u32 %v870, 15
      %v873 = vsub.s32 0, %v872
      %v874 = vsel %vm868, %v873, %v872
      %vm875 = vcmp.lt.s32.totalorder %v699, 0
      %v876 = vsub.s32 0, %v699
      %v877 = vsel %vm875, %v876, %v699
      %v878 = vshrl.u32 %v877, 4
      %v879 = vand.u32 %v877, 15
      %v880 = vsub.s32 0, %v879
      %v881 = vsel %vm875, %v880, %v879
      %vm882 = vcmp.lt.s32.totalorder %v700, 0
      %v883 = vsub.s32 0, %v700
      %v884 = vsel %vm882, %v883, %v700
      %v885 = vshrl.u32 %v884, 4
      %v886 = vand.u32 %v884, 15
      %v887 = vsub.s32 0, %v886
      %v888 = vsel %vm882, %v887, %v886
      %vm889 = vcmp.lt.s32.totalorder %v701, 0
      %v890 = vsub.s32 0, %v701
      %v891 = vsel %vm889, %v890, %v701
      %v892 = vshrl.u32 %v891, 4
      %v893 = vand.u32 %v891, 15
      %v894 = vsub.s32 0, %v893
      %v895 = vsel %vm889, %v894, %v893
      %vm896 = vcmp.lt.s32.totalorder %v702, 0
      %v897 = vsub.s32 0, %v702
      %v898 = vsel %vm896, %v897, %v702
      %v899 = vshrl.u32 %v898, 4
      %v900 = vand.u32 %v898, 15
      %v901 = vsub.s32 0, %v900
      %v902 = vsel %vm896, %v901, %v900
      %vm903 = vcmp.lt.s32.totalorder %v703, 0
      %v904 = vsub.s32 0, %v703
      %v905 = vsel %vm903, %v904, %v703
      %v906 = vshrl.u32 %v905, 4
      %v907 = vand.u32 %v905, 15
      %v908 = vsub.s32 0, %v907
      %v909 = vsel %vm903, %v908, %v907
      %vm910 = vcmp.lt.s32.totalorder %v704, 0
      %v911 = vsub.s32 0, %v704
      %v912 = vsel %vm910, %v911, %v704
      %v913 = vshrl.u32 %v912, 4
      %v914 = vand.u32 %v912, 15
      %v915 = vsub.s32 0, %v914
      %v916 = vsel %vm910, %v915, %v914
      %vm917 = vcmp.lt.s32.totalorder %v705, 0
      %v918 = vsub.s32 0, %v705
      %v919 = vsel %vm917, %v918, %v705
      %v920 = vshrl.u32 %v919, 4
      %v921 = vand.u32 %v919, 15
      %v922 = vsub.s32 0, %v921
      %v923 = vsel %vm917, %v922, %v921
      %vm924 = vcmp.lt.s32.totalorder %v706, 0
      %v925 = vsub.s32 0, %v706
      %v926 = vsel %vm924, %v925, %v706
      %v927 = vshrl.u32 %v926, 4
      %v928 = vand.u32 %v926, 15
      %v929 = vsub.s32 0, %v928
      %v930 = vsel %vm924, %v929, %v928
      %vm931 = vcmp.ne.s32.totalorder %v713, 0
      %vm932 = vcmp.ne.s32.totalorder %v720, 0
      %vm933 = vcmp.ne.s32.totalorder %v727, 0
      %vm934 = vcmp.ne.s32.totalorder %v734, 0
      %vm935 = vcmp.ne.s32.totalorder %v741, 0
      %vm936 = vcmp.ne.s32.totalorder %v748, 0
      %vm937 = vcmp.ne.s32.totalorder %v755, 0
      %vm938 = vcmp.ne.s32.totalorder %v762, 0
      %vm939 = vcmp.ne.s32.totalorder %v769, 0
      %vm940 = vcmp.ne.s32.totalorder %v776, 0
      %vm941 = vcmp.ne.s32.totalorder %v783, 0
      %vm942 = vcmp.ne.s32.totalorder %v790, 0
      %vm943 = vcmp.ne.s32.totalorder %v797, 0
      %vm944 = vcmp.ne.s32.totalorder %v804, 0
      %vm945 = vcmp.ne.s32.totalorder %v811, 0
      %vm946 = vcmp.ne.s32.totalorder %v818, 0
      %vm947 = vcmp.ne.s32.totalorder %v825, 0
      %vm948 = vcmp.ne.s32.totalorder %v832, 0
      %vm949 = vcmp.ne.s32.totalorder %v839, 0
      %vm950 = vcmp.ne.s32.totalorder %v846, 0
      %vm951 = vcmp.ne.s32.totalorder %v853, 0
      %vm952 = vcmp.ne.s32.totalorder %v860, 0
      %vm953 = vcmp.ne.s32.totalorder %v867, 0
      %vm954 = vcmp.ne.s32.totalorder %v874, 0
      %vm955 = vcmp.ne.s32.totalorder %v881, 0
      %vm956 = vcmp.ne.s32.totalorder %v888, 0
      %vm957 = vcmp.ne.s32.totalorder %v895, 0
      %vm958 = vcmp.ne.s32.totalorder %v902, 0
      %vm959 = vcmp.ne.s32.totalorder %v909, 0
      %vm960 = vcmp.ne.s32.totalorder %v916, 0
      %vm961 = vcmp.ne.s32.totalorder %v923, 0
      %vm962 = vcmp.ne.s32.totalorder %v930, 0
      %vm963 = vcmp.lt.s32.totalorder %v713, 0
      %vm964 = vcmp.lt.s32.totalorder %v720, 0
      %vm965 = vcmp.lt.s32.totalorder %v727, 0
      %vm966 = vcmp.lt.s32.totalorder %v734, 0
      %vm967 = vcmp.lt.s32.totalorder %v741, 0
      %vm968 = vcmp.lt.s32.totalorder %v748, 0
      %vm969 = vcmp.lt.s32.totalorder %v755, 0
      %vm970 = vcmp.lt.s32.totalorder %v762, 0
      %vm971 = vcmp.lt.s32.totalorder %v769, 0
      %vm972 = vcmp.lt.s32.totalorder %v776, 0
      %vm973 = vcmp.lt.s32.totalorder %v783, 0
      %vm974 = vcmp.lt.s32.totalorder %v790, 0
      %vm975 = vcmp.lt.s32.totalorder %v797, 0
      %vm976 = vcmp.lt.s32.totalorder %v804, 0
      %vm977 = vcmp.lt.s32.totalorder %v811, 0
      %vm978 = vcmp.lt.s32.totalorder %v818, 0
      %vm979 = vcmp.lt.s32.totalorder %v825, 0
      %vm980 = vcmp.lt.s32.totalorder %v832, 0
      %vm981 = vcmp.lt.s32.totalorder %v839, 0
      %vm982 = vcmp.lt.s32.totalorder %v846, 0
      %vm983 = vcmp.lt.s32.totalorder %v853, 0
      %vm984 = vcmp.lt.s32.totalorder %v860, 0
      %vm985 = vcmp.lt.s32.totalorder %v867, 0
      %vm986 = vcmp.lt.s32.totalorder %v874, 0
      %vm987 = vcmp.lt.s32.totalorder %v881, 0
      %vm988 = vcmp.lt.s32.totalorder %v888, 0
      %vm989 = vcmp.lt.s32.totalorder %v895, 0
      %vm990 = vcmp.lt.s32.totalorder %v902, 0
      %vm991 = vcmp.lt.s32.totalorder %v909, 0
      %vm992 = vcmp.lt.s32.totalorder %v916, 0
      %vm993 = vcmp.lt.s32.totalorder %v923, 0
      %vm994 = vcmp.lt.s32.totalorder %v930, 0
      %vm995 = vmand %vm963, %vm931
      %vm996 = vmand %vm964, %vm932
      %vm997 = vmand %vm965, %vm933
      %vm998 = vmand %vm966, %vm934
      %vm999 = vmand %vm967, %vm935
      %vm1000 = vmand %vm968, %vm936
      %vm1001 = vmand %vm969, %vm937
      %vm1002 = vmand %vm970, %vm938
      %vm1003 = vmand %vm971, %vm939
      %vm1004 = vmand %vm972, %vm940
      %vm1005 = vmand %vm973, %vm941
      %vm1006 = vmand %vm974, %vm942
      %vm1007 = vmand %vm975, %vm943
      %vm1008 = vmand %vm976, %vm944
      %vm1009 = vmand %vm977, %vm945
      %vm1010 = vmand %vm978, %vm946
      %vm1011 = vmand %vm979, %vm947
      %vm1012 = vmand %vm980, %vm948
      %vm1013 = vmand %vm981, %vm949
      %vm1014 = vmand %vm982, %vm950
      %vm1015 = vmand %vm983, %vm951
      %vm1016 = vmand %vm984, %vm952
      %vm1017 = vmand %vm985, %vm953
      %vm1018 = vmand %vm986, %vm954
      %vm1019 = vmand %vm987, %vm955
      %vm1020 = vmand %vm988, %vm956
      %vm1021 = vmand %vm989, %vm957
      %vm1022 = vmand %vm990, %vm958
      %vm1023 = vmand %vm991, %vm959
      %vm1024 = vmand %vm992, %vm960
      %vm1025 = vmand %vm993, %vm961
      %vm1026 = vmand %vm994, %vm962
      %v1027 = vadd.s32 %v713, 16
      %v1028 = vadd.s32 %v720, 16
      %v1029 = vadd.s32 %v727, 16
      %v1030 = vadd.s32 %v734, 16
      %v1031 = vadd.s32 %v741, 16
      %v1032 = vadd.s32 %v748, 16
      %v1033 = vadd.s32 %v755, 16
      %v1034 = vadd.s32 %v762, 16
      %v1035 = vadd.s32 %v769, 16
      %v1036 = vadd.s32 %v776, 16
      %v1037 = vadd.s32 %v783, 16
      %v1038 = vadd.s32 %v790, 16
      %v1039 = vadd.s32 %v797, 16
      %v1040 = vadd.s32 %v804, 16
      %v1041 = vadd.s32 %v811, 16
      %v1042 = vadd.s32 %v818, 16
      %v1043 = vadd.s32 %v825, 16
      %v1044 = vadd.s32 %v832, 16
      %v1045 = vadd.s32 %v839, 16
      %v1046 = vadd.s32 %v846, 16
      %v1047 = vadd.s32 %v853, 16
      %v1048 = vadd.s32 %v860, 16
      %v1049 = vadd.s32 %v867, 16
      %v1050 = vadd.s32 %v874, 16
      %v1051 = vadd.s32 %v881, 16
      %v1052 = vadd.s32 %v888, 16
      %v1053 = vadd.s32 %v895, 16
      %v1054 = vadd.s32 %v902, 16
      %v1055 = vadd.s32 %v909, 16
      %v1056 = vadd.s32 %v916, 16
      %v1057 = vadd.s32 %v923, 16
      %v1058 = vadd.s32 %v930, 16
      %v1059 = vsel %vm995, %v1027, %v713
      %v1060 = vsel %vm996, %v1028, %v720
      %v1061 = vsel %vm997, %v1029, %v727
      %v1062 = vsel %vm998, %v1030, %v734
      %v1063 = vsel %vm999, %v1031, %v741
      %v1064 = vsel %vm1000, %v1032, %v748
      %v1065 = vsel %vm1001, %v1033, %v755
      %v1066 = vsel %vm1002, %v1034, %v762
      %v1067 = vsel %vm1003, %v1035, %v769
      %v1068 = vsel %vm1004, %v1036, %v776
      %v1069 = vsel %vm1005, %v1037, %v783
      %v1070 = vsel %vm1006, %v1038, %v790
      %v1071 = vsel %vm1007, %v1039, %v797
      %v1072 = vsel %vm1008, %v1040, %v804
      %v1073 = vsel %vm1009, %v1041, %v811
      %v1074 = vsel %vm1010, %v1042, %v818
      %v1075 = vsel %vm1011, %v1043, %v825
      %v1076 = vsel %vm1012, %v1044, %v832
      %v1077 = vsel %vm1013, %v1045, %v839
      %v1078 = vsel %vm1014, %v1046, %v846
      %v1079 = vsel %vm1015, %v1047, %v853
      %v1080 = vsel %vm1016, %v1048, %v860
      %v1081 = vsel %vm1017, %v1049, %v867
      %v1082 = vsel %vm1018, %v1050, %v874
      %v1083 = vsel %vm1019, %v1051, %v881
      %v1084 = vsel %vm1020, %v1052, %v888
      %v1085 = vsel %vm1021, %v1053, %v895
      %v1086 = vsel %vm1022, %v1054, %v902
      %v1087 = vsel %vm1023, %v1055, %v909
      %v1088 = vsel %vm1024, %v1056, %v916
      %v1089 = vsel %vm1025, %v1057, %v923
      %v1090 = vsel %vm1026, %v1058, %v930
      %vm1121 = vcmask 1040384
      %v1122 = vrot.slane %v642, 7
      %v1123 = vrot.slane %v643, 7
      %v1124 = vsel %vm1121, %v1122, %v1123
      %v1125 = vrot.slane %v644, 7
      %v1126 = vsel %vm1121, %v1123, %v1125
      %v1127 = vrot.slane %v645, 7
      %v1128 = vsel %vm1121, %v1125, %v1127
      %v1129 = vrot.slane %v646, 7
      %v1130 = vsel %vm1121, %v1127, %v1129
      %v1131 = vrot.slane %v647, 7
      %v1132 = vsel %vm1121, %v1129, %v1131
      %v1133 = vrot.slane %v648, 7
      %v1134 = vsel %vm1121, %v1131, %v1133
      %v1135 = vrot.slane %v649, 7
      %v1136 = vsel %vm1121, %v1133, %v1135
      %v1137 = vrot.slane %v650, 7
      %v1138 = vsel %vm1121, %v1135, %v1137
      %v1139 = vrot.slane %v651, 7
      %v1140 = vsel %vm1121, %v1137, %v1139
      %v1141 = vrot.slane %v652, 7
      %v1142 = vsel %vm1121, %v1139, %v1141
      %v1143 = vrot.slane %v653, 7
      %v1144 = vsel %vm1121, %v1141, %v1143
      %v1145 = vrot.slane %v654, 7
      %v1146 = vsel %vm1121, %v1143, %v1145
      %v1147 = vrot.slane %v655, 7
      %v1148 = vsel %vm1121, %v1145, %v1147
      %v1149 = vrot.slane %v656, 7
      %v1150 = vsel %vm1121, %v1147, %v1149
      %v1151 = vrot.slane %v657, 7
      %v1152 = vsel %vm1121, %v1149, %v1151
      %v1153 = vrot.slane %v658, 7
      %v1154 = vsel %vm1121, %v1151, %v1153
      %v1155 = vrot.slane %v659, 7
      %v1156 = vsel %vm1121, %v1153, %v1155
      %v1157 = vrot.slane %v660, 7
      %v1158 = vsel %vm1121, %v1155, %v1157
      %v1159 = vrot.slane %v661, 7
      %v1160 = vsel %vm1121, %v1157, %v1159
      %v1161 = vrot.slane %v662, 7
      %v1162 = vsel %vm1121, %v1159, %v1161
      %v1163 = vrot.slane %v663, 7
      %v1164 = vsel %vm1121, %v1161, %v1163
      %v1165 = vrot.slane %v664, 7
      %v1166 = vsel %vm1121, %v1163, %v1165
      %v1167 = vrot.slane %v665, 7
      %v1168 = vsel %vm1121, %v1165, %v1167
      %v1169 = vrot.slane %v666, 7
      %v1170 = vsel %vm1121, %v1167, %v1169
      %v1171 = vrot.slane %v667, 7
      %v1172 = vsel %vm1121, %v1169, %v1171
      %v1173 = vrot.slane %v668, 7
      %v1174 = vsel %vm1121, %v1171, %v1173
      %v1175 = vrot.slane %v669, 7
      %v1176 = vsel %vm1121, %v1173, %v1175
      %v1177 = vrot.slane %v670, 7
      %v1178 = vsel %vm1121, %v1175, %v1177
      %v1179 = vrot.slane %v671, 7
      %v1180 = vsel %vm1121, %v1177, %v1179
      %v1211 = vsel %vm1121, 0.0, %v1122
      %vm1212 = vcmp.eq.s32.totalorder %v1059, 0
      %vm1213 = vcmp.eq.s32.totalorder %v1060, 0
      %vm1214 = vcmp.eq.s32.totalorder %v1061, 0
      %vm1215 = vcmp.eq.s32.totalorder %v1062, 0
      %vm1216 = vcmp.eq.s32.totalorder %v1063, 0
      %vm1217 = vcmp.eq.s32.totalorder %v1064, 0
      %vm1218 = vcmp.eq.s32.totalorder %v1065, 0
      %vm1219 = vcmp.eq.s32.totalorder %v1066, 0
      %vm1220 = vcmp.eq.s32.totalorder %v1067, 0
      %vm1221 = vcmp.eq.s32.totalorder %v1068, 0
      %vm1222 = vcmp.eq.s32.totalorder %v1069, 0
      %vm1223 = vcmp.eq.s32.totalorder %v1070, 0
      %vm1224 = vcmp.eq.s32.totalorder %v1071, 0
      %vm1225 = vcmp.eq.s32.totalorder %v1072, 0
      %vm1226 = vcmp.eq.s32.totalorder %v1073, 0
      %vm1227 = vcmp.eq.s32.totalorder %v1074, 0
      %vm1228 = vcmp.eq.s32.totalorder %v1075, 0
      %vm1229 = vcmp.eq.s32.totalorder %v1076, 0
      %vm1230 = vcmp.eq.s32.totalorder %v1077, 0
      %vm1231 = vcmp.eq.s32.totalorder %v1078, 0
      %vm1232 = vcmp.eq.s32.totalorder %v1079, 0
      %vm1233 = vcmp.eq.s32.totalorder %v1080, 0
      %vm1234 = vcmp.eq.s32.totalorder %v1081, 0
      %vm1235 = vcmp.eq.s32.totalorder %v1082, 0
      %vm1236 = vcmp.eq.s32.totalorder %v1083, 0
      %vm1237 = vcmp.eq.s32.totalorder %v1084, 0
      %vm1238 = vcmp.eq.s32.totalorder %v1085, 0
      %vm1239 = vcmp.eq.s32.totalorder %v1086, 0
      %vm1240 = vcmp.eq.s32.totalorder %v1087, 0
      %vm1241 = vcmp.eq.s32.totalorder %v1088, 0
      %vm1242 = vcmp.eq.s32.totalorder %v1089, 0
      %vm1243 = vcmp.eq.s32.totalorder %v1090, 0
      %v1244 = vsel %vm1212, 1, 0
      %v1245 = vsel %vm1213, 1, 0
      %v1246 = vsel %vm1214, 1, 0
      %v1247 = vsel %vm1215, 1, 0
      %v1248 = vsel %vm1216, 1, 0
      %v1249 = vsel %vm1217, 1, 0
      %v1250 = vsel %vm1218, 1, 0
      %v1251 = vsel %vm1219, 1, 0
      %v1252 = vsel %vm1220, 1, 0
      %v1253 = vsel %vm1221, 1, 0
      %v1254 = vsel %vm1222, 1, 0
      %v1255 = vsel %vm1223, 1, 0
      %v1256 = vsel %vm1224, 1, 0
      %v1257 = vsel %vm1225, 1, 0
      %v1258 = vsel %vm1226, 1, 0
      %v1259 = vsel %vm1227, 1, 0
      %v1260 = vsel %vm1228, 1, 0
      %v1261 = vsel %vm1229, 1, 0
      %v1262 = vsel %vm1230, 1, 0
      %v1263 = vsel %vm1231, 1, 0
      %v1264 = vsel %vm1232, 1, 0
      %v1265 = vsel %vm1233, 1, 0
      %v1266 = vsel %vm1234, 1, 0
      %v1267 = vsel %vm1235, 1, 0
      %v1268 = vsel %vm1236, 1, 0
      %v1269 = vsel %vm1237, 1, 0
      %v1270 = vsel %vm1238, 1, 0
      %v1271 = vsel %vm1239, 1, 0
      %v1272 = vsel %vm1240, 1, 0
      %v1273 = vsel %vm1241, 1, 0
      %v1274 = vsel %vm1242, 1, 0
      %v1275 = vsel %vm1243, 1, 0
      %vm1276 = vcmp.eq.s32.totalorder %v1244, 1
      %vm1277 = vcmp.eq.s32.totalorder %v1245, 1
      %vm1278 = vcmp.eq.s32.totalorder %v1246, 1
      %vm1279 = vcmp.eq.s32.totalorder %v1247, 1
      %vm1280 = vcmp.eq.s32.totalorder %v1248, 1
      %vm1281 = vcmp.eq.s32.totalorder %v1249, 1
      %vm1282 = vcmp.eq.s32.totalorder %v1250, 1
      %vm1283 = vcmp.eq.s32.totalorder %v1251, 1
      %vm1284 = vcmp.eq.s32.totalorder %v1252, 1
      %vm1285 = vcmp.eq.s32.totalorder %v1253, 1
      %vm1286 = vcmp.eq.s32.totalorder %v1254, 1
      %vm1287 = vcmp.eq.s32.totalorder %v1255, 1
      %vm1288 = vcmp.eq.s32.totalorder %v1256, 1
      %vm1289 = vcmp.eq.s32.totalorder %v1257, 1
      %vm1290 = vcmp.eq.s32.totalorder %v1258, 1
      %vm1291 = vcmp.eq.s32.totalorder %v1259, 1
      %vm1292 = vcmp.eq.s32.totalorder %v1260, 1
      %vm1293 = vcmp.eq.s32.totalorder %v1261, 1
      %vm1294 = vcmp.eq.s32.totalorder %v1262, 1
      %vm1295 = vcmp.eq.s32.totalorder %v1263, 1
      %vm1296 = vcmp.eq.s32.totalorder %v1264, 1
      %vm1297 = vcmp.eq.s32.totalorder %v1265, 1
      %vm1298 = vcmp.eq.s32.totalorder %v1266, 1
      %vm1299 = vcmp.eq.s32.totalorder %v1267, 1
      %vm1300 = vcmp.eq.s32.totalorder %v1268, 1
      %vm1301 = vcmp.eq.s32.totalorder %v1269, 1
      %vm1302 = vcmp.eq.s32.totalorder %v1270, 1
      %vm1303 = vcmp.eq.s32.totalorder %v1271, 1
      %vm1304 = vcmp.eq.s32.totalorder %v1272, 1
      %vm1305 = vcmp.eq.s32.totalorder %v1273, 1
      %vm1306 = vcmp.eq.s32.totalorder %v1274, 1
      %vm1307 = vcmp.eq.s32.totalorder %v1275, 1
      %v1308 = vsel %vm1278, 0.0, %v1211
      %v1309 = vsel %vm1279, 0.0, %v1124
      %v1310 = vsel %vm1280, 0.0, %v1126
      %v1311 = vsel %vm1281, 0.0, %v1128
      %v1312 = vsel %vm1282, 0.0, %v1130
      %v1313 = vsel %vm1283, 0.0, %v1132
      %v1314 = vsel %vm1284, 0.0, %v1134
      %v1315 = vsel %vm1285, 0.0, %v1136
      %v1316 = vsel %vm1286, 0.0, %v1138
      %v1317 = vsel %vm1287, 0.0, %v1140
      %v1318 = vsel %vm1288, 0.0, %v1142
      %v1319 = vsel %vm1289, 0.0, %v1144
      %v1320 = vsel %vm1290, 0.0, %v1146
      %v1321 = vsel %vm1291, 0.0, %v1148
      %v1322 = vsel %vm1292, 0.0, %v1150
      %v1323 = vsel %vm1293, 0.0, %v1152
      %v1324 = vsel %vm1294, 0.0, %v1154
      %v1325 = vsel %vm1295, 0.0, %v1156
      %v1326 = vsel %vm1296, 0.0, %v1158
      %v1327 = vsel %vm1297, 0.0, %v1160
      %v1328 = vsel %vm1298, 0.0, %v1162
      %v1329 = vsel %vm1299, 0.0, %v1164
      %v1330 = vsel %vm1300, 0.0, %v1166
      %v1331 = vsel %vm1301, 0.0, %v1168
      %v1332 = vsel %vm1302, 0.0, %v1170
      %v1333 = vsel %vm1303, 0.0, %v1172
      %v1334 = vsel %vm1304, 0.0, %v1174
      %v1335 = vsel %vm1305, 0.0, %v1176
      %v1336 = vsel %vm1306, 0.0, %v1178
      %v1337 = vsel %vm1307, 0.0, %v1180
      %v1338 = vld [vmem:[%s3] sm:$0xff]
      %s1339 = scalar_lea.vmem %s3, 8
      %v1340 = vld [vmem:[%s1339] sm:$0xff]
      %vm1341 = vcmask 64512
      %v1343 = vsel %vm1341, 0.0, 0
      %v1345 = vsel %vm1341, %v642, 0
      %v1347 = vsel %vm1341, %v643, 0
      %v1349 = vsel %vm1341, %v644, 0
      %v1351 = vsel %vm1341, %v645, 0
      %v1353 = vsel %vm1341, %v646, 0
      %v1355 = vsel %vm1341, %v647, 0
      %v1357 = vsel %vm1341, %v648, 0
      %v1359 = vsel %vm1341, %v649, 0
      %v1361 = vsel %vm1341, %v650, 0
      %v1363 = vsel %vm1341, %v651, 0
      %v1365 = vsel %vm1341, %v652, 0
      %v1367 = vsel %vm1341, %v653, 0
      %v1369 = vsel %vm1341, %v654, 0
      %v1371 = vsel %vm1341, %v655, 0
      %v1373 = vsel %vm1341, %v656, 0
      %v1375 = vsel %vm1341, %v657, 0
      %v1377 = vsel %vm1341, %v658, 0
      %v1379 = vsel %vm1341, %v659, 0
      %v1381 = vsel %vm1341, %v660, 0
      %v1383 = vsel %vm1341, %v661, 0
      %v1385 = vsel %vm1341, %v662, 0
      %v1387 = vsel %vm1341, %v663, 0
      %v1389 = vsel %vm1341, %v664, 0
      %v1391 = vsel %vm1341, %v665, 0
      %v1393 = vsel %vm1341, %v666, 0
      %v1395 = vsel %vm1341, %v667, 0
      %v1397 = vsel %vm1341, %v668, 0
      %v1399 = vsel %vm1341, %v669, 0
      %v1401 = vsel %vm1341, %v670, 0
      %v1403 = vsel %vm1341, %v671, 0
      %1405 = vmatprep.subr.mxu0 0.0
      %1406 = vmatpush1.msra.mxu0 0.0
      %1407 = vmatprep.subr.mxu0 0.0
      %1408 = vmatpush1.msra.mxu0 0.0
      %1409 = vmatprep.subr.mxu0 0.0
      %1410 = vmatpush1.msra.mxu0 0.0
      %1411 = vmatprep.subr.mxu0 0.0
      %1412 = vmatpush1.msra.mxu0 0.0
      %1413 = vmatprep.subr.mxu0 0.0
      %1414 = vmatpush1.msra.mxu0 0.0
      %1415 = vmatprep.subr.mxu0 0.0
      %1416 = vmatpush1.msra.mxu0 0.0
      %1417 = vmatprep.subr.mxu0 0.0
      %1418 = vmatpush1.msra.mxu0 0.0
      %1419 = vmatprep.subr.mxu0 0.0
      %1420 = vmatpush1.msra.mxu0 0.0
      %1421 = vmatprep.subr.mxu0 0.0
      %1422 = vmatpush1.msra.mxu0 0.0
      %1423 = vmatprep.subr.mxu0 0.0
      %1424 = vmatpush1.msra.mxu0 0.0
      %1425 = vmatprep.subr.mxu0 0.0
      %1426 = vmatpush1.msra.mxu0 0.0
      %1427 = vmatprep.subr.mxu0 0.0
      %1428 = vmatpush1.msra.mxu0 0.0
      %1429 = vmatprep.subr.mxu0 0.0
      %1430 = vmatpush1.msra.mxu0 0.0
      %1431 = vmatprep.subr.mxu0 0.0
      %1432 = vmatpush1.msra.mxu0 0.0
      %1433 = vmatprep.subr.mxu0 0.0
      %1434 = vmatpush1.msra.mxu0 0.0
      %1435 = vmatprep.subr.mxu0 0.0
      %1436 = vmatpush1.msra.mxu0 %v1340
      %1437 = vmatprep.subr.mxu0 0.0
      %1438 = vmatpush2.msra.mxu0 0.0
      %1439 = vmatprep.subr.mxu0 0.0
      %1440 = vmatpush2.msra.mxu0 0.0
      %1441 = vmatprep.subr.mxu0 0.0
      %1442 = vmatpush2.msra.mxu0 0.0
      %1443 = vmatprep.subr.mxu0 0.0
      %1444 = vmatpush2.msra.mxu0 0.0
      %1445 = vmatprep.subr.mxu0 0.0
      %1446 = vmatpush2.msra.mxu0 0.0
      %1447 = vmatprep.subr.mxu0 0.0
      %1448 = vmatpush2.msra.mxu0 0.0
      %1449 = vmatprep.subr.mxu0 0.0
      %1450 = vmatpush2.msra.mxu0 0.0
      %1451 = vmatprep.subr.mxu0 0.0
      %1452 = vmatpush2.msra.mxu0 0.0
      %1453 = vmatprep.subr.mxu0 0.0
      %1454 = vmatpush2.msra.mxu0 0.0
      %1455 = vmatprep.subr.mxu0 0.0
      %1456 = vmatpush2.msra.mxu0 0.0
      %1457 = vmatprep.subr.mxu0 0.0
      %1458 = vmatpush2.msra.mxu0 0.0
      %1459 = vmatprep.subr.mxu0 0.0
      %1460 = vmatpush2.msra.mxu0 0.0
      %1461 = vmatprep.subr.mxu0 0.0
      %1462 = vmatpush2.msra.mxu0 0.0
      %1463 = vmatprep.subr.mxu0 0.0
      %1464 = vmatpush2.msra.mxu0 0.0
      %1465 = vmatprep.subr.mxu0 0.0
      %1466 = vmatpush2.msra.mxu0 0.0
      %1467 = vmatprep.subr.mxu0 0.0
      %1468 = vmatpush2.msra.mxu0 0.0
      %1469 = vmatprep.mubr.f32.mxu0 0.0
      %1470 = vmatmul.mubr.f32.gmra.mxu0 %v1343
      %v1471 = vpop.f32.mrf.mxu0
      %v1472 = vadd.f32 0.0, %v1471
      %v1473 = vpop.f32.mrf.mxu0
      %1474 = vmatprep.mubr.f32.mxu0 0.0
      %1475 = vmatmul.mubr.f32.gmra.mxu0 %v1343
      %v1476 = vpop.f32.mrf.mxu0
      %v1477 = vadd.f32 0.0, %v1476
      %v1478 = vpop.f32.mrf.mxu0
      %1479 = vmatprep.mubr.f32.mxu0 0.0
      %1480 = vmatmul.mubr.f32.gmra.mxu0 %v1345
      %v1481 = vpop.f32.mrf.mxu0
      %v1482 = vadd.f32 0.0, %v1481
      %v1483 = vpop.f32.mrf.mxu0
      %1484 = vmatprep.mubr.f32.mxu0 0.0
      %1485 = vmatmul.mubr.f32.gmra.mxu0 %v1347
      %v1486 = vpop.f32.mrf.mxu0
      %v1487 = vadd.f32 0.0, %v1486
      %v1488 = vpop.f32.mrf.mxu0
      %1489 = vmatprep.mubr.f32.mxu0 0.0
      %1490 = vmatmul.mubr.f32.gmra.mxu0 %v1349
      %v1491 = vpop.f32.mrf.mxu0
      %v1492 = vadd.f32 0.0, %v1491
      %v1493 = vpop.f32.mrf.mxu0
      %1494 = vmatprep.mubr.f32.mxu0 0.0
      %1495 = vmatmul.mubr.f32.gmra.mxu0 %v1351
      %v1496 = vpop.f32.mrf.mxu0
      %v1497 = vadd.f32 0.0, %v1496
      %v1498 = vpop.f32.mrf.mxu0
      %1499 = vmatprep.mubr.f32.mxu0 0.0
      %1500 = vmatmul.mubr.f32.gmra.mxu0 %v1353
      %v1501 = vpop.f32.mrf.mxu0
      %v1502 = vadd.f32 0.0, %v1501
      %v1503 = vpop.f32.mrf.mxu0
      %1504 = vmatprep.mubr.f32.mxu0 0.0
      %1505 = vmatmul.mubr.f32.gmra.mxu0 %v1355
      %v1506 = vpop.f32.mrf.mxu0
      %v1507 = vadd.f32 0.0, %v1506
      %v1508 = vpop.f32.mrf.mxu0
      %1509 = vmatprep.mubr.f32.mxu0 0.0
      %1510 = vmatmul.mubr.f32.gmra.mxu0 %v1357
      %v1511 = vpop.f32.mrf.mxu0
      %v1512 = vadd.f32 0.0, %v1511
      %v1513 = vpop.f32.mrf.mxu0
      %1514 = vmatprep.mubr.f32.mxu0 0.0
      %1515 = vmatmul.mubr.f32.gmra.mxu0 %v1359
      %v1516 = vpop.f32.mrf.mxu0
      %v1517 = vadd.f32 0.0, %v1516
      %v1518 = vpop.f32.mrf.mxu0
      %1519 = vmatprep.mubr.f32.mxu0 0.0
      %1520 = vmatmul.mubr.f32.gmra.mxu0 %v1361
      %v1521 = vpop.f32.mrf.mxu0
      %v1522 = vadd.f32 0.0, %v1521
      %v1523 = vpop.f32.mrf.mxu0
      %1524 = vmatprep.mubr.f32.mxu0 0.0
      %1525 = vmatmul.mubr.f32.gmra.mxu0 %v1363
      %v1526 = vpop.f32.mrf.mxu0
      %v1527 = vadd.f32 0.0, %v1526
      %v1528 = vpop.f32.mrf.mxu0
      %1529 = vmatprep.mubr.f32.mxu0 0.0
      %1530 = vmatmul.mubr.f32.gmra.mxu0 %v1365
      %v1531 = vpop.f32.mrf.mxu0
      %v1532 = vadd.f32 0.0, %v1531
      %v1533 = vpop.f32.mrf.mxu0
      %1534 = vmatprep.mubr.f32.mxu0 0.0
      %1535 = vmatmul.mubr.f32.gmra.mxu0 %v1367
      %v1536 = vpop.f32.mrf.mxu0
      %v1537 = vadd.f32 0.0, %v1536
      %v1538 = vpop.f32.mrf.mxu0
      %1539 = vmatprep.mubr.f32.mxu0 0.0
      %1540 = vmatmul.mubr.f32.gmra.mxu0 %v1369
      %v1541 = vpop.f32.mrf.mxu0
      %v1542 = vadd.f32 0.0, %v1541
      %v1543 = vpop.f32.mrf.mxu0
      %1544 = vmatprep.mubr.f32.mxu0 0.0
      %1545 = vmatmul.mubr.f32.gmra.mxu0 %v1371
      %v1546 = vpop.f32.mrf.mxu0
      %v1547 = vadd.f32 0.0, %v1546
      %v1548 = vpop.f32.mrf.mxu0
      %1549 = vmatprep.mubr.f32.mxu0 0.0
      %1550 = vmatmul.mubr.f32.gmra.mxu0 %v1373
      %v1551 = vpop.f32.mrf.mxu0
      %v1552 = vadd.f32 0.0, %v1551
      %v1553 = vpop.f32.mrf.mxu0
      %1554 = vmatprep.mubr.f32.mxu0 0.0
      %1555 = vmatmul.mubr.f32.gmra.mxu0 %v1375
      %v1556 = vpop.f32.mrf.mxu0
      %v1557 = vadd.f32 0.0, %v1556
      %v1558 = vpop.f32.mrf.mxu0
      %1559 = vmatprep.mubr.f32.mxu0 0.0
      %1560 = vmatmul.mubr.f32.gmra.mxu0 %v1377
      %v1561 = vpop.f32.mrf.mxu0
      %v1562 = vadd.f32 0.0, %v1561
      %v1563 = vpop.f32.mrf.mxu0
      %1564 = vmatprep.mubr.f32.mxu0 0.0
      %1565 = vmatmul.mubr.f32.gmra.mxu0 %v1379
      %v1566 = vpop.f32.mrf.mxu0
      %v1567 = vadd.f32 0.0, %v1566
      %v1568 = vpop.f32.mrf.mxu0
      %1569 = vmatprep.mubr.f32.mxu0 0.0
      %1570 = vmatmul.mubr.f32.gmra.mxu0 %v1381
      %v1571 = vpop.f32.mrf.mxu0
      %v1572 = vadd.f32 0.0, %v1571
      %v1573 = vpop.f32.mrf.mxu0
      %1574 = vmatprep.mubr.f32.mxu0 0.0
      %1575 = vmatmul.mubr.f32.gmra.mxu0 %v1383
      %v1576 = vpop.f32.mrf.mxu0
      %v1577 = vadd.f32 0.0, %v1576
      %v1578 = vpop.f32.mrf.mxu0
      %1579 = vmatprep.mubr.f32.mxu0 0.0
      %1580 = vmatmul.mubr.f32.gmra.mxu0 %v1385
      %v1581 = vpop.f32.mrf.mxu0
      %v1582 = vadd.f32 0.0, %v1581
      %v1583 = vpop.f32.mrf.mxu0
      %1584 = vmatprep.mubr.f32.mxu0 0.0
      %1585 = vmatmul.mubr.f32.gmra.mxu0 %v1387
      %v1586 = vpop.f32.mrf.mxu0
      %v1587 = vadd.f32 0.0, %v1586
      %v1588 = vpop.f32.mrf.mxu0
      %1589 = vmatprep.mubr.f32.mxu0 0.0
      %1590 = vmatmul.mubr.f32.gmra.mxu0 %v1389
      %v1591 = vpop.f32.mrf.mxu0
      %v1592 = vadd.f32 0.0, %v1591
      %v1593 = vpop.f32.mrf.mxu0
      %1594 = vmatprep.mubr.f32.mxu0 0.0
      %1595 = vmatmul.mubr.f32.gmra.mxu0 %v1391
      %v1596 = vpop.f32.mrf.mxu0
      %v1597 = vadd.f32 0.0, %v1596
      %v1598 = vpop.f32.mrf.mxu0
      %1599 = vmatprep.mubr.f32.mxu0 0.0
      %1600 = vmatmul.mubr.f32.gmra.mxu0 %v1393
      %v1601 = vpop.f32.mrf.mxu0
      %v1602 = vadd.f32 0.0, %v1601
      %v1603 = vpop.f32.mrf.mxu0
      %1604 = vmatprep.mubr.f32.mxu0 0.0
      %1605 = vmatmul.mubr.f32.gmra.mxu0 %v1395
      %v1606 = vpop.f32.mrf.mxu0
      %v1607 = vadd.f32 0.0, %v1606
      %v1608 = vpop.f32.mrf.mxu0
      %1609 = vmatprep.mubr.f32.mxu0 0.0
      %1610 = vmatmul.mubr.f32.gmra.mxu0 %v1397
      %v1611 = vpop.f32.mrf.mxu0
      %v1612 = vadd.f32 0.0, %v1611
      %v1613 = vpop.f32.mrf.mxu0
      %1614 = vmatprep.mubr.f32.mxu0 0.0
      %1615 = vmatmul.mubr.f32.gmra.mxu0 %v1399
      %v1616 = vpop.f32.mrf.mxu0
      %v1617 = vadd.f32 0.0, %v1616
      %v1618 = vpop.f32.mrf.mxu0
      %1619 = vmatprep.mubr.f32.mxu0 0.0
      %1620 = vmatmul.mubr.f32.gmra.mxu0 %v1401
      %v1621 = vpop.f32.mrf.mxu0
      %v1622 = vadd.f32 0.0, %v1621
      %v1623 = vpop.f32.mrf.mxu0
      %1624 = vmatprep.mubr.f32.mxu0 0.0
      %1625 = vmatmul.mubr.f32.gmra.mxu0 %v1403
      %v1626 = vpop.f32.mrf.mxu0
      %v1627 = vadd.f32 0.0, %v1626
      %v1628 = vpop.f32.mrf.mxu0
      %1629 = vdwg.mxu0
      %v1631 = vsel %vm1341, %v1308, 0
      %v1634 = vsel %vm1341, %v1309, 0
      %v1637 = vsel %vm1341, %v1310, 0
      %v1640 = vsel %vm1341, %v1311, 0
      %v1643 = vsel %vm1341, %v1312, 0
      %v1646 = vsel %vm1341, %v1313, 0
      %v1649 = vsel %vm1341, %v1314, 0
      %v1652 = vsel %vm1341, %v1315, 0
      %v1655 = vsel %vm1341, %v1316, 0
      %v1658 = vsel %vm1341, %v1317, 0
      %v1661 = vsel %vm1341, %v1318, 0
      %v1664 = vsel %vm1341, %v1319, 0
      %v1667 = vsel %vm1341, %v1320, 0
      %v1670 = vsel %vm1341, %v1321, 0
      %v1673 = vsel %vm1341, %v1322, 0
      %v1676 = vsel %vm1341, %v1323, 0
      %v1679 = vsel %vm1341, %v1324, 0
      %v1682 = vsel %vm1341, %v1325, 0
      %v1685 = vsel %vm1341, %v1326, 0
      %v1688 = vsel %vm1341, %v1327, 0
      %v1691 = vsel %vm1341, %v1328, 0
      %v1694 = vsel %vm1341, %v1329, 0
      %v1697 = vsel %vm1341, %v1330, 0
      %v1700 = vsel %vm1341, %v1331, 0
      %v1703 = vsel %vm1341, %v1332, 0
      %v1706 = vsel %vm1341, %v1333, 0
      %v1709 = vsel %vm1341, %v1334, 0
      %v1712 = vsel %vm1341, %v1335, 0
      %v1715 = vsel %vm1341, %v1336, 0
      %v1718 = vsel %vm1341, %v1337, 0
      %1720 = vmatprep.subr.mxu0 0.0
      %1721 = vmatpush1.msra.mxu0 0.0
      %1722 = vmatprep.subr.mxu0 0.0
      %1723 = vmatpush1.msra.mxu0 0.0
      %1724 = vmatprep.subr.mxu0 0.0
      %1725 = vmatpush1.msra.mxu0 0.0
      %1726 = vmatprep.subr.mxu0 0.0
      %1727 = vmatpush1.msra.mxu0 0.0
      %1728 = vmatprep.subr.mxu0 0.0
      %1729 = vmatpush1.msra.mxu0 0.0
      %1730 = vmatprep.subr.mxu0 0.0
      %1731 = vmatpush1.msra.mxu0 0.0
      %1732 = vmatprep.subr.mxu0 0.0
      %1733 = vmatpush1.msra.mxu0 0.0
      %1734 = vmatprep.subr.mxu0 0.0
      %1735 = vmatpush1.msra.mxu0 0.0
      %1736 = vmatprep.subr.mxu0 0.0
      %1737 = vmatpush1.msra.mxu0 0.0
      %1738 = vmatprep.subr.mxu0 0.0
      %1739 = vmatpush1.msra.mxu0 0.0
      %1740 = vmatprep.subr.mxu0 0.0
      %1741 = vmatpush1.msra.mxu0 0.0
      %1742 = vmatprep.subr.mxu0 0.0
      %1743 = vmatpush1.msra.mxu0 0.0
      %1744 = vmatprep.subr.mxu0 0.0
      %1745 = vmatpush1.msra.mxu0 0.0
      %1746 = vmatprep.subr.mxu0 0.0
      %1747 = vmatpush1.msra.mxu0 0.0
      %1748 = vmatprep.subr.mxu0 0.0
      %1749 = vmatpush1.msra.mxu0 0.0
      %1750 = vmatprep.subr.mxu0 0.0
      %1751 = vmatpush1.msra.mxu0 %v1338
      %1752 = vmatprep.subr.mxu0 0.0
      %1753 = vmatpush2.msra.mxu0 0.0
      %1754 = vmatprep.subr.mxu0 0.0
      %1755 = vmatpush2.msra.mxu0 0.0
      %1756 = vmatprep.subr.mxu0 0.0
      %1757 = vmatpush2.msra.mxu0 0.0
      %1758 = vmatprep.subr.mxu0 0.0
      %1759 = vmatpush2.msra.mxu0 0.0
      %1760 = vmatprep.subr.mxu0 0.0
      %1761 = vmatpush2.msra.mxu0 0.0
      %1762 = vmatprep.subr.mxu0 0.0
      %1763 = vmatpush2.msra.mxu0 0.0
      %1764 = vmatprep.subr.mxu0 0.0
      %1765 = vmatpush2.msra.mxu0 0.0
      %1766 = vmatprep.subr.mxu0 0.0
      %1767 = vmatpush2.msra.mxu0 0.0
      %1768 = vmatprep.subr.mxu0 0.0
      %1769 = vmatpush2.msra.mxu0 0.0
      %1770 = vmatprep.subr.mxu0 0.0
      %1771 = vmatpush2.msra.mxu0 0.0
      %1772 = vmatprep.subr.mxu0 0.0
      %1773 = vmatpush2.msra.mxu0 0.0
      %1774 = vmatprep.subr.mxu0 0.0
      %1775 = vmatpush2.msra.mxu0 0.0
      %1776 = vmatprep.subr.mxu0 0.0
      %1777 = vmatpush2.msra.mxu0 0.0
      %1778 = vmatprep.subr.mxu0 0.0
      %1779 = vmatpush2.msra.mxu0 0.0
      %1780 = vmatprep.subr.mxu0 0.0
      %1781 = vmatpush2.msra.mxu0 0.0
      %1782 = vmatprep.subr.mxu0 0.0
      %1783 = vmatpush2.msra.mxu0 0.0
      %1784 = vmatprep.mubr.f32.mxu0 0.0
      %1785 = vmatmul.mubr.f32.gmra.mxu0 %v1343
      %v1786 = vpop.f32.mrf.mxu0
      %v1787 = vadd.f32 %v1472, %v1786
      %v1788 = vpop.f32.mrf.mxu0
      %1789 = vmatprep.mubr.f32.mxu0 0.0
      %1790 = vmatmul.mubr.f32.gmra.mxu0 %v1343
      %v1791 = vpop.f32.mrf.mxu0
      %v1792 = vadd.f32 %v1477, %v1791
      %v1793 = vpop.f32.mrf.mxu0
      %1794 = vmatprep.mubr.f32.mxu0 0.0
      %1795 = vmatmul.mubr.f32.gmra.mxu0 %v1631
      %v1796 = vpop.f32.mrf.mxu0
      %v1797 = vadd.f32 %v1482, %v1796
      %v1798 = vpop.f32.mrf.mxu0
      %1799 = vmatprep.mubr.f32.mxu0 0.0
      %1800 = vmatmul.mubr.f32.gmra.mxu0 %v1634
      %v1801 = vpop.f32.mrf.mxu0
      %v1802 = vadd.f32 %v1487, %v1801
      %v1803 = vpop.f32.mrf.mxu0
      %1804 = vmatprep.mubr.f32.mxu0 0.0
      %1805 = vmatmul.mubr.f32.gmra.mxu0 %v1637
      %v1806 = vpop.f32.mrf.mxu0
      %v1807 = vadd.f32 %v1492, %v1806
      %v1808 = vpop.f32.mrf.mxu0
      %1809 = vmatprep.mubr.f32.mxu0 0.0
      %1810 = vmatmul.mubr.f32.gmra.mxu0 %v1640
      %v1811 = vpop.f32.mrf.mxu0
      %v1812 = vadd.f32 %v1497, %v1811
      %v1813 = vpop.f32.mrf.mxu0
      %1814 = vmatprep.mubr.f32.mxu0 0.0
      %1815 = vmatmul.mubr.f32.gmra.mxu0 %v1643
      %v1816 = vpop.f32.mrf.mxu0
      %v1817 = vadd.f32 %v1502, %v1816
      %v1818 = vpop.f32.mrf.mxu0
      %1819 = vmatprep.mubr.f32.mxu0 0.0
      %1820 = vmatmul.mubr.f32.gmra.mxu0 %v1646
      %v1821 = vpop.f32.mrf.mxu0
      %v1822 = vadd.f32 %v1507, %v1821
      %v1823 = vpop.f32.mrf.mxu0
      %1824 = vmatprep.mubr.f32.mxu0 0.0
      %1825 = vmatmul.mubr.f32.gmra.mxu0 %v1649
      %v1826 = vpop.f32.mrf.mxu0
      %v1827 = vadd.f32 %v1512, %v1826
      %v1828 = vpop.f32.mrf.mxu0
      %1829 = vmatprep.mubr.f32.mxu0 0.0
      %1830 = vmatmul.mubr.f32.gmra.mxu0 %v1652
      %v1831 = vpop.f32.mrf.mxu0
      %v1832 = vadd.f32 %v1517, %v1831
      %v1833 = vpop.f32.mrf.mxu0
      %1834 = vmatprep.mubr.f32.mxu0 0.0
      %1835 = vmatmul.mubr.f32.gmra.mxu0 %v1655
      %v1836 = vpop.f32.mrf.mxu0
      %v1837 = vadd.f32 %v1522, %v1836
      %v1838 = vpop.f32.mrf.mxu0
      %1839 = vmatprep.mubr.f32.mxu0 0.0
      %1840 = vmatmul.mubr.f32.gmra.mxu0 %v1658
      %v1841 = vpop.f32.mrf.mxu0
      %v1842 = vadd.f32 %v1527, %v1841
      %v1843 = vpop.f32.mrf.mxu0
      %1844 = vmatprep.mubr.f32.mxu0 0.0
      %1845 = vmatmul.mubr.f32.gmra.mxu0 %v1661
      %v1846 = vpop.f32.mrf.mxu0
      %v1847 = vadd.f32 %v1532, %v1846
      %v1848 = vpop.f32.mrf.mxu0
      %1849 = vmatprep.mubr.f32.mxu0 0.0
      %1850 = vmatmul.mubr.f32.gmra.mxu0 %v1664
      %v1851 = vpop.f32.mrf.mxu0
      %v1852 = vadd.f32 %v1537, %v1851
      %v1853 = vpop.f32.mrf.mxu0
      %1854 = vmatprep.mubr.f32.mxu0 0.0
      %1855 = vmatmul.mubr.f32.gmra.mxu0 %v1667
      %v1856 = vpop.f32.mrf.mxu0
      %v1857 = vadd.f32 %v1542, %v1856
      %v1858 = vpop.f32.mrf.mxu0
      %1859 = vmatprep.mubr.f32.mxu0 0.0
      %1860 = vmatmul.mubr.f32.gmra.mxu0 %v1670
      %v1861 = vpop.f32.mrf.mxu0
      %v1862 = vadd.f32 %v1547, %v1861
      %v1863 = vpop.f32.mrf.mxu0
      %1864 = vmatprep.mubr.f32.mxu0 0.0
      %1865 = vmatmul.mubr.f32.gmra.mxu0 %v1673
      %v1866 = vpop.f32.mrf.mxu0
      %v1867 = vadd.f32 %v1552, %v1866
      %v1868 = vpop.f32.mrf.mxu0
      %1869 = vmatprep.mubr.f32.mxu0 0.0
      %1870 = vmatmul.mubr.f32.gmra.mxu0 %v1676
      %v1871 = vpop.f32.mrf.mxu0
      %v1872 = vadd.f32 %v1557, %v1871
      %v1873 = vpop.f32.mrf.mxu0
      %1874 = vmatprep.mubr.f32.mxu0 0.0
      %1875 = vmatmul.mubr.f32.gmra.mxu0 %v1679
      %v1876 = vpop.f32.mrf.mxu0
      %v1877 = vadd.f32 %v1562, %v1876
      %v1878 = vpop.f32.mrf.mxu0
      %1879 = vmatprep.mubr.f32.mxu0 0.0
      %1880 = vmatmul.mubr.f32.gmra.mxu0 %v1682
      %v1881 = vpop.f32.mrf.mxu0
      %v1882 = vadd.f32 %v1567, %v1881
      %v1883 = vpop.f32.mrf.mxu0
      %1884 = vmatprep.mubr.f32.mxu0 0.0
      %1885 = vmatmul.mubr.f32.gmra.mxu0 %v1685
      %v1886 = vpop.f32.mrf.mxu0
      %v1887 = vadd.f32 %v1572, %v1886
      %v1888 = vpop.f32.mrf.mxu0
      %1889 = vmatprep.mubr.f32.mxu0 0.0
      %1890 = vmatmul.mubr.f32.gmra.mxu0 %v1688
      %v1891 = vpop.f32.mrf.mxu0
      %v1892 = vadd.f32 %v1577, %v1891
      %v1893 = vpop.f32.mrf.mxu0
      %1894 = vmatprep.mubr.f32.mxu0 0.0
      %1895 = vmatmul.mubr.f32.gmra.mxu0 %v1691
      %v1896 = vpop.f32.mrf.mxu0
      %v1897 = vadd.f32 %v1582, %v1896
      %v1898 = vpop.f32.mrf.mxu0
      %1899 = vmatprep.mubr.f32.mxu0 0.0
      %1900 = vmatmul.mubr.f32.gmra.mxu0 %v1694
      %v1901 = vpop.f32.mrf.mxu0
      %v1902 = vadd.f32 %v1587, %v1901
      %v1903 = vpop.f32.mrf.mxu0
      %1904 = vmatprep.mubr.f32.mxu0 0.0
      %1905 = vmatmul.mubr.f32.gmra.mxu0 %v1697
      %v1906 = vpop.f32.mrf.mxu0
      %v1907 = vadd.f32 %v1592, %v1906
      %v1908 = vpop.f32.mrf.mxu0
      %1909 = vmatprep.mubr.f32.mxu0 0.0
      %1910 = vmatmul.mubr.f32.gmra.mxu0 %v1700
      %v1911 = vpop.f32.mrf.mxu0
      %v1912 = vadd.f32 %v1597, %v1911
      %v1913 = vpop.f32.mrf.mxu0
      %1914 = vmatprep.mubr.f32.mxu0 0.0
      %1915 = vmatmul.mubr.f32.gmra.mxu0 %v1703
      %v1916 = vpop.f32.mrf.mxu0
      %v1917 = vadd.f32 %v1602, %v1916
      %v1918 = vpop.f32.mrf.mxu0
      %1919 = vmatprep.mubr.f32.mxu0 0.0
      %1920 = vmatmul.mubr.f32.gmra.mxu0 %v1706
      %v1921 = vpop.f32.mrf.mxu0
      %v1922 = vadd.f32 %v1607, %v1921
      %v1923 = vpop.f32.mrf.mxu0
      %1924 = vmatprep.mubr.f32.mxu0 0.0
      %1925 = vmatmul.mubr.f32.gmra.mxu0 %v1709
      %v1926 = vpop.f32.mrf.mxu0
      %v1927 = vadd.f32 %v1612, %v1926
      %v1928 = vpop.f32.mrf.mxu0
      %1929 = vmatprep.mubr.f32.mxu0 0.0
      %1930 = vmatmul.mubr.f32.gmra.mxu0 %v1712
      %v1931 = vpop.f32.mrf.mxu0
      %v1932 = vadd.f32 %v1617, %v1931
      %v1933 = vpop.f32.mrf.mxu0
      %1934 = vmatprep.mubr.f32.mxu0 0.0
      %1935 = vmatmul.mubr.f32.gmra.mxu0 %v1715
      %v1936 = vpop.f32.mrf.mxu0
      %v1937 = vadd.f32 %v1622, %v1936
      %v1938 = vpop.f32.mrf.mxu0
      %1939 = vmatprep.mubr.f32.mxu0 0.0
      %1940 = vmatmul.mubr.f32.gmra.mxu0 %v1718
      %v1941 = vpop.f32.mrf.mxu0
      %v1942 = vadd.f32 %v1627, %v1941
      %v1943 = vpop.f32.mrf.mxu0
      %1944 = vdwg.mxu0
      %vm1946 = vcmask 1046528
      %v1947 = vrot.slane %v642, 1
      %v1948 = vrot.slane %v643, 1
      %v1949 = vsel %vm1946, %v1947, %v1948
      %v1950 = vrot.slane %v644, 1
      %v1951 = vsel %vm1946, %v1948, %v1950
      %v1952 = vrot.slane %v645, 1
      %v1953 = vsel %vm1946, %v1950, %v1952
      %v1954 = vrot.slane %v646, 1
      %v1955 = vsel %vm1946, %v1952, %v1954
      %v1956 = vrot.slane %v647, 1
      %v1957 = vsel %vm1946, %v1954, %v1956
      %v1958 = vrot.slane %v648, 1
      %v1959 = vsel %vm1946, %v1956, %v1958
      %v1960 = vrot.slane %v649, 1
      %v1961 = vsel %vm1946, %v1958, %v1960
      %v1962 = vrot.slane %v650, 1
      %v1963 = vsel %vm1946, %v1960, %v1962
      %v1964 = vrot.slane %v651, 1
      %v1965 = vsel %vm1946, %v1962, %v1964
      %v1966 = vrot.slane %v652, 1
      %v1967 = vsel %vm1946, %v1964, %v1966
      %v1968 = vrot.slane %v653, 1
      %v1969 = vsel %vm1946, %v1966, %v1968
      %v1970 = vrot.slane %v654, 1
      %v1971 = vsel %vm1946, %v1968, %v1970
      %v1972 = vrot.slane %v655, 1
      %v1973 = vsel %vm1946, %v1970, %v1972
      %v1974 = vrot.slane %v656, 1
      %v1975 = vsel %vm1946, %v1972, %v1974
      %v1976 = vrot.slane %v657, 1
      %v1977 = vsel %vm1946, %v1974, %v1976
      %v1978 = vrot.slane %v658, 1
      %v1979 = vsel %vm1946, %v1976, %v1978
      %v1980 = vrot.slane %v659, 1
      %v1981 = vsel %vm1946, %v1978, %v1980
      %v1982 = vrot.slane %v660, 1
      %v1983 = vsel %vm1946, %v1980, %v1982
      %v1984 = vrot.slane %v661, 1
      %v1985 = vsel %vm1946, %v1982, %v1984
      %v1986 = vrot.slane %v662, 1
      %v1987 = vsel %vm1946, %v1984, %v1986
      %v1988 = vrot.slane %v663, 1
      %v1989 = vsel %vm1946, %v1986, %v1988
      %v1990 = vrot.slane %v664, 1
      %v1991 = vsel %vm1946, %v1988, %v1990
      %v1992 = vrot.slane %v665, 1
      %v1993 = vsel %vm1946, %v1990, %v1992
      %v1994 = vrot.slane %v666, 1
      %v1995 = vsel %vm1946, %v1992, %v1994
      %v1996 = vrot.slane %v667, 1
      %v1997 = vsel %vm1946, %v1994, %v1996
      %v1998 = vrot.slane %v668, 1
      %v1999 = vsel %vm1946, %v1996, %v1998
      %v2000 = vrot.slane %v669, 1
      %v2001 = vsel %vm1946, %v1998, %v2000
      %v2002 = vrot.slane %v670, 1
      %v2003 = vsel %vm1946, %v2000, %v2002
      %v2004 = vrot.slane %v671, 1
      %v2005 = vsel %vm1946, %v2002, %v2004
      %v2006 = vrot.slane %v672, 1
      %v2007 = vsel %vm1946, %v2004, %v2006
      %v2039 = vsel %vm1946, 0.0, %v1947
      %vm2040 = vcmp.eq.s32.totalorder %v1059, 15
      %vm2041 = vcmp.eq.s32.totalorder %v1060, 15
      %vm2042 = vcmp.eq.s32.totalorder %v1061, 15
      %vm2043 = vcmp.eq.s32.totalorder %v1062, 15
      %vm2044 = vcmp.eq.s32.totalorder %v1063, 15
      %vm2045 = vcmp.eq.s32.totalorder %v1064, 15
      %vm2046 = vcmp.eq.s32.totalorder %v1065, 15
      %vm2047 = vcmp.eq.s32.totalorder %v1066, 15
      %vm2048 = vcmp.eq.s32.totalorder %v1067, 15
      %vm2049 = vcmp.eq.s32.totalorder %v1068, 15
      %vm2050 = vcmp.eq.s32.totalorder %v1069, 15
      %vm2051 = vcmp.eq.s32.totalorder %v1070, 15
      %vm2052 = vcmp.eq.s32.totalorder %v1071, 15
      %vm2053 = vcmp.eq.s32.totalorder %v1072, 15
      %vm2054 = vcmp.eq.s32.totalorder %v1073, 15
      %vm2055 = vcmp.eq.s32.totalorder %v1074, 15
      %vm2056 = vcmp.eq.s32.totalorder %v1075, 15
      %vm2057 = vcmp.eq.s32.totalorder %v1076, 15
      %vm2058 = vcmp.eq.s32.totalorder %v1077, 15
      %vm2059 = vcmp.eq.s32.totalorder %v1078, 15
      %vm2060 = vcmp.eq.s32.totalorder %v1079, 15
      %vm2061 = vcmp.eq.s32.totalorder %v1080, 15
      %vm2062 = vcmp.eq.s32.totalorder %v1081, 15
      %vm2063 = vcmp.eq.s32.totalorder %v1082, 15
      %vm2064 = vcmp.eq.s32.totalorder %v1083, 15
      %vm2065 = vcmp.eq.s32.totalorder %v1084, 15
      %vm2066 = vcmp.eq.s32.totalorder %v1085, 15
      %vm2067 = vcmp.eq.s32.totalorder %v1086, 15
      %vm2068 = vcmp.eq.s32.totalorder %v1087, 15
      %vm2069 = vcmp.eq.s32.totalorder %v1088, 15
      %vm2070 = vcmp.eq.s32.totalorder %v1089, 15
      %vm2071 = vcmp.eq.s32.totalorder %v1090, 15
      %v2072 = vsel %vm2040, 1, 0
      %v2073 = vsel %vm2041, 1, 0
      %v2074 = vsel %vm2042, 1, 0
      %v2075 = vsel %vm2043, 1, 0
      %v2076 = vsel %vm2044, 1, 0
      %v2077 = vsel %vm2045, 1, 0
      %v2078 = vsel %vm2046, 1, 0
      %v2079 = vsel %vm2047, 1, 0
      %v2080 = vsel %vm2048, 1, 0
      %v2081 = vsel %vm2049, 1, 0
      %v2082 = vsel %vm2050, 1, 0
      %v2083 = vsel %vm2051, 1, 0
      %v2084 = vsel %vm2052, 1, 0
      %v2085 = vsel %vm2053, 1, 0
      %v2086 = vsel %vm2054, 1, 0
      %v2087 = vsel %vm2055, 1, 0
      %v2088 = vsel %vm2056, 1, 0
      %v2089 = vsel %vm2057, 1, 0
      %v2090 = vsel %vm2058, 1, 0
      %v2091 = vsel %vm2059, 1, 0
      %v2092 = vsel %vm2060, 1, 0
      %v2093 = vsel %vm2061, 1, 0
      %v2094 = vsel %vm2062, 1, 0
      %v2095 = vsel %vm2063, 1, 0
      %v2096 = vsel %vm2064, 1, 0
      %v2097 = vsel %vm2065, 1, 0
      %v2098 = vsel %vm2066, 1, 0
      %v2099 = vsel %vm2067, 1, 0
      %v2100 = vsel %vm2068, 1, 0
      %v2101 = vsel %vm2069, 1, 0
      %v2102 = vsel %vm2070, 1, 0
      %v2103 = vsel %vm2071, 1, 0
      %vm2104 = vcmp.eq.s32.totalorder %v2072, 1
      %vm2105 = vcmp.eq.s32.totalorder %v2073, 1
      %vm2106 = vcmp.eq.s32.totalorder %v2074, 1
      %vm2107 = vcmp.eq.s32.totalorder %v2075, 1
      %vm2108 = vcmp.eq.s32.totalorder %v2076, 1
      %vm2109 = vcmp.eq.s32.totalorder %v2077, 1
      %vm2110 = vcmp.eq.s32.totalorder %v2078, 1
      %vm2111 = vcmp.eq.s32.totalorder %v2079, 1
      %vm2112 = vcmp.eq.s32.totalorder %v2080, 1
      %vm2113 = vcmp.eq.s32.totalorder %v2081, 1
      %vm2114 = vcmp.eq.s32.totalorder %v2082, 1
      %vm2115 = vcmp.eq.s32.totalorder %v2083, 1
      %vm2116 = vcmp.eq.s32.totalorder %v2084, 1
      %vm2117 = vcmp.eq.s32.totalorder %v2085, 1
      %vm2118 = vcmp.eq.s32.totalorder %v2086, 1
      %vm2119 = vcmp.eq.s32.totalorder %v2087, 1
      %vm2120 = vcmp.eq.s32.totalorder %v2088, 1
      %vm2121 = vcmp.eq.s32.totalorder %v2089, 1
      %vm2122 = vcmp.eq.s32.totalorder %v2090, 1
      %vm2123 = vcmp.eq.s32.totalorder %v2091, 1
      %vm2124 = vcmp.eq.s32.totalorder %v2092, 1
      %vm2125 = vcmp.eq.s32.totalorder %v2093, 1
      %vm2126 = vcmp.eq.s32.totalorder %v2094, 1
      %vm2127 = vcmp.eq.s32.totalorder %v2095, 1
      %vm2128 = vcmp.eq.s32.totalorder %v2096, 1
      %vm2129 = vcmp.eq.s32.totalorder %v2097, 1
      %vm2130 = vcmp.eq.s32.totalorder %v2098, 1
      %vm2131 = vcmp.eq.s32.totalorder %v2099, 1
      %vm2132 = vcmp.eq.s32.totalorder %v2100, 1
      %vm2133 = vcmp.eq.s32.totalorder %v2101, 1
      %vm2134 = vcmp.eq.s32.totalorder %v2102, 1
      %vm2135 = vcmp.eq.s32.totalorder %v2103, 1
      %v2136 = vsel %vm2105, 0.0, %v2039
      %v2137 = vsel %vm2106, 0.0, %v1949
      %v2138 = vsel %vm2107, 0.0, %v1951
      %v2139 = vsel %vm2108, 0.0, %v1953
      %v2140 = vsel %vm2109, 0.0, %v1955
      %v2141 = vsel %vm2110, 0.0, %v1957
      %v2142 = vsel %vm2111, 0.0, %v1959
      %v2143 = vsel %vm2112, 0.0, %v1961
      %v2144 = vsel %vm2113, 0.0, %v1963
      %v2145 = vsel %vm2114, 0.0, %v1965
      %v2146 = vsel %vm2115, 0.0, %v1967
      %v2147 = vsel %vm2116, 0.0, %v1969
      %v2148 = vsel %vm2117, 0.0, %v1971
      %v2149 = vsel %vm2118, 0.0, %v1973
      %v2150 = vsel %vm2119, 0.0, %v1975
      %v2151 = vsel %vm2120, 0.0, %v1977
      %v2152 = vsel %vm2121, 0.0, %v1979
      %v2153 = vsel %vm2122, 0.0, %v1981
      %v2154 = vsel %vm2123, 0.0, %v1983
      %v2155 = vsel %vm2124, 0.0, %v1985
      %v2156 = vsel %vm2125, 0.0, %v1987
      %v2157 = vsel %vm2126, 0.0, %v1989
      %v2158 = vsel %vm2127, 0.0, %v1991
      %v2159 = vsel %vm2128, 0.0, %v1993
      %v2160 = vsel %vm2129, 0.0, %v1995
      %v2161 = vsel %vm2130, 0.0, %v1997
      %v2162 = vsel %vm2131, 0.0, %v1999
      %v2163 = vsel %vm2132, 0.0, %v2001
      %v2164 = vsel %vm2133, 0.0, %v2003
      %v2165 = vsel %vm2134, 0.0, %v2005
      %v2166 = vsel %vm2135, 0.0, %v2007
      %s2167 = scalar_lea.vmem %s3, 16
      %v2168 = vld [vmem:[%s2167] sm:$0xff]
      %v2170 = vsel %vm1341, %v2136, 0
      %v2173 = vsel %vm1341, %v2137, 0
      %v2176 = vsel %vm1341, %v2138, 0
      %v2179 = vsel %vm1341, %v2139, 0
      %v2182 = vsel %vm1341, %v2140, 0
      %v2185 = vsel %vm1341, %v2141, 0
      %v2188 = vsel %vm1341, %v2142, 0
      %v2191 = vsel %vm1341, %v2143, 0
      %v2194 = vsel %vm1341, %v2144, 0
      %v2197 = vsel %vm1341, %v2145, 0
      %v2200 = vsel %vm1341, %v2146, 0
      %v2203 = vsel %vm1341, %v2147, 0
      %v2206 = vsel %vm1341, %v2148, 0
      %v2209 = vsel %vm1341, %v2149, 0
      %v2212 = vsel %vm1341, %v2150, 0
      %v2215 = vsel %vm1341, %v2151, 0
      %v2218 = vsel %vm1341, %v2152, 0
      %v2221 = vsel %vm1341, %v2153, 0
      %v2224 = vsel %vm1341, %v2154, 0
      %v2227 = vsel %vm1341, %v2155, 0
      %v2230 = vsel %vm1341, %v2156, 0
      %v2233 = vsel %vm1341, %v2157, 0
      %v2236 = vsel %vm1341, %v2158, 0
      %v2239 = vsel %vm1341, %v2159, 0
      %v2242 = vsel %vm1341, %v2160, 0
      %v2245 = vsel %vm1341, %v2161, 0
      %v2248 = vsel %vm1341, %v2162, 0
      %v2251 = vsel %vm1341, %v2163, 0
      %v2254 = vsel %vm1341, %v2164, 0
      %v2257 = vsel %vm1341, %v2165, 0
      %v2260 = vsel %vm1341, %v2166, 0
      %2262 = vmatprep.subr.mxu0 0.0
      %2263 = vmatpush1.msra.mxu0 0.0
      %2264 = vmatprep.subr.mxu0 0.0
      %2265 = vmatpush1.msra.mxu0 0.0
      %2266 = vmatprep.subr.mxu0 0.0
      %2267 = vmatpush1.msra.mxu0 0.0
      %2268 = vmatprep.subr.mxu0 0.0
      %2269 = vmatpush1.msra.mxu0 0.0
      %2270 = vmatprep.subr.mxu0 0.0
      %2271 = vmatpush1.msra.mxu0 0.0
      %2272 = vmatprep.subr.mxu0 0.0
      %2273 = vmatpush1.msra.mxu0 0.0
      %2274 = vmatprep.subr.mxu0 0.0
      %2275 = vmatpush1.msra.mxu0 0.0
      %2276 = vmatprep.subr.mxu0 0.0
      %2277 = vmatpush1.msra.mxu0 0.0
      %2278 = vmatprep.subr.mxu0 0.0
      %2279 = vmatpush1.msra.mxu0 0.0
      %2280 = vmatprep.subr.mxu0 0.0
      %2281 = vmatpush1.msra.mxu0 0.0
      %2282 = vmatprep.subr.mxu0 0.0
      %2283 = vmatpush1.msra.mxu0 0.0
      %2284 = vmatprep.subr.mxu0 0.0
      %2285 = vmatpush1.msra.mxu0 0.0
      %2286 = vmatprep.subr.mxu0 0.0
      %2287 = vmatpush1.msra.mxu0 0.0
      %2288 = vmatprep.subr.mxu0 0.0
      %2289 = vmatpush1.msra.mxu0 0.0
      %2290 = vmatprep.subr.mxu0 0.0
      %2291 = vmatpush1.msra.mxu0 0.0
      %2292 = vmatprep.subr.mxu0 0.0
      %2293 = vmatpush1.msra.mxu0 %v2168
      %2294 = vmatprep.subr.mxu0 0.0
      %2295 = vmatpush2.msra.mxu0 0.0
      %2296 = vmatprep.subr.mxu0 0.0
      %2297 = vmatpush2.msra.mxu0 0.0
      %2298 = vmatprep.subr.mxu0 0.0
      %2299 = vmatpush2.msra.mxu0 0.0
      %2300 = vmatprep.subr.mxu0 0.0
      %2301 = vmatpush2.msra.mxu0 0.0
      %2302 = vmatprep.subr.mxu0 0.0
      %2303 = vmatpush2.msra.mxu0 0.0
      %2304 = vmatprep.subr.mxu0 0.0
      %2305 = vmatpush2.msra.mxu0 0.0
      %2306 = vmatprep.subr.mxu0 0.0
      %2307 = vmatpush2.msra.mxu0 0.0
      %2308 = vmatprep.subr.mxu0 0.0
      %2309 = vmatpush2.msra.mxu0 0.0
      %2310 = vmatprep.subr.mxu0 0.0
      %2311 = vmatpush2.msra.mxu0 0.0
      %2312 = vmatprep.subr.mxu0 0.0
      %2313 = vmatpush2.msra.mxu0 0.0
      %2314 = vmatprep.subr.mxu0 0.0
      %2315 = vmatpush2.msra.mxu0 0.0
      %2316 = vmatprep.subr.mxu0 0.0
      %2317 = vmatpush2.msra.mxu0 0.0
      %2318 = vmatprep.subr.mxu0 0.0
      %2319 = vmatpush2.msra.mxu0 0.0
      %2320 = vmatprep.subr.mxu0 0.0
      %2321 = vmatpush2.msra.mxu0 0.0
      %2322 = vmatprep.subr.mxu0 0.0
      %2323 = vmatpush2.msra.mxu0 0.0
      %2324 = vmatprep.subr.mxu0 0.0
      %2325 = vmatpush2.msra.mxu0 0.0
      %2326 = vmatprep.mubr.f32.mxu0 0.0
      %2327 = vmatmul.mubr.f32.gmra.mxu0 %v1343
      %v2328 = vpop.f32.mrf.mxu0
      %v2329 = vadd.f32 0.0, %v2328
      %v2330 = vpop.f32.mrf.mxu0
      %2331 = vmatprep.mubr.f32.mxu0 0.0
      %2332 = vmatmul.mubr.f32.gmra.mxu0 %v2170
      %v2333 = vpop.f32.mrf.mxu0
      %v2334 = vadd.f32 0.0, %v2333
      %v2335 = vpop.f32.mrf.mxu0
      %2336 = vmatprep.mubr.f32.mxu0 0.0
      %2337 = vmatmul.mubr.f32.gmra.mxu0 %v2173
      %v2338 = vpop.f32.mrf.mxu0
      %v2339 = vadd.f32 0.0, %v2338
      %v2340 = vpop.f32.mrf.mxu0
      %2341 = vmatprep.mubr.f32.mxu0 0.0
      %2342 = vmatmul.mubr.f32.gmra.mxu0 %v2176
      %v2343 = vpop.f32.mrf.mxu0
      %v2344 = vadd.f32 0.0, %v2343
      %v2345 = vpop.f32.mrf.mxu0
      %2346 = vmatprep.mubr.f32.mxu0 0.0
      %2347 = vmatmul.mubr.f32.gmra.mxu0 %v2179
      %v2348 = vpop.f32.mrf.mxu0
      %v2349 = vadd.f32 0.0, %v2348
      %v2350 = vpop.f32.mrf.mxu0
      %2351 = vmatprep.mubr.f32.mxu0 0.0
      %2352 = vmatmul.mubr.f32.gmra.mxu0 %v2182
      %v2353 = vpop.f32.mrf.mxu0
      %v2354 = vadd.f32 0.0, %v2353
      %v2355 = vpop.f32.mrf.mxu0
      %2356 = vmatprep.mubr.f32.mxu0 0.0
      %2357 = vmatmul.mubr.f32.gmra.mxu0 %v2185
      %v2358 = vpop.f32.mrf.mxu0
      %v2359 = vadd.f32 0.0, %v2358
      %v2360 = vpop.f32.mrf.mxu0
      %2361 = vmatprep.mubr.f32.mxu0 0.0
      %2362 = vmatmul.mubr.f32.gmra.mxu0 %v2188
      %v2363 = vpop.f32.mrf.mxu0
      %v2364 = vadd.f32 0.0, %v2363
      %v2365 = vpop.f32.mrf.mxu0
      %2366 = vmatprep.mubr.f32.mxu0 0.0
      %2367 = vmatmul.mubr.f32.gmra.mxu0 %v2191
      %v2368 = vpop.f32.mrf.mxu0
      %v2369 = vadd.f32 0.0, %v2368
      %v2370 = vpop.f32.mrf.mxu0
      %2371 = vmatprep.mubr.f32.mxu0 0.0
      %2372 = vmatmul.mubr.f32.gmra.mxu0 %v2194
      %v2373 = vpop.f32.mrf.mxu0
      %v2374 = vadd.f32 0.0, %v2373
      %v2375 = vpop.f32.mrf.mxu0
      %2376 = vmatprep.mubr.f32.mxu0 0.0
      %2377 = vmatmul.mubr.f32.gmra.mxu0 %v2197
      %v2378 = vpop.f32.mrf.mxu0
      %v2379 = vadd.f32 0.0, %v2378
      %v2380 = vpop.f32.mrf.mxu0
      %2381 = vmatprep.mubr.f32.mxu0 0.0
      %2382 = vmatmul.mubr.f32.gmra.mxu0 %v2200
      %v2383 = vpop.f32.mrf.mxu0
      %v2384 = vadd.f32 0.0, %v2383
      %v2385 = vpop.f32.mrf.mxu0
      %2386 = vmatprep.mubr.f32.mxu0 0.0
      %2387 = vmatmul.mubr.f32.gmra.mxu0 %v2203
      %v2388 = vpop.f32.mrf.mxu0
      %v2389 = vadd.f32 0.0, %v2388
      %v2390 = vpop.f32.mrf.mxu0
      %2391 = vmatprep.mubr.f32.mxu0 0.0
      %2392 = vmatmul.mubr.f32.gmra.mxu0 %v2206
      %v2393 = vpop.f32.mrf.mxu0
      %v2394 = vadd.f32 0.0, %v2393
      %v2395 = vpop.f32.mrf.mxu0
      %2396 = vmatprep.mubr.f32.mxu0 0.0
      %2397 = vmatmul.mubr.f32.gmra.mxu0 %v2209
      %v2398 = vpop.f32.mrf.mxu0
      %v2399 = vadd.f32 0.0, %v2398
      %v2400 = vpop.f32.mrf.mxu0
      %2401 = vmatprep.mubr.f32.mxu0 0.0
      %2402 = vmatmul.mubr.f32.gmra.mxu0 %v2212
      %v2403 = vpop.f32.mrf.mxu0
      %v2404 = vadd.f32 0.0, %v2403
      %v2405 = vpop.f32.mrf.mxu0
      %2406 = vmatprep.mubr.f32.mxu0 0.0
      %2407 = vmatmul.mubr.f32.gmra.mxu0 %v2215
      %v2408 = vpop.f32.mrf.mxu0
      %v2409 = vadd.f32 0.0, %v2408
      %v2410 = vpop.f32.mrf.mxu0
      %2411 = vmatprep.mubr.f32.mxu0 0.0
      %2412 = vmatmul.mubr.f32.gmra.mxu0 %v2218
      %v2413 = vpop.f32.mrf.mxu0
      %v2414 = vadd.f32 0.0, %v2413
      %v2415 = vpop.f32.mrf.mxu0
      %2416 = vmatprep.mubr.f32.mxu0 0.0
      %2417 = vmatmul.mubr.f32.gmra.mxu0 %v2221
      %v2418 = vpop.f32.mrf.mxu0
      %v2419 = vadd.f32 0.0, %v2418
      %v2420 = vpop.f32.mrf.mxu0
      %2421 = vmatprep.mubr.f32.mxu0 0.0
      %2422 = vmatmul.mubr.f32.gmra.mxu0 %v2224
      %v2423 = vpop.f32.mrf.mxu0
      %v2424 = vadd.f32 0.0, %v2423
      %v2425 = vpop.f32.mrf.mxu0
      %2426 = vmatprep.mubr.f32.mxu0 0.0
      %2427 = vmatmul.mubr.f32.gmra.mxu0 %v2227
      %v2428 = vpop.f32.mrf.mxu0
      %v2429 = vadd.f32 0.0, %v2428
      %v2430 = vpop.f32.mrf.mxu0
      %2431 = vmatprep.mubr.f32.mxu0 0.0
      %2432 = vmatmul.mubr.f32.gmra.mxu0 %v2230
      %v2433 = vpop.f32.mrf.mxu0
      %v2434 = vadd.f32 0.0, %v2433
      %v2435 = vpop.f32.mrf.mxu0
      %2436 = vmatprep.mubr.f32.mxu0 0.0
      %2437 = vmatmul.mubr.f32.gmra.mxu0 %v2233
      %v2438 = vpop.f32.mrf.mxu0
      %v2439 = vadd.f32 0.0, %v2438
      %v2440 = vpop.f32.mrf.mxu0
      %2441 = vmatprep.mubr.f32.mxu0 0.0
      %2442 = vmatmul.mubr.f32.gmra.mxu0 %v2236
      %v2443 = vpop.f32.mrf.mxu0
      %v2444 = vadd.f32 0.0, %v2443
      %v2445 = vpop.f32.mrf.mxu0
      %2446 = vmatprep.mubr.f32.mxu0 0.0
      %2447 = vmatmul.mubr.f32.gmra.mxu0 %v2239
      %v2448 = vpop.f32.mrf.mxu0
      %v2449 = vadd.f32 0.0, %v2448
      %v2450 = vpop.f32.mrf.mxu0
      %2451 = vmatprep.mubr.f32.mxu0 0.0
      %2452 = vmatmul.mubr.f32.gmra.mxu0 %v2242
      %v2453 = vpop.f32.mrf.mxu0
      %v2454 = vadd.f32 0.0, %v2453
      %v2455 = vpop.f32.mrf.mxu0
      %2456 = vmatprep.mubr.f32.mxu0 0.0
      %2457 = vmatmul.mubr.f32.gmra.mxu0 %v2245
      %v2458 = vpop.f32.mrf.mxu0
      %v2459 = vadd.f32 0.0, %v2458
      %v2460 = vpop.f32.mrf.mxu0
      %2461 = vmatprep.mubr.f32.mxu0 0.0
      %2462 = vmatmul.mubr.f32.gmra.mxu0 %v2248
      %v2463 = vpop.f32.mrf.mxu0
      %v2464 = vadd.f32 0.0, %v2463
      %v2465 = vpop.f32.mrf.mxu0
      %2466 = vmatprep.mubr.f32.mxu0 0.0
      %2467 = vmatmul.mubr.f32.gmra.mxu0 %v2251
      %v2468 = vpop.f32.mrf.mxu0
      %v2469 = vadd.f32 0.0, %v2468
      %v2470 = vpop.f32.mrf.mxu0
      %2471 = vmatprep.mubr.f32.mxu0 0.0
      %2472 = vmatmul.mubr.f32.gmra.mxu0 %v2254
      %v2473 = vpop.f32.mrf.mxu0
      %v2474 = vadd.f32 0.0, %v2473
      %v2475 = vpop.f32.mrf.mxu0
      %2476 = vmatprep.mubr.f32.mxu0 0.0
      %2477 = vmatmul.mubr.f32.gmra.mxu0 %v2257
      %v2478 = vpop.f32.mrf.mxu0
      %v2479 = vadd.f32 0.0, %v2478
      %v2480 = vpop.f32.mrf.mxu0
      %2481 = vmatprep.mubr.f32.mxu0 0.0
      %2482 = vmatmul.mubr.f32.gmra.mxu0 %v2260
      %v2483 = vpop.f32.mrf.mxu0
      %v2484 = vadd.f32 0.0, %v2483
      %v2485 = vpop.f32.mrf.mxu0
      %2486 = vdwg.mxu0
      %v2487 = vadd.f32 %v1787, %v2329
      %v2488 = vadd.f32 %v1792, %v2334
      %v2489 = vadd.f32 %v1797, %v2339
      %v2490 = vadd.f32 %v1802, %v2344
      %v2491 = vadd.f32 %v1807, %v2349
      %v2492 = vadd.f32 %v1812, %v2354
      %v2493 = vadd.f32 %v1817, %v2359
      %v2494 = vadd.f32 %v1822, %v2364
      %v2495 = vadd.f32 %v1827, %v2369
      %v2496 = vadd.f32 %v1832, %v2374
      %v2497 = vadd.f32 %v1837, %v2379
      %v2498 = vadd.f32 %v1842, %v2384
      %v2499 = vadd.f32 %v1847, %v2389
      %v2500 = vadd.f32 %v1852, %v2394
      %v2501 = vadd.f32 %v1857, %v2399
      %v2502 = vadd.f32 %v1862, %v2404
      %v2503 = vadd.f32 %v1867, %v2409
      %v2504 = vadd.f32 %v1872, %v2414
      %v2505 = vadd.f32 %v1877, %v2419
      %v2506 = vadd.f32 %v1882, %v2424
      %v2507 = vadd.f32 %v1887, %v2429
      %v2508 = vadd.f32 %v1892, %v2434
      %v2509 = vadd.f32 %v1897, %v2439
      %v2510 = vadd.f32 %v1902, %v2444
      %v2511 = vadd.f32 %v1907, %v2449
      %v2512 = vadd.f32 %v1912, %v2454
      %v2513 = vadd.f32 %v1917, %v2459
      %v2514 = vadd.f32 %v1922, %v2464
      %v2515 = vadd.f32 %v1927, %v2469
      %v2516 = vadd.f32 %v1932, %v2474
      %v2517 = vadd.f32 %v1937, %v2479
      %v2518 = vadd.f32 %v1942, %v2484
      %v2520 = vrot.slane %v672, 7
      %v2521 = vsel %vm1121, %v1179, %v2520
      %v2522 = vrot.slane %v673, 7
      %v2523 = vsel %vm1121, %v2520, %v2522
      %v2526 = vsel %vm1276, 0.0, %v1211
      %v2527 = vsel %vm1277, 0.0, %v1124
      %v2528 = vsel %vm1278, 0.0, %v1126
      %v2529 = vsel %vm1279, 0.0, %v1128
      %v2530 = vsel %vm1280, 0.0, %v1130
      %v2531 = vsel %vm1281, 0.0, %v1132
      %v2532 = vsel %vm1282, 0.0, %v1134
      %v2533 = vsel %vm1283, 0.0, %v1136
      %v2534 = vsel %vm1284, 0.0, %v1138
      %v2535 = vsel %vm1285, 0.0, %v1140
      %v2536 = vsel %vm1286, 0.0, %v1142
      %v2537 = vsel %vm1287, 0.0, %v1144
      %v2538 = vsel %vm1288, 0.0, %v1146
      %v2539 = vsel %vm1289, 0.0, %v1148
      %v2540 = vsel %vm1290, 0.0, %v1150
      %v2541 = vsel %vm1291, 0.0, %v1152
      %v2542 = vsel %vm1292, 0.0, %v1154
      %v2543 = vsel %vm1293, 0.0, %v1156
      %v2544 = vsel %vm1294, 0.0, %v1158
      %v2545 = vsel %vm1295, 0.0, %v1160
      %v2546 = vsel %vm1296, 0.0, %v1162
      %v2547 = vsel %vm1297, 0.0, %v1164
      %v2548 = vsel %vm1298, 0.0, %v1166
      %v2549 = vsel %vm1299, 0.0, %v1168
      %v2550 = vsel %vm1300, 0.0, %v1170
      %v2551 = vsel %vm1301, 0.0, %v1172
      %v2552 = vsel %vm1302, 0.0, %v1174
      %v2553 = vsel %vm1303, 0.0, %v1176
      %v2554 = vsel %vm1304, 0.0, %v1178
      %v2555 = vsel %vm1305, 0.0, %v1180
      %v2556 = vsel %vm1306, 0.0, %v2521
      %v2557 = vsel %vm1307, 0.0, %v2523
      %s2558 = scalar_lea.vmem %s3, 24
      %v2559 = vld [vmem:[%s2558] sm:$0xff]
      %v2561 = vsel %vm1341, %v2526, 0
      %v2564 = vsel %vm1341, %v2527, 0
      %v2567 = vsel %vm1341, %v2528, 0
      %v2570 = vsel %vm1341, %v2529, 0
      %v2573 = vsel %vm1341, %v2530, 0
      %v2576 = vsel %vm1341, %v2531, 0
      %v2579 = vsel %vm1341, %v2532, 0
      %v2582 = vsel %vm1341, %v2533, 0
      %v2585 = vsel %vm1341, %v2534, 0
      %v2588 = vsel %vm1341, %v2535, 0
      %v2591 = vsel %vm1341, %v2536, 0
      %v2594 = vsel %vm1341, %v2537, 0
      %v2597 = vsel %vm1341, %v2538, 0
      %v2600 = vsel %vm1341, %v2539, 0
      %v2603 = vsel %vm1341, %v2540, 0
      %v2606 = vsel %vm1341, %v2541, 0
      %v2609 = vsel %vm1341, %v2542, 0
      %v2612 = vsel %vm1341, %v2543, 0
      %v2615 = vsel %vm1341, %v2544, 0
      %v2618 = vsel %vm1341, %v2545, 0
      %v2621 = vsel %vm1341, %v2546, 0
      %v2624 = vsel %vm1341, %v2547, 0
      %v2627 = vsel %vm1341, %v2548, 0
      %v2630 = vsel %vm1341, %v2549, 0
      %v2633 = vsel %vm1341, %v2550, 0
      %v2636 = vsel %vm1341, %v2551, 0
      %v2639 = vsel %vm1341, %v2552, 0
      %v2642 = vsel %vm1341, %v2553, 0
      %v2645 = vsel %vm1341, %v2554, 0
      %v2648 = vsel %vm1341, %v2555, 0
      %v2651 = vsel %vm1341, %v2556, 0
      %v2654 = vsel %vm1341, %v2557, 0
      %2656 = vmatprep.subr.mxu0 0.0
      %2657 = vmatpush1.msra.mxu0 0.0
      %2658 = vmatprep.subr.mxu0 0.0
      %2659 = vmatpush1.msra.mxu0 0.0
      %2660 = vmatprep.subr.mxu0 0.0
      %2661 = vmatpush1.msra.mxu0 0.0
      %2662 = vmatprep.subr.mxu0 0.0
      %2663 = vmatpush1.msra.mxu0 0.0
      %2664 = vmatprep.subr.mxu0 0.0
      %2665 = vmatpush1.msra.mxu0 0.0
      %2666 = vmatprep.subr.mxu0 0.0
      %2667 = vmatpush1.msra.mxu0 0.0
      %2668 = vmatprep.subr.mxu0 0.0
      %2669 = vmatpush1.msra.mxu0 0.0
      %2670 = vmatprep.subr.mxu0 0.0
      %2671 = vmatpush1.msra.mxu0 0.0
      %2672 = vmatprep.subr.mxu0 0.0
      %2673 = vmatpush1.msra.mxu0 0.0
      %2674 = vmatprep.subr.mxu0 0.0
      %2675 = vmatpush1.msra.mxu0 0.0
      %2676 = vmatprep.subr.mxu0 0.0
      %2677 = vmatpush1.msra.mxu0 0.0
      %2678 = vmatprep.subr.mxu0 0.0
      %2679 = vmatpush1.msra.mxu0 0.0
      %2680 = vmatprep.subr.mxu0 0.0
      %2681 = vmatpush1.msra.mxu0 0.0
      %2682 = vmatprep.subr.mxu0 0.0
      %2683 = vmatpush1.msra.mxu0 0.0
      %2684 = vmatprep.subr.mxu0 0.0
      %2685 = vmatpush1.msra.mxu0 0.0
      %2686 = vmatprep.subr.mxu0 0.0
      %2687 = vmatpush1.msra.mxu0 %v2559
      %2688 = vmatprep.subr.mxu0 0.0
      %2689 = vmatpush2.msra.mxu0 0.0
      %2690 = vmatprep.subr.mxu0 0.0
      %2691 = vmatpush2.msra.mxu0 0.0
      %2692 = vmatprep.subr.mxu0 0.0
      %2693 = vmatpush2.msra.mxu0 0.0
      %2694 = vmatprep.subr.mxu0 0.0
      %2695 = vmatpush2.msra.mxu0 0.0
      %2696 = vmatprep.subr.mxu0 0.0
      %2697 = vmatpush2.msra.mxu0 0.0
      %2698 = vmatprep.subr.mxu0 0.0
      %2699 = vmatpush2.msra.mxu0 0.0
      %2700 = vmatprep.subr.mxu0 0.0
      %2701 = vmatpush2.msra.mxu0 0.0
      %2702 = vmatprep.subr.mxu0 0.0
      %2703 = vmatpush2.msra.mxu0 0.0
      %2704 = vmatprep.subr.mxu0 0.0
      %2705 = vmatpush2.msra.mxu0 0.0
      %2706 = vmatprep.subr.mxu0 0.0
      %2707 = vmatpush2.msra.mxu0 0.0
      %2708 = vmatprep.subr.mxu0 0.0
      %2709 = vmatpush2.msra.mxu0 0.0
      %2710 = vmatprep.subr.mxu0 0.0
      %2711 = vmatpush2.msra.mxu0 0.0
      %2712 = vmatprep.subr.mxu0 0.0
      %2713 = vmatpush2.msra.mxu0 0.0
      %2714 = vmatprep.subr.mxu0 0.0
      %2715 = vmatpush2.msra.mxu0 0.0
      %2716 = vmatprep.subr.mxu0 0.0
      %2717 = vmatpush2.msra.mxu0 0.0
      %2718 = vmatprep.subr.mxu0 0.0
      %2719 = vmatpush2.msra.mxu0 0.0
      %2720 = vmatprep.mubr.f32.mxu0 0.0
      %2721 = vmatmul.mubr.f32.gmra.mxu0 %v2561
      %v2722 = vpop.f32.mrf.mxu0
      %v2723 = vadd.f32 0.0, %v2722
      %v2724 = vpop.f32.mrf.mxu0
      %2725 = vmatprep.mubr.f32.mxu0 0.0
      %2726 = vmatmul.mubr.f32.gmra.mxu0 %v2564
      %v2727 = vpop.f32.mrf.mxu0
      %v2728 = vadd.f32 0.0, %v2727
      %v2729 = vpop.f32.mrf.mxu0
      %2730 = vmatprep.mubr.f32.mxu0 0.0
      %2731 = vmatmul.mubr.f32.gmra.mxu0 %v2567
      %v2732 = vpop.f32.mrf.mxu0
      %v2733 = vadd.f32 0.0, %v2732
      %v2734 = vpop.f32.mrf.mxu0
      %2735 = vmatprep.mubr.f32.mxu0 0.0
      %2736 = vmatmul.mubr.f32.gmra.mxu0 %v2570
      %v2737 = vpop.f32.mrf.mxu0
      %v2738 = vadd.f32 0.0, %v2737
      %v2739 = vpop.f32.mrf.mxu0
      %2740 = vmatprep.mubr.f32.mxu0 0.0
      %2741 = vmatmul.mubr.f32.gmra.mxu0 %v2573
      %v2742 = vpop.f32.mrf.mxu0
      %v2743 = vadd.f32 0.0, %v2742
      %v2744 = vpop.f32.mrf.mxu0
      %2745 = vmatprep.mubr.f32.mxu0 0.0
      %2746 = vmatmul.mubr.f32.gmra.mxu0 %v2576
      %v2747 = vpop.f32.mrf.mxu0
      %v2748 = vadd.f32 0.0, %v2747
      %v2749 = vpop.f32.mrf.mxu0
      %2750 = vmatprep.mubr.f32.mxu0 0.0
      %2751 = vmatmul.mubr.f32.gmra.mxu0 %v2579
      %v2752 = vpop.f32.mrf.mxu0
      %v2753 = vadd.f32 0.0, %v2752
      %v2754 = vpop.f32.mrf.mxu0
      %2755 = vmatprep.mubr.f32.mxu0 0.0
      %2756 = vmatmul.mubr.f32.gmra.mxu0 %v2582
      %v2757 = vpop.f32.mrf.mxu0
      %v2758 = vadd.f32 0.0, %v2757
      %v2759 = vpop.f32.mrf.mxu0
      %2760 = vmatprep.mubr.f32.mxu0 0.0
      %2761 = vmatmul.mubr.f32.gmra.mxu0 %v2585
      %v2762 = vpop.f32.mrf.mxu0
      %v2763 = vadd.f32 0.0, %v2762
      %v2764 = vpop.f32.mrf.mxu0
      %2765 = vmatprep.mubr.f32.mxu0 0.0
      %2766 = vmatmul.mubr.f32.gmra.mxu0 %v2588
      %v2767 = vpop.f32.mrf.mxu0
      %v2768 = vadd.f32 0.0, %v2767
      %v2769 = vpop.f32.mrf.mxu0
      %2770 = vmatprep.mubr.f32.mxu0 0.0
      %2771 = vmatmul.mubr.f32.gmra.mxu0 %v2591
      %v2772 = vpop.f32.mrf.mxu0
      %v2773 = vadd.f32 0.0, %v2772
      %v2774 = vpop.f32.mrf.mxu0
      %2775 = vmatprep.mubr.f32.mxu0 0.0
      %2776 = vmatmul.mubr.f32.gmra.mxu0 %v2594
      %v2777 = vpop.f32.mrf.mxu0
      %v2778 = vadd.f32 0.0, %v2777
      %v2779 = vpop.f32.mrf.mxu0
      %2780 = vmatprep.mubr.f32.mxu0 0.0
      %2781 = vmatmul.mubr.f32.gmra.mxu0 %v2597
      %v2782 = vpop.f32.mrf.mxu0
      %v2783 = vadd.f32 0.0, %v2782
      %v2784 = vpop.f32.mrf.mxu0
      %2785 = vmatprep.mubr.f32.mxu0 0.0
      %2786 = vmatmul.mubr.f32.gmra.mxu0 %v2600
      %v2787 = vpop.f32.mrf.mxu0
      %v2788 = vadd.f32 0.0, %v2787
      %v2789 = vpop.f32.mrf.mxu0
      %2790 = vmatprep.mubr.f32.mxu0 0.0
      %2791 = vmatmul.mubr.f32.gmra.mxu0 %v2603
      %v2792 = vpop.f32.mrf.mxu0
      %v2793 = vadd.f32 0.0, %v2792
      %v2794 = vpop.f32.mrf.mxu0
      %2795 = vmatprep.mubr.f32.mxu0 0.0
      %2796 = vmatmul.mubr.f32.gmra.mxu0 %v2606
      %v2797 = vpop.f32.mrf.mxu0
      %v2798 = vadd.f32 0.0, %v2797
      %v2799 = vpop.f32.mrf.mxu0
      %2800 = vmatprep.mubr.f32.mxu0 0.0
      %2801 = vmatmul.mubr.f32.gmra.mxu0 %v2609
      %v2802 = vpop.f32.mrf.mxu0
      %v2803 = vadd.f32 0.0, %v2802
      %v2804 = vpop.f32.mrf.mxu0
      %2805 = vmatprep.mubr.f32.mxu0 0.0
      %2806 = vmatmul.mubr.f32.gmra.mxu0 %v2612
      %v2807 = vpop.f32.mrf.mxu0
      %v2808 = vadd.f32 0.0, %v2807
      %v2809 = vpop.f32.mrf.mxu0
      %2810 = vmatprep.mubr.f32.mxu0 0.0
      %2811 = vmatmul.mubr.f32.gmra.mxu0 %v2615
      %v2812 = vpop.f32.mrf.mxu0
      %v2813 = vadd.f32 0.0, %v2812
      %v2814 = vpop.f32.mrf.mxu0
      %2815 = vmatprep.mubr.f32.mxu0 0.0
      %2816 = vmatmul.mubr.f32.gmra.mxu0 %v2618
      %v2817 = vpop.f32.mrf.mxu0
      %v2818 = vadd.f32 0.0, %v2817
      %v2819 = vpop.f32.mrf.mxu0
      %2820 = vmatprep.mubr.f32.mxu0 0.0
      %2821 = vmatmul.mubr.f32.gmra.mxu0 %v2621
      %v2822 = vpop.f32.mrf.mxu0
      %v2823 = vadd.f32 0.0, %v2822
      %v2824 = vpop.f32.mrf.mxu0
      %2825 = vmatprep.mubr.f32.mxu0 0.0
      %2826 = vmatmul.mubr.f32.gmra.mxu0 %v2624
      %v2827 = vpop.f32.mrf.mxu0
      %v2828 = vadd.f32 0.0, %v2827
      %v2829 = vpop.f32.mrf.mxu0
      %2830 = vmatprep.mubr.f32.mxu0 0.0
      %2831 = vmatmul.mubr.f32.gmra.mxu0 %v2627
      %v2832 = vpop.f32.mrf.mxu0
      %v2833 = vadd.f32 0.0, %v2832
      %v2834 = vpop.f32.mrf.mxu0
      %2835 = vmatprep.mubr.f32.mxu0 0.0
      %2836 = vmatmul.mubr.f32.gmra.mxu0 %v2630
      %v2837 = vpop.f32.mrf.mxu0
      %v2838 = vadd.f32 0.0, %v2837
      %v2839 = vpop.f32.mrf.mxu0
      %2840 = vmatprep.mubr.f32.mxu0 0.0
      %2841 = vmatmul.mubr.f32.gmra.mxu0 %v2633
      %v2842 = vpop.f32.mrf.mxu0
      %v2843 = vadd.f32 0.0, %v2842
      %v2844 = vpop.f32.mrf.mxu0
      %2845 = vmatprep.mubr.f32.mxu0 0.0
      %2846 = vmatmul.mubr.f32.gmra.mxu0 %v2636
      %v2847 = vpop.f32.mrf.mxu0
      %v2848 = vadd.f32 0.0, %v2847
      %v2849 = vpop.f32.mrf.mxu0
      %2850 = vmatprep.mubr.f32.mxu0 0.0
      %2851 = vmatmul.mubr.f32.gmra.mxu0 %v2639
      %v2852 = vpop.f32.mrf.mxu0
      %v2853 = vadd.f32 0.0, %v2852
      %v2854 = vpop.f32.mrf.mxu0
      %2855 = vmatprep.mubr.f32.mxu0 0.0
      %2856 = vmatmul.mubr.f32.gmra.mxu0 %v2642
      %v2857 = vpop.f32.mrf.mxu0
      %v2858 = vadd.f32 0.0, %v2857
      %v2859 = vpop.f32.mrf.mxu0
      %2860 = vmatprep.mubr.f32.mxu0 0.0
      %2861 = vmatmul.mubr.f32.gmra.mxu0 %v2645
      %v2862 = vpop.f32.mrf.mxu0
      %v2863 = vadd.f32 0.0, %v2862
      %v2864 = vpop.f32.mrf.mxu0
      %2865 = vmatprep.mubr.f32.mxu0 0.0
      %2866 = vmatmul.mubr.f32.gmra.mxu0 %v2648
      %v2867 = vpop.f32.mrf.mxu0
      %v2868 = vadd.f32 0.0, %v2867
      %v2869 = vpop.f32.mrf.mxu0
      %2870 = vmatprep.mubr.f32.mxu0 0.0
      %2871 = vmatmul.mubr.f32.gmra.mxu0 %v2651
      %v2872 = vpop.f32.mrf.mxu0
      %v2873 = vadd.f32 0.0, %v2872
      %v2874 = vpop.f32.mrf.mxu0
      %2875 = vmatprep.mubr.f32.mxu0 0.0
      %2876 = vmatmul.mubr.f32.gmra.mxu0 %v2654
      %v2877 = vpop.f32.mrf.mxu0
      %v2878 = vadd.f32 0.0, %v2877
      %v2879 = vpop.f32.mrf.mxu0
      %2880 = vdwg.mxu0
      %v2881 = vadd.f32 %v2487, %v2723
      %v2882 = vadd.f32 %v2488, %v2728
      %v2883 = vadd.f32 %v2489, %v2733
      %v2884 = vadd.f32 %v2490, %v2738
      %v2885 = vadd.f32 %v2491, %v2743
      %v2886 = vadd.f32 %v2492, %v2748
      %v2887 = vadd.f32 %v2493, %v2753
      %v2888 = vadd.f32 %v2494, %v2758
      %v2889 = vadd.f32 %v2495, %v2763
      %v2890 = vadd.f32 %v2496, %v2768
      %v2891 = vadd.f32 %v2497, %v2773
      %v2892 = vadd.f32 %v2498, %v2778
      %v2893 = vadd.f32 %v2499, %v2783
      %v2894 = vadd.f32 %v2500, %v2788
      %v2895 = vadd.f32 %v2501, %v2793
      %v2896 = vadd.f32 %v2502, %v2798
      %v2897 = vadd.f32 %v2503, %v2803
      %v2898 = vadd.f32 %v2504, %v2808
      %v2899 = vadd.f32 %v2505, %v2813
      %v2900 = vadd.f32 %v2506, %v2818
      %v2901 = vadd.f32 %v2507, %v2823
      %v2902 = vadd.f32 %v2508, %v2828
      %v2903 = vadd.f32 %v2509, %v2833
      %v2904 = vadd.f32 %v2510, %v2838
      %v2905 = vadd.f32 %v2511, %v2843
      %v2906 = vadd.f32 %v2512, %v2848
      %v2907 = vadd.f32 %v2513, %v2853
      %v2908 = vadd.f32 %v2514, %v2858
      %v2909 = vadd.f32 %v2515, %v2863
      %v2910 = vadd.f32 %v2516, %v2868
      %v2911 = vadd.f32 %v2517, %v2873
      %v2912 = vadd.f32 %v2518, %v2878
      %s2913 = scalar_lea.vmem %s3, 32
      %v2914 = vld [vmem:[%s2913] sm:$0xff]
      %v2915 = vsel %vm1341, %v672, 0
      %v2917 = vsel %vm1341, %v673, 0
      %2919 = vmatprep.subr.mxu0 0.0
      %2920 = vmatpush1.msra.mxu0 0.0
      %2921 = vmatprep.subr.mxu0 0.0
      %2922 = vmatpush1.msra.mxu0 0.0
      %2923 = vmatprep.subr.mxu0 0.0
      %2924 = vmatpush1.msra.mxu0 0.0
      %2925 = vmatprep.subr.mxu0 0.0
      %2926 = vmatpush1.msra.mxu0 0.0
      %2927 = vmatprep.subr.mxu0 0.0
      %2928 = vmatpush1.msra.mxu0 0.0
      %2929 = vmatprep.subr.mxu0 0.0
      %2930 = vmatpush1.msra.mxu0 0.0
      %2931 = vmatprep.subr.mxu0 0.0
      %2932 = vmatpush1.msra.mxu0 0.0
      %2933 = vmatprep.subr.mxu0 0.0
      %2934 = vmatpush1.msra.mxu0 0.0
      %2935 = vmatprep.subr.mxu0 0.0
      %2936 = vmatpush1.msra.mxu0 0.0
      %2937 = vmatprep.subr.mxu0 0.0
      %2938 = vmatpush1.msra.mxu0 0.0
      %2939 = vmatprep.subr.mxu0 0.0
      %2940 = vmatpush1.msra.mxu0 0.0
      %2941 = vmatprep.subr.mxu0 0.0
      %2942 = vmatpush1.msra.mxu0 0.0
      %2943 = vmatprep.subr.mxu0 0.0
      %2944 = vmatpush1.msra.mxu0 0.0
      %2945 = vmatprep.subr.mxu0 0.0
      %2946 = vmatpush1.msra.mxu0 0.0
      %2947 = vmatprep.subr.mxu0 0.0
      %2948 = vmatpush1.msra.mxu0 0.0
      %2949 = vmatprep.subr.mxu0 0.0
      %2950 = vmatpush1.msra.mxu0 %v2914
      %2951 = vmatprep.subr.mxu0 0.0
      %2952 = vmatpush2.msra.mxu0 0.0
      %2953 = vmatprep.subr.mxu0 0.0
      %2954 = vmatpush2.msra.mxu0 0.0
      %2955 = vmatprep.subr.mxu0 0.0
      %2956 = vmatpush2.msra.mxu0 0.0
      %2957 = vmatprep.subr.mxu0 0.0
      %2958 = vmatpush2.msra.mxu0 0.0
      %2959 = vmatprep.subr.mxu0 0.0
      %2960 = vmatpush2.msra.mxu0 0.0
      %2961 = vmatprep.subr.mxu0 0.0
      %2962 = vmatpush2.msra.mxu0 0.0
      %2963 = vmatprep.subr.mxu0 0.0
      %2964 = vmatpush2.msra.mxu0 0.0
      %2965 = vmatprep.subr.mxu0 0.0
      %2966 = vmatpush2.msra.mxu0 0.0
      %2967 = vmatprep.subr.mxu0 0.0
      %2968 = vmatpush2.msra.mxu0 0.0
      %2969 = vmatprep.subr.mxu0 0.0
      %2970 = vmatpush2.msra.mxu0 0.0
      %2971 = vmatprep.subr.mxu0 0.0
      %2972 = vmatpush2.msra.mxu0 0.0
      %2973 = vmatprep.subr.mxu0 0.0
      %2974 = vmatpush2.msra.mxu0 0.0
      %2975 = vmatprep.subr.mxu0 0.0
      %2976 = vmatpush2.msra.mxu0 0.0
      %2977 = vmatprep.subr.mxu0 0.0
      %2978 = vmatpush2.msra.mxu0 0.0
      %2979 = vmatprep.subr.mxu0 0.0
      %2980 = vmatpush2.msra.mxu0 0.0
      %2981 = vmatprep.subr.mxu0 0.0
      %2982 = vmatpush2.msra.mxu0 0.0
      %2983 = vmatprep.mubr.f32.mxu0 0.0
      %2984 = vmatmul.mubr.f32.gmra.mxu0 %v1345
      %v2985 = vpop.f32.mrf.mxu0
      %v2986 = vadd.f32 0.0, %v2985
      %v2987 = vpop.f32.mrf.mxu0
      %2988 = vmatprep.mubr.f32.mxu0 0.0
      %2989 = vmatmul.mubr.f32.gmra.mxu0 %v1347
      %v2990 = vpop.f32.mrf.mxu0
      %v2991 = vadd.f32 0.0, %v2990
      %v2992 = vpop.f32.mrf.mxu0
      %2993 = vmatprep.mubr.f32.mxu0 0.0
      %2994 = vmatmul.mubr.f32.gmra.mxu0 %v1349
      %v2995 = vpop.f32.mrf.mxu0
      %v2996 = vadd.f32 0.0, %v2995
      %v2997 = vpop.f32.mrf.mxu0
      %2998 = vmatprep.mubr.f32.mxu0 0.0
      %2999 = vmatmul.mubr.f32.gmra.mxu0 %v1351
      %v3000 = vpop.f32.mrf.mxu0
      %v3001 = vadd.f32 0.0, %v3000
      %v3002 = vpop.f32.mrf.mxu0
      %3003 = vmatprep.mubr.f32.mxu0 0.0
      %3004 = vmatmul.mubr.f32.gmra.mxu0 %v1353
      %v3005 = vpop.f32.mrf.mxu0
      %v3006 = vadd.f32 0.0, %v3005
      %v3007 = vpop.f32.mrf.mxu0
      %3008 = vmatprep.mubr.f32.mxu0 0.0
      %3009 = vmatmul.mubr.f32.gmra.mxu0 %v1355
      %v3010 = vpop.f32.mrf.mxu0
      %v3011 = vadd.f32 0.0, %v3010
      %v3012 = vpop.f32.mrf.mxu0
      %3013 = vmatprep.mubr.f32.mxu0 0.0
      %3014 = vmatmul.mubr.f32.gmra.mxu0 %v1357
      %v3015 = vpop.f32.mrf.mxu0
      %v3016 = vadd.f32 0.0, %v3015
      %v3017 = vpop.f32.mrf.mxu0
      %3018 = vmatprep.mubr.f32.mxu0 0.0
      %3019 = vmatmul.mubr.f32.gmra.mxu0 %v1359
      %v3020 = vpop.f32.mrf.mxu0
      %v3021 = vadd.f32 0.0, %v3020
      %v3022 = vpop.f32.mrf.mxu0
      %3023 = vmatprep.mubr.f32.mxu0 0.0
      %3024 = vmatmul.mubr.f32.gmra.mxu0 %v1361
      %v3025 = vpop.f32.mrf.mxu0
      %v3026 = vadd.f32 0.0, %v3025
      %v3027 = vpop.f32.mrf.mxu0
      %3028 = vmatprep.mubr.f32.mxu0 0.0
      %3029 = vmatmul.mubr.f32.gmra.mxu0 %v1363
      %v3030 = vpop.f32.mrf.mxu0
      %v3031 = vadd.f32 0.0, %v3030
      %v3032 = vpop.f32.mrf.mxu0
      %3033 = vmatprep.mubr.f32.mxu0 0.0
      %3034 = vmatmul.mubr.f32.gmra.mxu0 %v1365
      %v3035 = vpop.f32.mrf.mxu0
      %v3036 = vadd.f32 0.0, %v3035
      %v3037 = vpop.f32.mrf.mxu0
      %3038 = vmatprep.mubr.f32.mxu0 0.0
      %3039 = vmatmul.mubr.f32.gmra.mxu0 %v1367
      %v3040 = vpop.f32.mrf.mxu0
      %v3041 = vadd.f32 0.0, %v3040
      %v3042 = vpop.f32.mrf.mxu0
      %3043 = vmatprep.mubr.f32.mxu0 0.0
      %3044 = vmatmul.mubr.f32.gmra.mxu0 %v1369
      %v3045 = vpop.f32.mrf.mxu0
      %v3046 = vadd.f32 0.0, %v3045
      %v3047 = vpop.f32.mrf.mxu0
      %3048 = vmatprep.mubr.f32.mxu0 0.0
      %3049 = vmatmul.mubr.f32.gmra.mxu0 %v1371
      %v3050 = vpop.f32.mrf.mxu0
      %v3051 = vadd.f32 0.0, %v3050
      %v3052 = vpop.f32.mrf.mxu0
      %3053 = vmatprep.mubr.f32.mxu0 0.0
      %3054 = vmatmul.mubr.f32.gmra.mxu0 %v1373
      %v3055 = vpop.f32.mrf.mxu0
      %v3056 = vadd.f32 0.0, %v3055
      %v3057 = vpop.f32.mrf.mxu0
      %3058 = vmatprep.mubr.f32.mxu0 0.0
      %3059 = vmatmul.mubr.f32.gmra.mxu0 %v1375
      %v3060 = vpop.f32.mrf.mxu0
      %v3061 = vadd.f32 0.0, %v3060
      %v3062 = vpop.f32.mrf.mxu0
      %3063 = vmatprep.mubr.f32.mxu0 0.0
      %3064 = vmatmul.mubr.f32.gmra.mxu0 %v1377
      %v3065 = vpop.f32.mrf.mxu0
      %v3066 = vadd.f32 0.0, %v3065
      %v3067 = vpop.f32.mrf.mxu0
      %3068 = vmatprep.mubr.f32.mxu0 0.0
      %3069 = vmatmul.mubr.f32.gmra.mxu0 %v1379
      %v3070 = vpop.f32.mrf.mxu0
      %v3071 = vadd.f32 0.0, %v3070
      %v3072 = vpop.f32.mrf.mxu0
      %3073 = vmatprep.mubr.f32.mxu0 0.0
      %3074 = vmatmul.mubr.f32.gmra.mxu0 %v1381
      %v3075 = vpop.f32.mrf.mxu0
      %v3076 = vadd.f32 0.0, %v3075
      %v3077 = vpop.f32.mrf.mxu0
      %3078 = vmatprep.mubr.f32.mxu0 0.0
      %3079 = vmatmul.mubr.f32.gmra.mxu0 %v1383
      %v3080 = vpop.f32.mrf.mxu0
      %v3081 = vadd.f32 0.0, %v3080
      %v3082 = vpop.f32.mrf.mxu0
      %3083 = vmatprep.mubr.f32.mxu0 0.0
      %3084 = vmatmul.mubr.f32.gmra.mxu0 %v1385
      %v3085 = vpop.f32.mrf.mxu0
      %v3086 = vadd.f32 0.0, %v3085
      %v3087 = vpop.f32.mrf.mxu0
      %3088 = vmatprep.mubr.f32.mxu0 0.0
      %3089 = vmatmul.mubr.f32.gmra.mxu0 %v1387
      %v3090 = vpop.f32.mrf.mxu0
      %v3091 = vadd.f32 0.0, %v3090
      %v3092 = vpop.f32.mrf.mxu0
      %3093 = vmatprep.mubr.f32.mxu0 0.0
      %3094 = vmatmul.mubr.f32.gmra.mxu0 %v1389
      %v3095 = vpop.f32.mrf.mxu0
      %v3096 = vadd.f32 0.0, %v3095
      %v3097 = vpop.f32.mrf.mxu0
      %3098 = vmatprep.mubr.f32.mxu0 0.0
      %3099 = vmatmul.mubr.f32.gmra.mxu0 %v1391
      %v3100 = vpop.f32.mrf.mxu0
      %v3101 = vadd.f32 0.0, %v3100
      %v3102 = vpop.f32.mrf.mxu0
      %3103 = vmatprep.mubr.f32.mxu0 0.0
      %3104 = vmatmul.mubr.f32.gmra.mxu0 %v1393
      %v3105 = vpop.f32.mrf.mxu0
      %v3106 = vadd.f32 0.0, %v3105
      %v3107 = vpop.f32.mrf.mxu0
      %3108 = vmatprep.mubr.f32.mxu0 0.0
      %3109 = vmatmul.mubr.f32.gmra.mxu0 %v1395
      %v3110 = vpop.f32.mrf.mxu0
      %v3111 = vadd.f32 0.0, %v3110
      %v3112 = vpop.f32.mrf.mxu0
      %3113 = vmatprep.mubr.f32.mxu0 0.0
      %3114 = vmatmul.mubr.f32.gmra.mxu0 %v1397
      %v3115 = vpop.f32.mrf.mxu0
      %v3116 = vadd.f32 0.0, %v3115
      %v3117 = vpop.f32.mrf.mxu0
      %3118 = vmatprep.mubr.f32.mxu0 0.0
      %3119 = vmatmul.mubr.f32.gmra.mxu0 %v1399
      %v3120 = vpop.f32.mrf.mxu0
      %v3121 = vadd.f32 0.0, %v3120
      %v3122 = vpop.f32.mrf.mxu0
      %3123 = vmatprep.mubr.f32.mxu0 0.0
      %3124 = vmatmul.mubr.f32.gmra.mxu0 %v1401
      %v3125 = vpop.f32.mrf.mxu0
      %v3126 = vadd.f32 0.0, %v3125
      %v3127 = vpop.f32.mrf.mxu0
      %3128 = vmatprep.mubr.f32.mxu0 0.0
      %3129 = vmatmul.mubr.f32.gmra.mxu0 %v1403
      %v3130 = vpop.f32.mrf.mxu0
      %v3131 = vadd.f32 0.0, %v3130
      %v3132 = vpop.f32.mrf.mxu0
      %3133 = vmatprep.mubr.f32.mxu0 0.0
      %3134 = vmatmul.mubr.f32.gmra.mxu0 %v2915
      %v3135 = vpop.f32.mrf.mxu0
      %v3136 = vadd.f32 0.0, %v3135
      %v3137 = vpop.f32.mrf.mxu0
      %3138 = vmatprep.mubr.f32.mxu0 0.0
      %3139 = vmatmul.mubr.f32.gmra.mxu0 %v2917
      %v3140 = vpop.f32.mrf.mxu0
      %v3141 = vadd.f32 0.0, %v3140
      %v3142 = vpop.f32.mrf.mxu0
      %3143 = vdwg.mxu0
      %v3144 = vadd.f32 %v2881, %v2986
      %v3145 = vadd.f32 %v2882, %v2991
      %v3146 = vadd.f32 %v2883, %v2996
      %v3147 = vadd.f32 %v2884, %v3001
      %v3148 = vadd.f32 %v2885, %v3006
      %v3149 = vadd.f32 %v2886, %v3011
      %v3150 = vadd.f32 %v2887, %v3016
      %v3151 = vadd.f32 %v2888, %v3021
      %v3152 = vadd.f32 %v2889, %v3026
      %v3153 = vadd.f32 %v2890, %v3031
      %v3154 = vadd.f32 %v2891, %v3036
      %v3155 = vadd.f32 %v2892, %v3041
      %v3156 = vadd.f32 %v2893, %v3046
      %v3157 = vadd.f32 %v2894, %v3051
      %v3158 = vadd.f32 %v2895, %v3056
      %v3159 = vadd.f32 %v2896, %v3061
      %v3160 = vadd.f32 %v2897, %v3066
      %v3161 = vadd.f32 %v2898, %v3071
      %v3162 = vadd.f32 %v2899, %v3076
      %v3163 = vadd.f32 %v2900, %v3081
      %v3164 = vadd.f32 %v2901, %v3086
      %v3165 = vadd.f32 %v2902, %v3091
      %v3166 = vadd.f32 %v2903, %v3096
      %v3167 = vadd.f32 %v2904, %v3101
      %v3168 = vadd.f32 %v2905, %v3106
      %v3169 = vadd.f32 %v2906, %v3111
      %v3170 = vadd.f32 %v2907, %v3116
      %v3171 = vadd.f32 %v2908, %v3121
      %v3172 = vadd.f32 %v2909, %v3126
      %v3173 = vadd.f32 %v2910, %v3131
      %v3174 = vadd.f32 %v2911, %v3136
      %v3175 = vadd.f32 %v2912, %v3141
      %v3176 = vrot.slane %v673, 1
      %v3177 = vsel %vm1946, %v2006, %v3176
      %v3180 = vsel %vm1946, %v3176, 0.0
      %v3181 = vsel %vm2104, 0.0, %v1949
      %v3182 = vsel %vm2105, 0.0, %v1951
      %v3183 = vsel %vm2106, 0.0, %v1953
      %v3184 = vsel %vm2107, 0.0, %v1955
      %v3185 = vsel %vm2108, 0.0, %v1957
      %v3186 = vsel %vm2109, 0.0, %v1959
      %v3187 = vsel %vm2110, 0.0, %v1961
      %v3188 = vsel %vm2111, 0.0, %v1963
      %v3189 = vsel %vm2112, 0.0, %v1965
      %v3190 = vsel %vm2113, 0.0, %v1967
      %v3191 = vsel %vm2114, 0.0, %v1969
      %v3192 = vsel %vm2115, 0.0, %v1971
      %v3193 = vsel %vm2116, 0.0, %v1973
      %v3194 = vsel %vm2117, 0.0, %v1975
      %v3195 = vsel %vm2118, 0.0, %v1977
      %v3196 = vsel %vm2119, 0.0, %v1979
      %v3197 = vsel %vm2120, 0.0, %v1981
      %v3198 = vsel %vm2121, 0.0, %v1983
      %v3199 = vsel %vm2122, 0.0, %v1985
      %v3200 = vsel %vm2123, 0.0, %v1987
      %v3201 = vsel %vm2124, 0.0, %v1989
      %v3202 = vsel %vm2125, 0.0, %v1991
      %v3203 = vsel %vm2126, 0.0, %v1993
      %v3204 = vsel %vm2127, 0.0, %v1995
      %v3205 = vsel %vm2128, 0.0, %v1997
      %v3206 = vsel %vm2129, 0.0, %v1999
      %v3207 = vsel %vm2130, 0.0, %v2001
      %v3208 = vsel %vm2131, 0.0, %v2003
      %v3209 = vsel %vm2132, 0.0, %v2005
      %v3210 = vsel %vm2133, 0.0, %v2007
      %v3211 = vsel %vm2134, 0.0, %v3177
      %v3212 = vsel %vm2135, 0.0, %v3180
      %s3213 = scalar_lea.vmem %s3, 40
      %v3214 = vld [vmem:[%s3213] sm:$0xff]
      %v3216 = vsel %vm1341, %v3181, 0
      %v3219 = vsel %vm1341, %v3182, 0
      %v3222 = vsel %vm1341, %v3183, 0
      %v3225 = vsel %vm1341, %v3184, 0
      %v3228 = vsel %vm1341, %v3185, 0
      %v3231 = vsel %vm1341, %v3186, 0
      %v3234 = vsel %vm1341, %v3187, 0
      %v3237 = vsel %vm1341, %v3188, 0
      %v3240 = vsel %vm1341, %v3189, 0
      %v3243 = vsel %vm1341, %v3190, 0
      %v3246 = vsel %vm1341, %v3191, 0
      %v3249 = vsel %vm1341, %v3192, 0
      %v3252 = vsel %vm1341, %v3193, 0
      %v3255 = vsel %vm1341, %v3194, 0
      %v3258 = vsel %vm1341, %v3195, 0
      %v3261 = vsel %vm1341, %v3196, 0
      %v3264 = vsel %vm1341, %v3197, 0
      %v3267 = vsel %vm1341, %v3198, 0
      %v3270 = vsel %vm1341, %v3199, 0
      %v3273 = vsel %vm1341, %v3200, 0
      %v3276 = vsel %vm1341, %v3201, 0
      %v3279 = vsel %vm1341, %v3202, 0
      %v3282 = vsel %vm1341, %v3203, 0
      %v3285 = vsel %vm1341, %v3204, 0
      %v3288 = vsel %vm1341, %v3205, 0
      %v3291 = vsel %vm1341, %v3206, 0
      %v3294 = vsel %vm1341, %v3207, 0
      %v3297 = vsel %vm1341, %v3208, 0
      %v3300 = vsel %vm1341, %v3209, 0
      %v3303 = vsel %vm1341, %v3210, 0
      %v3306 = vsel %vm1341, %v3211, 0
      %v3309 = vsel %vm1341, %v3212, 0
      %3311 = vmatprep.subr.mxu0 0.0
      %3312 = vmatpush1.msra.mxu0 0.0
      %3313 = vmatprep.subr.mxu0 0.0
      %3314 = vmatpush1.msra.mxu0 0.0
      %3315 = vmatprep.subr.mxu0 0.0
      %3316 = vmatpush1.msra.mxu0 0.0
      %3317 = vmatprep.subr.mxu0 0.0
      %3318 = vmatpush1.msra.mxu0 0.0
      %3319 = vmatprep.subr.mxu0 0.0
      %3320 = vmatpush1.msra.mxu0 0.0
      %3321 = vmatprep.subr.mxu0 0.0
      %3322 = vmatpush1.msra.mxu0 0.0
      %3323 = vmatprep.subr.mxu0 0.0
      %3324 = vmatpush1.msra.mxu0 0.0
      %3325 = vmatprep.subr.mxu0 0.0
      %3326 = vmatpush1.msra.mxu0 0.0
      %3327 = vmatprep.subr.mxu0 0.0
      %3328 = vmatpush1.msra.mxu0 0.0
      %3329 = vmatprep.subr.mxu0 0.0
      %3330 = vmatpush1.msra.mxu0 0.0
      %3331 = vmatprep.subr.mxu0 0.0
      %3332 = vmatpush1.msra.mxu0 0.0
      %3333 = vmatprep.subr.mxu0 0.0
      %3334 = vmatpush1.msra.mxu0 0.0
      %3335 = vmatprep.subr.mxu0 0.0
      %3336 = vmatpush1.msra.mxu0 0.0
      %3337 = vmatprep.subr.mxu0 0.0
      %3338 = vmatpush1.msra.mxu0 0.0
      %3339 = vmatprep.subr.mxu0 0.0
      %3340 = vmatpush1.msra.mxu0 0.0
      %3341 = vmatprep.subr.mxu0 0.0
      %3342 = vmatpush1.msra.mxu0 %v3214
      %3343 = vmatprep.subr.mxu0 0.0
      %3344 = vmatpush2.msra.mxu0 0.0
      %3345 = vmatprep.subr.mxu0 0.0
      %3346 = vmatpush2.msra.mxu0 0.0
      %3347 = vmatprep.subr.mxu0 0.0
      %3348 = vmatpush2.msra.mxu0 0.0
      %3349 = vmatprep.subr.mxu0 0.0
      %3350 = vmatpush2.msra.mxu0 0.0
      %3351 = vmatprep.subr.mxu0 0.0
      %3352 = vmatpush2.msra.mxu0 0.0
      %3353 = vmatprep.subr.mxu0 0.0
      %3354 = vmatpush2.msra.mxu0 0.0
      %3355 = vmatprep.subr.mxu0 0.0
      %3356 = vmatpush2.msra.mxu0 0.0
      %3357 = vmatprep.subr.mxu0 0.0
      %3358 = vmatpush2.msra.mxu0 0.0
      %3359 = vmatprep.subr.mxu0 0.0
      %3360 = vmatpush2.msra.mxu0 0.0
      %3361 = vmatprep.subr.mxu0 0.0
      %3362 = vmatpush2.msra.mxu0 0.0
      %3363 = vmatprep.subr.mxu0 0.0
      %3364 = vmatpush2.msra.mxu0 0.0
      %3365 = vmatprep.subr.mxu0 0.0
      %3366 = vmatpush2.msra.mxu0 0.0
      %3367 = vmatprep.subr.mxu0 0.0
      %3368 = vmatpush2.msra.mxu0 0.0
      %3369 = vmatprep.subr.mxu0 0.0
      %3370 = vmatpush2.msra.mxu0 0.0
      %3371 = vmatprep.subr.mxu0 0.0
      %3372 = vmatpush2.msra.mxu0 0.0
      %3373 = vmatprep.subr.mxu0 0.0
      %3374 = vmatpush2.msra.mxu0 0.0
      %3375 = vmatprep.mubr.f32.mxu0 0.0
      %3376 = vmatmul.mubr.f32.gmra.mxu0 %v3216
      %v3377 = vpop.f32.mrf.mxu0
      %v3378 = vadd.f32 0.0, %v3377
      %v3379 = vpop.f32.mrf.mxu0
      %3380 = vmatprep.mubr.f32.mxu0 0.0
      %3381 = vmatmul.mubr.f32.gmra.mxu0 %v3219
      %v3382 = vpop.f32.mrf.mxu0
      %v3383 = vadd.f32 0.0, %v3382
      %v3384 = vpop.f32.mrf.mxu0
      %3385 = vmatprep.mubr.f32.mxu0 0.0
      %3386 = vmatmul.mubr.f32.gmra.mxu0 %v3222
      %v3387 = vpop.f32.mrf.mxu0
      %v3388 = vadd.f32 0.0, %v3387
      %v3389 = vpop.f32.mrf.mxu0
      %3390 = vmatprep.mubr.f32.mxu0 0.0
      %3391 = vmatmul.mubr.f32.gmra.mxu0 %v3225
      %v3392 = vpop.f32.mrf.mxu0
      %v3393 = vadd.f32 0.0, %v3392
      %v3394 = vpop.f32.mrf.mxu0
      %3395 = vmatprep.mubr.f32.mxu0 0.0
      %3396 = vmatmul.mubr.f32.gmra.mxu0 %v3228
      %v3397 = vpop.f32.mrf.mxu0
      %v3398 = vadd.f32 0.0, %v3397
      %v3399 = vpop.f32.mrf.mxu0
      %3400 = vmatprep.mubr.f32.mxu0 0.0
      %3401 = vmatmul.mubr.f32.gmra.mxu0 %v3231
      %v3402 = vpop.f32.mrf.mxu0
      %v3403 = vadd.f32 0.0, %v3402
      %v3404 = vpop.f32.mrf.mxu0
      %3405 = vmatprep.mubr.f32.mxu0 0.0
      %3406 = vmatmul.mubr.f32.gmra.mxu0 %v3234
      %v3407 = vpop.f32.mrf.mxu0
      %v3408 = vadd.f32 0.0, %v3407
      %v3409 = vpop.f32.mrf.mxu0
      %3410 = vmatprep.mubr.f32.mxu0 0.0
      %3411 = vmatmul.mubr.f32.gmra.mxu0 %v3237
      %v3412 = vpop.f32.mrf.mxu0
      %v3413 = vadd.f32 0.0, %v3412
      %v3414 = vpop.f32.mrf.mxu0
      %3415 = vmatprep.mubr.f32.mxu0 0.0
      %3416 = vmatmul.mubr.f32.gmra.mxu0 %v3240
      %v3417 = vpop.f32.mrf.mxu0
      %v3418 = vadd.f32 0.0, %v3417
      %v3419 = vpop.f32.mrf.mxu0
      %3420 = vmatprep.mubr.f32.mxu0 0.0
      %3421 = vmatmul.mubr.f32.gmra.mxu0 %v3243
      %v3422 = vpop.f32.mrf.mxu0
      %v3423 = vadd.f32 0.0, %v3422
      %v3424 = vpop.f32.mrf.mxu0
      %3425 = vmatprep.mubr.f32.mxu0 0.0
      %3426 = vmatmul.mubr.f32.gmra.mxu0 %v3246
      %v3427 = vpop.f32.mrf.mxu0
      %v3428 = vadd.f32 0.0, %v3427
      %v3429 = vpop.f32.mrf.mxu0
      %3430 = vmatprep.mubr.f32.mxu0 0.0
      %3431 = vmatmul.mubr.f32.gmra.mxu0 %v3249
      %v3432 = vpop.f32.mrf.mxu0
      %v3433 = vadd.f32 0.0, %v3432
      %v3434 = vpop.f32.mrf.mxu0
      %3435 = vmatprep.mubr.f32.mxu0 0.0
      %3436 = vmatmul.mubr.f32.gmra.mxu0 %v3252
      %v3437 = vpop.f32.mrf.mxu0
      %v3438 = vadd.f32 0.0, %v3437
      %v3439 = vpop.f32.mrf.mxu0
      %3440 = vmatprep.mubr.f32.mxu0 0.0
      %3441 = vmatmul.mubr.f32.gmra.mxu0 %v3255
      %v3442 = vpop.f32.mrf.mxu0
      %v3443 = vadd.f32 0.0, %v3442
      %v3444 = vpop.f32.mrf.mxu0
      %3445 = vmatprep.mubr.f32.mxu0 0.0
      %3446 = vmatmul.mubr.f32.gmra.mxu0 %v3258
      %v3447 = vpop.f32.mrf.mxu0
      %v3448 = vadd.f32 0.0, %v3447
      %v3449 = vpop.f32.mrf.mxu0
      %3450 = vmatprep.mubr.f32.mxu0 0.0
      %3451 = vmatmul.mubr.f32.gmra.mxu0 %v3261
      %v3452 = vpop.f32.mrf.mxu0
      %v3453 = vadd.f32 0.0, %v3452
      %v3454 = vpop.f32.mrf.mxu0
      %3455 = vmatprep.mubr.f32.mxu0 0.0
      %3456 = vmatmul.mubr.f32.gmra.mxu0 %v3264
      %v3457 = vpop.f32.mrf.mxu0
      %v3458 = vadd.f32 0.0, %v3457
      %v3459 = vpop.f32.mrf.mxu0
      %3460 = vmatprep.mubr.f32.mxu0 0.0
      %3461 = vmatmul.mubr.f32.gmra.mxu0 %v3267
      %v3462 = vpop.f32.mrf.mxu0
      %v3463 = vadd.f32 0.0, %v3462
      %v3464 = vpop.f32.mrf.mxu0
      %3465 = vmatprep.mubr.f32.mxu0 0.0
      %3466 = vmatmul.mubr.f32.gmra.mxu0 %v3270
      %v3467 = vpop.f32.mrf.mxu0
      %v3468 = vadd.f32 0.0, %v3467
      %v3469 = vpop.f32.mrf.mxu0
      %3470 = vmatprep.mubr.f32.mxu0 0.0
      %3471 = vmatmul.mubr.f32.gmra.mxu0 %v3273
      %v3472 = vpop.f32.mrf.mxu0
      %v3473 = vadd.f32 0.0, %v3472
      %v3474 = vpop.f32.mrf.mxu0
      %3475 = vmatprep.mubr.f32.mxu0 0.0
      %3476 = vmatmul.mubr.f32.gmra.mxu0 %v3276
      %v3477 = vpop.f32.mrf.mxu0
      %v3478 = vadd.f32 0.0, %v3477
      %v3479 = vpop.f32.mrf.mxu0
      %3480 = vmatprep.mubr.f32.mxu0 0.0
      %3481 = vmatmul.mubr.f32.gmra.mxu0 %v3279
      %v3482 = vpop.f32.mrf.mxu0
      %v3483 = vadd.f32 0.0, %v3482
      %v3484 = vpop.f32.mrf.mxu0
      %3485 = vmatprep.mubr.f32.mxu0 0.0
      %3486 = vmatmul.mubr.f32.gmra.mxu0 %v3282
      %v3487 = vpop.f32.mrf.mxu0
      %v3488 = vadd.f32 0.0, %v3487
      %v3489 = vpop.f32.mrf.mxu0
      %3490 = vmatprep.mubr.f32.mxu0 0.0
      %3491 = vmatmul.mubr.f32.gmra.mxu0 %v3285
      %v3492 = vpop.f32.mrf.mxu0
      %v3493 = vadd.f32 0.0, %v3492
      %v3494 = vpop.f32.mrf.mxu0
      %3495 = vmatprep.mubr.f32.mxu0 0.0
      %3496 = vmatmul.mubr.f32.gmra.mxu0 %v3288
      %v3497 = vpop.f32.mrf.mxu0
      %v3498 = vadd.f32 0.0, %v3497
      %v3499 = vpop.f32.mrf.mxu0
      %3500 = vmatprep.mubr.f32.mxu0 0.0
      %3501 = vmatmul.mubr.f32.gmra.mxu0 %v3291
      %v3502 = vpop.f32.mrf.mxu0
      %v3503 = vadd.f32 0.0, %v3502
      %v3504 = vpop.f32.mrf.mxu0
      %3505 = vmatprep.mubr.f32.mxu0 0.0
      %3506 = vmatmul.mubr.f32.gmra.mxu0 %v3294
      %v3507 = vpop.f32.mrf.mxu0
      %v3508 = vadd.f32 0.0, %v3507
      %v3509 = vpop.f32.mrf.mxu0
      %3510 = vmatprep.mubr.f32.mxu0 0.0
      %3511 = vmatmul.mubr.f32.gmra.mxu0 %v3297
      %v3512 = vpop.f32.mrf.mxu0
      %v3513 = vadd.f32 0.0, %v3512
      %v3514 = vpop.f32.mrf.mxu0
      %3515 = vmatprep.mubr.f32.mxu0 0.0
      %3516 = vmatmul.mubr.f32.gmra.mxu0 %v3300
      %v3517 = vpop.f32.mrf.mxu0
      %v3518 = vadd.f32 0.0, %v3517
      %v3519 = vpop.f32.mrf.mxu0
      %3520 = vmatprep.mubr.f32.mxu0 0.0
      %3521 = vmatmul.mubr.f32.gmra.mxu0 %v3303
      %v3522 = vpop.f32.mrf.mxu0
      %v3523 = vadd.f32 0.0, %v3522
      %v3524 = vpop.f32.mrf.mxu0
      %3525 = vmatprep.mubr.f32.mxu0 0.0
      %3526 = vmatmul.mubr.f32.gmra.mxu0 %v3306
      %v3527 = vpop.f32.mrf.mxu0
      %v3528 = vadd.f32 0.0, %v3527
      %v3529 = vpop.f32.mrf.mxu0
      %3530 = vmatprep.mubr.f32.mxu0 0.0
      %3531 = vmatmul.mubr.f32.gmra.mxu0 %v3309
      %v3532 = vpop.f32.mrf.mxu0
      %v3533 = vadd.f32 0.0, %v3532
      %v3534 = vpop.f32.mrf.mxu0
      %3535 = vdwg.mxu0
      %v3536 = vadd.f32 %v3144, %v3378
      %v3537 = vadd.f32 %v3145, %v3383
      %v3538 = vadd.f32 %v3146, %v3388
      %v3539 = vadd.f32 %v3147, %v3393
      %v3540 = vadd.f32 %v3148, %v3398
      %v3541 = vadd.f32 %v3149, %v3403
      %v3542 = vadd.f32 %v3150, %v3408
      %v3543 = vadd.f32 %v3151, %v3413
      %v3544 = vadd.f32 %v3152, %v3418
      %v3545 = vadd.f32 %v3153, %v3423
      %v3546 = vadd.f32 %v3154, %v3428
      %v3547 = vadd.f32 %v3155, %v3433
      %v3548 = vadd.f32 %v3156, %v3438
      %v3549 = vadd.f32 %v3157, %v3443
      %v3550 = vadd.f32 %v3158, %v3448
      %v3551 = vadd.f32 %v3159, %v3453
      %v3552 = vadd.f32 %v3160, %v3458
      %v3553 = vadd.f32 %v3161, %v3463
      %v3554 = vadd.f32 %v3162, %v3468
      %v3555 = vadd.f32 %v3163, %v3473
      %v3556 = vadd.f32 %v3164, %v3478
      %v3557 = vadd.f32 %v3165, %v3483
      %v3558 = vadd.f32 %v3166, %v3488
      %v3559 = vadd.f32 %v3167, %v3493
      %v3560 = vadd.f32 %v3168, %v3498
      %v3561 = vadd.f32 %v3169, %v3503
      %v3562 = vadd.f32 %v3170, %v3508
      %v3563 = vadd.f32 %v3171, %v3513
      %v3564 = vadd.f32 %v3172, %v3518
      %v3565 = vadd.f32 %v3173, %v3523
      %v3566 = vadd.f32 %v3174, %v3528
      %v3567 = vadd.f32 %v3175, %v3533
      %v3569 = vsel %vm1121, %v2522, 0.0
      %v3570 = vsel %vm1276, 0.0, %v1126
      %v3571 = vsel %vm1277, 0.0, %v1128
      %v3572 = vsel %vm1278, 0.0, %v1130
      %v3573 = vsel %vm1279, 0.0, %v1132
      %v3574 = vsel %vm1280, 0.0, %v1134
      %v3575 = vsel %vm1281, 0.0, %v1136
      %v3576 = vsel %vm1282, 0.0, %v1138
      %v3577 = vsel %vm1283, 0.0, %v1140
      %v3578 = vsel %vm1284, 0.0, %v1142
      %v3579 = vsel %vm1285, 0.0, %v1144
      %v3580 = vsel %vm1286, 0.0, %v1146
      %v3581 = vsel %vm1287, 0.0, %v1148
      %v3582 = vsel %vm1288, 0.0, %v1150
      %v3583 = vsel %vm1289, 0.0, %v1152
      %v3584 = vsel %vm1290, 0.0, %v1154
      %v3585 = vsel %vm1291, 0.0, %v1156
      %v3586 = vsel %vm1292, 0.0, %v1158
      %v3587 = vsel %vm1293, 0.0, %v1160
      %v3588 = vsel %vm1294, 0.0, %v1162
      %v3589 = vsel %vm1295, 0.0, %v1164
      %v3590 = vsel %vm1296, 0.0, %v1166
      %v3591 = vsel %vm1297, 0.0, %v1168
      %v3592 = vsel %vm1298, 0.0, %v1170
      %v3593 = vsel %vm1299, 0.0, %v1172
      %v3594 = vsel %vm1300, 0.0, %v1174
      %v3595 = vsel %vm1301, 0.0, %v1176
      %v3596 = vsel %vm1302, 0.0, %v1178
      %v3597 = vsel %vm1303, 0.0, %v1180
      %v3598 = vsel %vm1304, 0.0, %v2521
      %v3599 = vsel %vm1305, 0.0, %v2523
      %v3600 = vsel %vm1306, 0.0, %v3569
      %s3601 = scalar_lea.vmem %s3, 48
      %v3602 = vld [vmem:[%s3601] sm:$0xff]
      %v3604 = vsel %vm1341, %v3570, 0
      %v3607 = vsel %vm1341, %v3571, 0
      %v3610 = vsel %vm1341, %v3572, 0
      %v3613 = vsel %vm1341, %v3573, 0
      %v3616 = vsel %vm1341, %v3574, 0
      %v3619 = vsel %vm1341, %v3575, 0
      %v3622 = vsel %vm1341, %v3576, 0
      %v3625 = vsel %vm1341, %v3577, 0
      %v3628 = vsel %vm1341, %v3578, 0
      %v3631 = vsel %vm1341, %v3579, 0
      %v3634 = vsel %vm1341, %v3580, 0
      %v3637 = vsel %vm1341, %v3581, 0
      %v3640 = vsel %vm1341, %v3582, 0
      %v3643 = vsel %vm1341, %v3583, 0
      %v3646 = vsel %vm1341, %v3584, 0
      %v3649 = vsel %vm1341, %v3585, 0
      %v3652 = vsel %vm1341, %v3586, 0
      %v3655 = vsel %vm1341, %v3587, 0
      %v3658 = vsel %vm1341, %v3588, 0
      %v3661 = vsel %vm1341, %v3589, 0
      %v3664 = vsel %vm1341, %v3590, 0
      %v3667 = vsel %vm1341, %v3591, 0
      %v3670 = vsel %vm1341, %v3592, 0
      %v3673 = vsel %vm1341, %v3593, 0
      %v3676 = vsel %vm1341, %v3594, 0
      %v3679 = vsel %vm1341, %v3595, 0
      %v3682 = vsel %vm1341, %v3596, 0
      %v3685 = vsel %vm1341, %v3597, 0
      %v3688 = vsel %vm1341, %v3598, 0
      %v3691 = vsel %vm1341, %v3599, 0
      %v3694 = vsel %vm1341, %v3600, 0
      %3696 = vmatprep.subr.mxu0 0.0
      %3697 = vmatpush1.msra.mxu0 0.0
      %3698 = vmatprep.subr.mxu0 0.0
      %3699 = vmatpush1.msra.mxu0 0.0
      %3700 = vmatprep.subr.mxu0 0.0
      %3701 = vmatpush1.msra.mxu0 0.0
      %3702 = vmatprep.subr.mxu0 0.0
      %3703 = vmatpush1.msra.mxu0 0.0
      %3704 = vmatprep.subr.mxu0 0.0
      %3705 = vmatpush1.msra.mxu0 0.0
      %3706 = vmatprep.subr.mxu0 0.0
      %3707 = vmatpush1.msra.mxu0 0.0
      %3708 = vmatprep.subr.mxu0 0.0
      %3709 = vmatpush1.msra.mxu0 0.0
      %3710 = vmatprep.subr.mxu0 0.0
      %3711 = vmatpush1.msra.mxu0 0.0
      %3712 = vmatprep.subr.mxu0 0.0
      %3713 = vmatpush1.msra.mxu0 0.0
      %3714 = vmatprep.subr.mxu0 0.0
      %3715 = vmatpush1.msra.mxu0 0.0
      %3716 = vmatprep.subr.mxu0 0.0
      %3717 = vmatpush1.msra.mxu0 0.0
      %3718 = vmatprep.subr.mxu0 0.0
      %3719 = vmatpush1.msra.mxu0 0.0
      %3720 = vmatprep.subr.mxu0 0.0
      %3721 = vmatpush1.msra.mxu0 0.0
      %3722 = vmatprep.subr.mxu0 0.0
      %3723 = vmatpush1.msra.mxu0 0.0
      %3724 = vmatprep.subr.mxu0 0.0
      %3725 = vmatpush1.msra.mxu0 0.0
      %3726 = vmatprep.subr.mxu0 0.0
      %3727 = vmatpush1.msra.mxu0 %v3602
      %3728 = vmatprep.subr.mxu0 0.0
      %3729 = vmatpush2.msra.mxu0 0.0
      %3730 = vmatprep.subr.mxu0 0.0
      %3731 = vmatpush2.msra.mxu0 0.0
      %3732 = vmatprep.subr.mxu0 0.0
      %3733 = vmatpush2.msra.mxu0 0.0
      %3734 = vmatprep.subr.mxu0 0.0
      %3735 = vmatpush2.msra.mxu0 0.0
      %3736 = vmatprep.subr.mxu0 0.0
      %3737 = vmatpush2.msra.mxu0 0.0
      %3738 = vmatprep.subr.mxu0 0.0
      %3739 = vmatpush2.msra.mxu0 0.0
      %3740 = vmatprep.subr.mxu0 0.0
      %3741 = vmatpush2.msra.mxu0 0.0
      %3742 = vmatprep.subr.mxu0 0.0
      %3743 = vmatpush2.msra.mxu0 0.0
      %3744 = vmatprep.subr.mxu0 0.0
      %3745 = vmatpush2.msra.mxu0 0.0
      %3746 = vmatprep.subr.mxu0 0.0
      %3747 = vmatpush2.msra.mxu0 0.0
      %3748 = vmatprep.subr.mxu0 0.0
      %3749 = vmatpush2.msra.mxu0 0.0
      %3750 = vmatprep.subr.mxu0 0.0
      %3751 = vmatpush2.msra.mxu0 0.0
      %3752 = vmatprep.subr.mxu0 0.0
      %3753 = vmatpush2.msra.mxu0 0.0
      %3754 = vmatprep.subr.mxu0 0.0
      %3755 = vmatpush2.msra.mxu0 0.0
      %3756 = vmatprep.subr.mxu0 0.0
      %3757 = vmatpush2.msra.mxu0 0.0
      %3758 = vmatprep.subr.mxu0 0.0
      %3759 = vmatpush2.msra.mxu0 0.0
      %3760 = vmatprep.mubr.f32.mxu0 0.0
      %3761 = vmatmul.mubr.f32.gmra.mxu0 %v3604
      %v3762 = vpop.f32.mrf.mxu0
      %v3763 = vadd.f32 0.0, %v3762
      %v3764 = vpop.f32.mrf.mxu0
      %3765 = vmatprep.mubr.f32.mxu0 0.0
      %3766 = vmatmul.mubr.f32.gmra.mxu0 %v3607
      %v3767 = vpop.f32.mrf.mxu0
      %v3768 = vadd.f32 0.0, %v3767
      %v3769 = vpop.f32.mrf.mxu0
      %3770 = vmatprep.mubr.f32.mxu0 0.0
      %3771 = vmatmul.mubr.f32.gmra.mxu0 %v3610
      %v3772 = vpop.f32.mrf.mxu0
      %v3773 = vadd.f32 0.0, %v3772
      %v3774 = vpop.f32.mrf.mxu0
      %3775 = vmatprep.mubr.f32.mxu0 0.0
      %3776 = vmatmul.mubr.f32.gmra.mxu0 %v3613
      %v3777 = vpop.f32.mrf.mxu0
      %v3778 = vadd.f32 0.0, %v3777
      %v3779 = vpop.f32.mrf.mxu0
      %3780 = vmatprep.mubr.f32.mxu0 0.0
      %3781 = vmatmul.mubr.f32.gmra.mxu0 %v3616
      %v3782 = vpop.f32.mrf.mxu0
      %v3783 = vadd.f32 0.0, %v3782
      %v3784 = vpop.f32.mrf.mxu0
      %3785 = vmatprep.mubr.f32.mxu0 0.0
      %3786 = vmatmul.mubr.f32.gmra.mxu0 %v3619
      %v3787 = vpop.f32.mrf.mxu0
      %v3788 = vadd.f32 0.0, %v3787
      %v3789 = vpop.f32.mrf.mxu0
      %3790 = vmatprep.mubr.f32.mxu0 0.0
      %3791 = vmatmul.mubr.f32.gmra.mxu0 %v3622
      %v3792 = vpop.f32.mrf.mxu0
      %v3793 = vadd.f32 0.0, %v3792
      %v3794 = vpop.f32.mrf.mxu0
      %3795 = vmatprep.mubr.f32.mxu0 0.0
      %3796 = vmatmul.mubr.f32.gmra.mxu0 %v3625
      %v3797 = vpop.f32.mrf.mxu0
      %v3798 = vadd.f32 0.0, %v3797
      %v3799 = vpop.f32.mrf.mxu0
      %3800 = vmatprep.mubr.f32.mxu0 0.0
      %3801 = vmatmul.mubr.f32.gmra.mxu0 %v3628
      %v3802 = vpop.f32.mrf.mxu0
      %v3803 = vadd.f32 0.0, %v3802
      %v3804 = vpop.f32.mrf.mxu0
      %3805 = vmatprep.mubr.f32.mxu0 0.0
      %3806 = vmatmul.mubr.f32.gmra.mxu0 %v3631
      %v3807 = vpop.f32.mrf.mxu0
      %v3808 = vadd.f32 0.0, %v3807
      %v3809 = vpop.f32.mrf.mxu0
      %3810 = vmatprep.mubr.f32.mxu0 0.0
      %3811 = vmatmul.mubr.f32.gmra.mxu0 %v3634
      %v3812 = vpop.f32.mrf.mxu0
      %v3813 = vadd.f32 0.0, %v3812
      %v3814 = vpop.f32.mrf.mxu0
      %3815 = vmatprep.mubr.f32.mxu0 0.0
      %3816 = vmatmul.mubr.f32.gmra.mxu0 %v3637
      %v3817 = vpop.f32.mrf.mxu0
      %v3818 = vadd.f32 0.0, %v3817
      %v3819 = vpop.f32.mrf.mxu0
      %3820 = vmatprep.mubr.f32.mxu0 0.0
      %3821 = vmatmul.mubr.f32.gmra.mxu0 %v3640
      %v3822 = vpop.f32.mrf.mxu0
      %v3823 = vadd.f32 0.0, %v3822
      %v3824 = vpop.f32.mrf.mxu0
      %3825 = vmatprep.mubr.f32.mxu0 0.0
      %3826 = vmatmul.mubr.f32.gmra.mxu0 %v3643
      %v3827 = vpop.f32.mrf.mxu0
      %v3828 = vadd.f32 0.0, %v3827
      %v3829 = vpop.f32.mrf.mxu0
      %3830 = vmatprep.mubr.f32.mxu0 0.0
      %3831 = vmatmul.mubr.f32.gmra.mxu0 %v3646
      %v3832 = vpop.f32.mrf.mxu0
      %v3833 = vadd.f32 0.0, %v3832
      %v3834 = vpop.f32.mrf.mxu0
      %3835 = vmatprep.mubr.f32.mxu0 0.0
      %3836 = vmatmul.mubr.f32.gmra.mxu0 %v3649
      %v3837 = vpop.f32.mrf.mxu0
      %v3838 = vadd.f32 0.0, %v3837
      %v3839 = vpop.f32.mrf.mxu0
      %3840 = vmatprep.mubr.f32.mxu0 0.0
      %3841 = vmatmul.mubr.f32.gmra.mxu0 %v3652
      %v3842 = vpop.f32.mrf.mxu0
      %v3843 = vadd.f32 0.0, %v3842
      %v3844 = vpop.f32.mrf.mxu0
      %3845 = vmatprep.mubr.f32.mxu0 0.0
      %3846 = vmatmul.mubr.f32.gmra.mxu0 %v3655
      %v3847 = vpop.f32.mrf.mxu0
      %v3848 = vadd.f32 0.0, %v3847
      %v3849 = vpop.f32.mrf.mxu0
      %3850 = vmatprep.mubr.f32.mxu0 0.0
      %3851 = vmatmul.mubr.f32.gmra.mxu0 %v3658
      %v3852 = vpop.f32.mrf.mxu0
      %v3853 = vadd.f32 0.0, %v3852
      %v3854 = vpop.f32.mrf.mxu0
      %3855 = vmatprep.mubr.f32.mxu0 0.0
      %3856 = vmatmul.mubr.f32.gmra.mxu0 %v3661
      %v3857 = vpop.f32.mrf.mxu0
      %v3858 = vadd.f32 0.0, %v3857
      %v3859 = vpop.f32.mrf.mxu0
      %3860 = vmatprep.mubr.f32.mxu0 0.0
      %3861 = vmatmul.mubr.f32.gmra.mxu0 %v3664
      %v3862 = vpop.f32.mrf.mxu0
      %v3863 = vadd.f32 0.0, %v3862
      %v3864 = vpop.f32.mrf.mxu0
      %3865 = vmatprep.mubr.f32.mxu0 0.0
      %3866 = vmatmul.mubr.f32.gmra.mxu0 %v3667
      %v3867 = vpop.f32.mrf.mxu0
      %v3868 = vadd.f32 0.0, %v3867
      %v3869 = vpop.f32.mrf.mxu0
      %3870 = vmatprep.mubr.f32.mxu0 0.0
      %3871 = vmatmul.mubr.f32.gmra.mxu0 %v3670
      %v3872 = vpop.f32.mrf.mxu0
      %v3873 = vadd.f32 0.0, %v3872
      %v3874 = vpop.f32.mrf.mxu0
      %3875 = vmatprep.mubr.f32.mxu0 0.0
      %3876 = vmatmul.mubr.f32.gmra.mxu0 %v3673
      %v3877 = vpop.f32.mrf.mxu0
      %v3878 = vadd.f32 0.0, %v3877
      %v3879 = vpop.f32.mrf.mxu0
      %3880 = vmatprep.mubr.f32.mxu0 0.0
      %3881 = vmatmul.mubr.f32.gmra.mxu0 %v3676
      %v3882 = vpop.f32.mrf.mxu0
      %v3883 = vadd.f32 0.0, %v3882
      %v3884 = vpop.f32.mrf.mxu0
      %3885 = vmatprep.mubr.f32.mxu0 0.0
      %3886 = vmatmul.mubr.f32.gmra.mxu0 %v3679
      %v3887 = vpop.f32.mrf.mxu0
      %v3888 = vadd.f32 0.0, %v3887
      %v3889 = vpop.f32.mrf.mxu0
      %3890 = vmatprep.mubr.f32.mxu0 0.0
      %3891 = vmatmul.mubr.f32.gmra.mxu0 %v3682
      %v3892 = vpop.f32.mrf.mxu0
      %v3893 = vadd.f32 0.0, %v3892
      %v3894 = vpop.f32.mrf.mxu0
      %3895 = vmatprep.mubr.f32.mxu0 0.0
      %3896 = vmatmul.mubr.f32.gmra.mxu0 %v3685
      %v3897 = vpop.f32.mrf.mxu0
      %v3898 = vadd.f32 0.0, %v3897
      %v3899 = vpop.f32.mrf.mxu0
      %3900 = vmatprep.mubr.f32.mxu0 0.0
      %3901 = vmatmul.mubr.f32.gmra.mxu0 %v3688
      %v3902 = vpop.f32.mrf.mxu0
      %v3903 = vadd.f32 0.0, %v3902
      %v3904 = vpop.f32.mrf.mxu0
      %3905 = vmatprep.mubr.f32.mxu0 0.0
      %3906 = vmatmul.mubr.f32.gmra.mxu0 %v3691
      %v3907 = vpop.f32.mrf.mxu0
      %v3908 = vadd.f32 0.0, %v3907
      %v3909 = vpop.f32.mrf.mxu0
      %3910 = vmatprep.mubr.f32.mxu0 0.0
      %3911 = vmatmul.mubr.f32.gmra.mxu0 %v3694
      %v3912 = vpop.f32.mrf.mxu0
      %v3913 = vadd.f32 0.0, %v3912
      %v3914 = vpop.f32.mrf.mxu0
      %3915 = vmatprep.mubr.f32.mxu0 0.0
      %3916 = vmatmul.mubr.f32.gmra.mxu0 %v1343
      %v3917 = vpop.f32.mrf.mxu0
      %v3918 = vadd.f32 0.0, %v3917
      %v3919 = vpop.f32.mrf.mxu0
      %3920 = vdwg.mxu0
      %v3921 = vadd.f32 %v3536, %v3763
      %v3922 = vadd.f32 %v3537, %v3768
      %v3923 = vadd.f32 %v3538, %v3773
      %v3924 = vadd.f32 %v3539, %v3778
      %v3925 = vadd.f32 %v3540, %v3783
      %v3926 = vadd.f32 %v3541, %v3788
      %v3927 = vadd.f32 %v3542, %v3793
      %v3928 = vadd.f32 %v3543, %v3798
      %v3929 = vadd.f32 %v3544, %v3803
      %v3930 = vadd.f32 %v3545, %v3808
      %v3931 = vadd.f32 %v3546, %v3813
      %v3932 = vadd.f32 %v3547, %v3818
      %v3933 = vadd.f32 %v3548, %v3823
      %v3934 = vadd.f32 %v3549, %v3828
      %v3935 = vadd.f32 %v3550, %v3833
      %v3936 = vadd.f32 %v3551, %v3838
      %v3937 = vadd.f32 %v3552, %v3843
      %v3938 = vadd.f32 %v3553, %v3848
      %v3939 = vadd.f32 %v3554, %v3853
      %v3940 = vadd.f32 %v3555, %v3858
      %v3941 = vadd.f32 %v3556, %v3863
      %v3942 = vadd.f32 %v3557, %v3868
      %v3943 = vadd.f32 %v3558, %v3873
      %v3944 = vadd.f32 %v3559, %v3878
      %v3945 = vadd.f32 %v3560, %v3883
      %v3946 = vadd.f32 %v3561, %v3888
      %v3947 = vadd.f32 %v3562, %v3893
      %v3948 = vadd.f32 %v3563, %v3898
      %v3949 = vadd.f32 %v3564, %v3903
      %v3950 = vadd.f32 %v3565, %v3908
      %v3951 = vadd.f32 %v3566, %v3913
      %v3952 = vadd.f32 %v3567, %v3918
      %s3953 = scalar_lea.vmem %s3, 56
      %v3954 = vld [vmem:[%s3953] sm:$0xff]
      %3955 = vmatprep.subr.mxu0 0.0
      %3956 = vmatpush1.msra.mxu0 0.0
      %3957 = vmatprep.subr.mxu0 0.0
      %3958 = vmatpush1.msra.mxu0 0.0
      %3959 = vmatprep.subr.mxu0 0.0
      %3960 = vmatpush1.msra.mxu0 0.0
      %3961 = vmatprep.subr.mxu0 0.0
      %3962 = vmatpush1.msra.mxu0 0.0
      %3963 = vmatprep.subr.mxu0 0.0
      %3964 = vmatpush1.msra.mxu0 0.0
      %3965 = vmatprep.subr.mxu0 0.0
      %3966 = vmatpush1.msra.mxu0 0.0
      %3967 = vmatprep.subr.mxu0 0.0
      %3968 = vmatpush1.msra.mxu0 0.0
      %3969 = vmatprep.subr.mxu0 0.0
      %3970 = vmatpush1.msra.mxu0 0.0
      %3971 = vmatprep.subr.mxu0 0.0
      %3972 = vmatpush1.msra.mxu0 0.0
      %3973 = vmatprep.subr.mxu0 0.0
      %3974 = vmatpush1.msra.mxu0 0.0
      %3975 = vmatprep.subr.mxu0 0.0
      %3976 = vmatpush1.msra.mxu0 0.0
      %3977 = vmatprep.subr.mxu0 0.0
      %3978 = vmatpush1.msra.mxu0 0.0
      %3979 = vmatprep.subr.mxu0 0.0
      %3980 = vmatpush1.msra.mxu0 0.0
      %3981 = vmatprep.subr.mxu0 0.0
      %3982 = vmatpush1.msra.mxu0 0.0
      %3983 = vmatprep.subr.mxu0 0.0
      %3984 = vmatpush1.msra.mxu0 0.0
      %3985 = vmatprep.subr.mxu0 0.0
      %3986 = vmatpush1.msra.mxu0 %v3954
      %3987 = vmatprep.subr.mxu0 0.0
      %3988 = vmatpush2.msra.mxu0 0.0
      %3989 = vmatprep.subr.mxu0 0.0
      %3990 = vmatpush2.msra.mxu0 0.0
      %3991 = vmatprep.subr.mxu0 0.0
      %3992 = vmatpush2.msra.mxu0 0.0
      %3993 = vmatprep.subr.mxu0 0.0
      %3994 = vmatpush2.msra.mxu0 0.0
      %3995 = vmatprep.subr.mxu0 0.0
      %3996 = vmatpush2.msra.mxu0 0.0
      %3997 = vmatprep.subr.mxu0 0.0
      %3998 = vmatpush2.msra.mxu0 0.0
      %3999 = vmatprep.subr.mxu0 0.0
      %4000 = vmatpush2.msra.mxu0 0.0
      %4001 = vmatprep.subr.mxu0 0.0
      %4002 = vmatpush2.msra.mxu0 0.0
      %4003 = vmatprep.subr.mxu0 0.0
      %4004 = vmatpush2.msra.mxu0 0.0
      %4005 = vmatprep.subr.mxu0 0.0
      %4006 = vmatpush2.msra.mxu0 0.0
      %4007 = vmatprep.subr.mxu0 0.0
      %4008 = vmatpush2.msra.mxu0 0.0
      %4009 = vmatprep.subr.mxu0 0.0
      %4010 = vmatpush2.msra.mxu0 0.0
      %4011 = vmatprep.subr.mxu0 0.0
      %4012 = vmatpush2.msra.mxu0 0.0
      %4013 = vmatprep.subr.mxu0 0.0
      %4014 = vmatpush2.msra.mxu0 0.0
      %4015 = vmatprep.subr.mxu0 0.0
      %4016 = vmatpush2.msra.mxu0 0.0
      %4017 = vmatprep.subr.mxu0 0.0
      %4018 = vmatpush2.msra.mxu0 0.0
      %4019 = vmatprep.mubr.f32.mxu0 0.0
      %4020 = vmatmul.mubr.f32.gmra.mxu0 %v1349
      %v4021 = vpop.f32.mrf.mxu0
      %v4022 = vadd.f32 0.0, %v4021
      %v4023 = vpop.f32.mrf.mxu0
      %4024 = vmatprep.mubr.f32.mxu0 0.0
      %4025 = vmatmul.mubr.f32.gmra.mxu0 %v1351
      %v4026 = vpop.f32.mrf.mxu0
      %v4027 = vadd.f32 0.0, %v4026
      %v4028 = vpop.f32.mrf.mxu0
      %4029 = vmatprep.mubr.f32.mxu0 0.0
      %4030 = vmatmul.mubr.f32.gmra.mxu0 %v1353
      %v4031 = vpop.f32.mrf.mxu0
      %v4032 = vadd.f32 0.0, %v4031
      %v4033 = vpop.f32.mrf.mxu0
      %4034 = vmatprep.mubr.f32.mxu0 0.0
      %4035 = vmatmul.mubr.f32.gmra.mxu0 %v1355
      %v4036 = vpop.f32.mrf.mxu0
      %v4037 = vadd.f32 0.0, %v4036
      %v4038 = vpop.f32.mrf.mxu0
      %4039 = vmatprep.mubr.f32.mxu0 0.0
      %4040 = vmatmul.mubr.f32.gmra.mxu0 %v1357
      %v4041 = vpop.f32.mrf.mxu0
      %v4042 = vadd.f32 0.0, %v4041
      %v4043 = vpop.f32.mrf.mxu0
      %4044 = vmatprep.mubr.f32.mxu0 0.0
      %4045 = vmatmul.mubr.f32.gmra.mxu0 %v1359
      %v4046 = vpop.f32.mrf.mxu0
      %v4047 = vadd.f32 0.0, %v4046
      %v4048 = vpop.f32.mrf.mxu0
      %4049 = vmatprep.mubr.f32.mxu0 0.0
      %4050 = vmatmul.mubr.f32.gmra.mxu0 %v1361
      %v4051 = vpop.f32.mrf.mxu0
      %v4052 = vadd.f32 0.0, %v4051
      %v4053 = vpop.f32.mrf.mxu0
      %4054 = vmatprep.mubr.f32.mxu0 0.0
      %4055 = vmatmul.mubr.f32.gmra.mxu0 %v1363
      %v4056 = vpop.f32.mrf.mxu0
      %v4057 = vadd.f32 0.0, %v4056
      %v4058 = vpop.f32.mrf.mxu0
      %4059 = vmatprep.mubr.f32.mxu0 0.0
      %4060 = vmatmul.mubr.f32.gmra.mxu0 %v1365
      %v4061 = vpop.f32.mrf.mxu0
      %v4062 = vadd.f32 0.0, %v4061
      %v4063 = vpop.f32.mrf.mxu0
      %4064 = vmatprep.mubr.f32.mxu0 0.0
      %4065 = vmatmul.mubr.f32.gmra.mxu0 %v1367
      %v4066 = vpop.f32.mrf.mxu0
      %v4067 = vadd.f32 0.0, %v4066
      %v4068 = vpop.f32.mrf.mxu0
      %4069 = vmatprep.mubr.f32.mxu0 0.0
      %4070 = vmatmul.mubr.f32.gmra.mxu0 %v1369
      %v4071 = vpop.f32.mrf.mxu0
      %v4072 = vadd.f32 0.0, %v4071
      %v4073 = vpop.f32.mrf.mxu0
      %4074 = vmatprep.mubr.f32.mxu0 0.0
      %4075 = vmatmul.mubr.f32.gmra.mxu0 %v1371
      %v4076 = vpop.f32.mrf.mxu0
      %v4077 = vadd.f32 0.0, %v4076
      %v4078 = vpop.f32.mrf.mxu0
      %4079 = vmatprep.mubr.f32.mxu0 0.0
      %4080 = vmatmul.mubr.f32.gmra.mxu0 %v1373
      %v4081 = vpop.f32.mrf.mxu0
      %v4082 = vadd.f32 0.0, %v4081
      %v4083 = vpop.f32.mrf.mxu0
      %4084 = vmatprep.mubr.f32.mxu0 0.0
      %4085 = vmatmul.mubr.f32.gmra.mxu0 %v1375
      %v4086 = vpop.f32.mrf.mxu0
      %v4087 = vadd.f32 0.0, %v4086
      %v4088 = vpop.f32.mrf.mxu0
      %4089 = vmatprep.mubr.f32.mxu0 0.0
      %4090 = vmatmul.mubr.f32.gmra.mxu0 %v1377
      %v4091 = vpop.f32.mrf.mxu0
      %v4092 = vadd.f32 0.0, %v4091
      %v4093 = vpop.f32.mrf.mxu0
      %4094 = vmatprep.mubr.f32.mxu0 0.0
      %4095 = vmatmul.mubr.f32.gmra.mxu0 %v1379
      %v4096 = vpop.f32.mrf.mxu0
      %v4097 = vadd.f32 0.0, %v4096
      %v4098 = vpop.f32.mrf.mxu0
      %4099 = vmatprep.mubr.f32.mxu0 0.0
      %4100 = vmatmul.mubr.f32.gmra.mxu0 %v1381
      %v4101 = vpop.f32.mrf.mxu0
      %v4102 = vadd.f32 0.0, %v4101
      %v4103 = vpop.f32.mrf.mxu0
      %4104 = vmatprep.mubr.f32.mxu0 0.0
      %4105 = vmatmul.mubr.f32.gmra.mxu0 %v1383
      %v4106 = vpop.f32.mrf.mxu0
      %v4107 = vadd.f32 0.0, %v4106
      %v4108 = vpop.f32.mrf.mxu0
      %4109 = vmatprep.mubr.f32.mxu0 0.0
      %4110 = vmatmul.mubr.f32.gmra.mxu0 %v1385
      %v4111 = vpop.f32.mrf.mxu0
      %v4112 = vadd.f32 0.0, %v4111
      %v4113 = vpop.f32.mrf.mxu0
      %4114 = vmatprep.mubr.f32.mxu0 0.0
      %4115 = vmatmul.mubr.f32.gmra.mxu0 %v1387
      %v4116 = vpop.f32.mrf.mxu0
      %v4117 = vadd.f32 0.0, %v4116
      %v4118 = vpop.f32.mrf.mxu0
      %4119 = vmatprep.mubr.f32.mxu0 0.0
      %4120 = vmatmul.mubr.f32.gmra.mxu0 %v1389
      %v4121 = vpop.f32.mrf.mxu0
      %v4122 = vadd.f32 0.0, %v4121
      %v4123 = vpop.f32.mrf.mxu0
      %4124 = vmatprep.mubr.f32.mxu0 0.0
      %4125 = vmatmul.mubr.f32.gmra.mxu0 %v1391
      %v4126 = vpop.f32.mrf.mxu0
      %v4127 = vadd.f32 0.0, %v4126
      %v4128 = vpop.f32.mrf.mxu0
      %4129 = vmatprep.mubr.f32.mxu0 0.0
      %4130 = vmatmul.mubr.f32.gmra.mxu0 %v1393
      %v4131 = vpop.f32.mrf.mxu0
      %v4132 = vadd.f32 0.0, %v4131
      %v4133 = vpop.f32.mrf.mxu0
      %4134 = vmatprep.mubr.f32.mxu0 0.0
      %4135 = vmatmul.mubr.f32.gmra.mxu0 %v1395
      %v4136 = vpop.f32.mrf.mxu0
      %v4137 = vadd.f32 0.0, %v4136
      %v4138 = vpop.f32.mrf.mxu0
      %4139 = vmatprep.mubr.f32.mxu0 0.0
      %4140 = vmatmul.mubr.f32.gmra.mxu0 %v1397
      %v4141 = vpop.f32.mrf.mxu0
      %v4142 = vadd.f32 0.0, %v4141
      %v4143 = vpop.f32.mrf.mxu0
      %4144 = vmatprep.mubr.f32.mxu0 0.0
      %4145 = vmatmul.mubr.f32.gmra.mxu0 %v1399
      %v4146 = vpop.f32.mrf.mxu0
      %v4147 = vadd.f32 0.0, %v4146
      %v4148 = vpop.f32.mrf.mxu0
      %4149 = vmatprep.mubr.f32.mxu0 0.0
      %4150 = vmatmul.mubr.f32.gmra.mxu0 %v1401
      %v4151 = vpop.f32.mrf.mxu0
      %v4152 = vadd.f32 0.0, %v4151
      %v4153 = vpop.f32.mrf.mxu0
      %4154 = vmatprep.mubr.f32.mxu0 0.0
      %4155 = vmatmul.mubr.f32.gmra.mxu0 %v1403
      %v4156 = vpop.f32.mrf.mxu0
      %v4157 = vadd.f32 0.0, %v4156
      %v4158 = vpop.f32.mrf.mxu0
      %4159 = vmatprep.mubr.f32.mxu0 0.0
      %4160 = vmatmul.mubr.f32.gmra.mxu0 %v2915
      %v4161 = vpop.f32.mrf.mxu0
      %v4162 = vadd.f32 0.0, %v4161
      %v4163 = vpop.f32.mrf.mxu0
      %4164 = vmatprep.mubr.f32.mxu0 0.0
      %4165 = vmatmul.mubr.f32.gmra.mxu0 %v2917
      %v4166 = vpop.f32.mrf.mxu0
      %v4167 = vadd.f32 0.0, %v4166
      %v4168 = vpop.f32.mrf.mxu0
      %4169 = vmatprep.mubr.f32.mxu0 0.0
      %4170 = vmatmul.mubr.f32.gmra.mxu0 %v1343
      %v4171 = vpop.f32.mrf.mxu0
      %v4172 = vadd.f32 0.0, %v4171
      %v4173 = vpop.f32.mrf.mxu0
      %4174 = vmatprep.mubr.f32.mxu0 0.0
      %4175 = vmatmul.mubr.f32.gmra.mxu0 %v1343
      %v4176 = vpop.f32.mrf.mxu0
      %v4177 = vadd.f32 0.0, %v4176
      %v4178 = vpop.f32.mrf.mxu0
      %4179 = vdwg.mxu0
      %v4180 = vadd.f32 %v3921, %v4022
      %v4181 = vadd.f32 %v3922, %v4027
      %v4182 = vadd.f32 %v3923, %v4032
      %v4183 = vadd.f32 %v3924, %v4037
      %v4184 = vadd.f32 %v3925, %v4042
      %v4185 = vadd.f32 %v3926, %v4047
      %v4186 = vadd.f32 %v3927, %v4052
      %v4187 = vadd.f32 %v3928, %v4057
      %v4188 = vadd.f32 %v3929, %v4062
      %v4189 = vadd.f32 %v3930, %v4067
      %v4190 = vadd.f32 %v3931, %v4072
      %v4191 = vadd.f32 %v3932, %v4077
      %v4192 = vadd.f32 %v3933, %v4082
      %v4193 = vadd.f32 %v3934, %v4087
      %v4194 = vadd.f32 %v3935, %v4092
      %v4195 = vadd.f32 %v3936, %v4097
      %v4196 = vadd.f32 %v3937, %v4102
      %v4197 = vadd.f32 %v3938, %v4107
      %v4198 = vadd.f32 %v3939, %v4112
      %v4199 = vadd.f32 %v3940, %v4117
      %v4200 = vadd.f32 %v3941, %v4122
      %v4201 = vadd.f32 %v3942, %v4127
      %v4202 = vadd.f32 %v3943, %v4132
      %v4203 = vadd.f32 %v3944, %v4137
      %v4204 = vadd.f32 %v3945, %v4142
      %v4205 = vadd.f32 %v3946, %v4147
      %v4206 = vadd.f32 %v3947, %v4152
      %v4207 = vadd.f32 %v3948, %v4157
      %v4208 = vadd.f32 %v3949, %v4162
      %v4209 = vadd.f32 %v3950, %v4167
      %v4210 = vadd.f32 %v3951, %v4172
      %v4211 = vadd.f32 %v3952, %v4177
      %v4212 = vsel %vm2104, 0.0, %v1953
      %v4213 = vsel %vm2105, 0.0, %v1955
      %v4214 = vsel %vm2106, 0.0, %v1957
      %v4215 = vsel %vm2107, 0.0, %v1959
      %v4216 = vsel %vm2108, 0.0, %v1961
      %v4217 = vsel %vm2109, 0.0, %v1963
      %v4218 = vsel %vm2110, 0.0, %v1965
      %v4219 = vsel %vm2111, 0.0, %v1967
      %v4220 = vsel %vm2112, 0.0, %v1969
      %v4221 = vsel %vm2113, 0.0, %v1971
      %v4222 = vsel %vm2114, 0.0, %v1973
      %v4223 = vsel %vm2115, 0.0, %v1975
      %v4224 = vsel %vm2116, 0.0, %v1977
      %v4225 = vsel %vm2117, 0.0, %v1979
      %v4226 = vsel %vm2118, 0.0, %v1981
      %v4227 = vsel %vm2119, 0.0, %v1983
      %v4228 = vsel %vm2120, 0.0, %v1985
      %v4229 = vsel %vm2121, 0.0, %v1987
      %v4230 = vsel %vm2122, 0.0, %v1989
      %v4231 = vsel %vm2123, 0.0, %v1991
      %v4232 = vsel %vm2124, 0.0, %v1993
      %v4233 = vsel %vm2125, 0.0, %v1995
      %v4234 = vsel %vm2126, 0.0, %v1997
      %v4235 = vsel %vm2127, 0.0, %v1999
      %v4236 = vsel %vm2128, 0.0, %v2001
      %v4237 = vsel %vm2129, 0.0, %v2003
      %v4238 = vsel %vm2130, 0.0, %v2005
      %v4239 = vsel %vm2131, 0.0, %v2007
      %v4240 = vsel %vm2132, 0.0, %v3177
      %v4241 = vsel %vm2133, 0.0, %v3180
      %s4242 = scalar_lea.vmem %s3, 64
      %v4243 = vld [vmem:[%s4242] sm:$0xff]
      %v4245 = vsel %vm1341, %v4212, 0
      %v4248 = vsel %vm1341, %v4213, 0
      %v4251 = vsel %vm1341, %v4214, 0
      %v4254 = vsel %vm1341, %v4215, 0
      %v4257 = vsel %vm1341, %v4216, 0
      %v4260 = vsel %vm1341, %v4217, 0
      %v4263 = vsel %vm1341, %v4218, 0
      %v4266 = vsel %vm1341, %v4219, 0
      %v4269 = vsel %vm1341, %v4220, 0
      %v4272 = vsel %vm1341, %v4221, 0
      %v4275 = vsel %vm1341, %v4222, 0
      %v4278 = vsel %vm1341, %v4223, 0
      %v4281 = vsel %vm1341, %v4224, 0
      %v4284 = vsel %vm1341, %v4225, 0
      %v4287 = vsel %vm1341, %v4226, 0
      %v4290 = vsel %vm1341, %v4227, 0
      %v4293 = vsel %vm1341, %v4228, 0
      %v4296 = vsel %vm1341, %v4229, 0
      %v4299 = vsel %vm1341, %v4230, 0
      %v4302 = vsel %vm1341, %v4231, 0
      %v4305 = vsel %vm1341, %v4232, 0
      %v4308 = vsel %vm1341, %v4233, 0
      %v4311 = vsel %vm1341, %v4234, 0
      %v4314 = vsel %vm1341, %v4235, 0
      %v4317 = vsel %vm1341, %v4236, 0
      %v4320 = vsel %vm1341, %v4237, 0
      %v4323 = vsel %vm1341, %v4238, 0
      %v4326 = vsel %vm1341, %v4239, 0
      %v4329 = vsel %vm1341, %v4240, 0
      %v4332 = vsel %vm1341, %v4241, 0
      %4334 = vmatprep.subr.mxu0 0.0
      %4335 = vmatpush1.msra.mxu0 0.0
      %4336 = vmatprep.subr.mxu0 0.0
      %4337 = vmatpush1.msra.mxu0 0.0
      %4338 = vmatprep.subr.mxu0 0.0
      %4339 = vmatpush1.msra.mxu0 0.0
      %4340 = vmatprep.subr.mxu0 0.0
      %4341 = vmatpush1.msra.mxu0 0.0
      %4342 = vmatprep.subr.mxu0 0.0
      %4343 = vmatpush1.msra.mxu0 0.0
      %4344 = vmatprep.subr.mxu0 0.0
      %4345 = vmatpush1.msra.mxu0 0.0
      %4346 = vmatprep.subr.mxu0 0.0
      %4347 = vmatpush1.msra.mxu0 0.0
      %4348 = vmatprep.subr.mxu0 0.0
      %4349 = vmatpush1.msra.mxu0 0.0
      %4350 = vmatprep.subr.mxu0 0.0
      %4351 = vmatpush1.msra.mxu0 0.0
      %4352 = vmatprep.subr.mxu0 0.0
      %4353 = vmatpush1.msra.mxu0 0.0
      %4354 = vmatprep.subr.mxu0 0.0
      %4355 = vmatpush1.msra.mxu0 0.0
      %4356 = vmatprep.subr.mxu0 0.0
      %4357 = vmatpush1.msra.mxu0 0.0
      %4358 = vmatprep.subr.mxu0 0.0
      %4359 = vmatpush1.msra.mxu0 0.0
      %4360 = vmatprep.subr.mxu0 0.0
      %4361 = vmatpush1.msra.mxu0 0.0
      %4362 = vmatprep.subr.mxu0 0.0
      %4363 = vmatpush1.msra.mxu0 0.0
      %4364 = vmatprep.subr.mxu0 0.0
      %4365 = vmatpush1.msra.mxu0 %v4243
      %4366 = vmatprep.subr.mxu0 0.0
      %4367 = vmatpush2.msra.mxu0 0.0
      %4368 = vmatprep.subr.mxu0 0.0
      %4369 = vmatpush2.msra.mxu0 0.0
      %4370 = vmatprep.subr.mxu0 0.0
      %4371 = vmatpush2.msra.mxu0 0.0
      %4372 = vmatprep.subr.mxu0 0.0
      %4373 = vmatpush2.msra.mxu0 0.0
      %4374 = vmatprep.subr.mxu0 0.0
      %4375 = vmatpush2.msra.mxu0 0.0
      %4376 = vmatprep.subr.mxu0 0.0
      %4377 = vmatpush2.msra.mxu0 0.0
      %4378 = vmatprep.subr.mxu0 0.0
      %4379 = vmatpush2.msra.mxu0 0.0
      %4380 = vmatprep.subr.mxu0 0.0
      %4381 = vmatpush2.msra.mxu0 0.0
      %4382 = vmatprep.subr.mxu0 0.0
      %4383 = vmatpush2.msra.mxu0 0.0
      %4384 = vmatprep.subr.mxu0 0.0
      %4385 = vmatpush2.msra.mxu0 0.0
      %4386 = vmatprep.subr.mxu0 0.0
      %4387 = vmatpush2.msra.mxu0 0.0
      %4388 = vmatprep.subr.mxu0 0.0
      %4389 = vmatpush2.msra.mxu0 0.0
      %4390 = vmatprep.subr.mxu0 0.0
      %4391 = vmatpush2.msra.mxu0 0.0
      %4392 = vmatprep.subr.mxu0 0.0
      %4393 = vmatpush2.msra.mxu0 0.0
      %4394 = vmatprep.subr.mxu0 0.0
      %4395 = vmatpush2.msra.mxu0 0.0
      %4396 = vmatprep.subr.mxu0 0.0
      %4397 = vmatpush2.msra.mxu0 0.0
      %4398 = vmatprep.mubr.f32.mxu0 0.0
      %4399 = vmatmul.mubr.f32.gmra.mxu0 %v4245
      %v4400 = vpop.f32.mrf.mxu0
      %v4401 = vadd.f32 0.0, %v4400
      %v4402 = vpop.f32.mrf.mxu0
      %4403 = vmatprep.mubr.f32.mxu0 0.0
      %4404 = vmatmul.mubr.f32.gmra.mxu0 %v4248
      %v4405 = vpop.f32.mrf.mxu0
      %v4406 = vadd.f32 0.0, %v4405
      %v4407 = vpop.f32.mrf.mxu0
      %4408 = vmatprep.mubr.f32.mxu0 0.0
      %4409 = vmatmul.mubr.f32.gmra.mxu0 %v4251
      %v4410 = vpop.f32.mrf.mxu0
      %v4411 = vadd.f32 0.0, %v4410
      %v4412 = vpop.f32.mrf.mxu0
      %4413 = vmatprep.mubr.f32.mxu0 0.0
      %4414 = vmatmul.mubr.f32.gmra.mxu0 %v4254
      %v4415 = vpop.f32.mrf.mxu0
      %v4416 = vadd.f32 0.0, %v4415
      %v4417 = vpop.f32.mrf.mxu0
      %4418 = vmatprep.mubr.f32.mxu0 0.0
      %4419 = vmatmul.mubr.f32.gmra.mxu0 %v4257
      %v4420 = vpop.f32.mrf.mxu0
      %v4421 = vadd.f32 0.0, %v4420
      %v4422 = vpop.f32.mrf.mxu0
      %4423 = vmatprep.mubr.f32.mxu0 0.0
      %4424 = vmatmul.mubr.f32.gmra.mxu0 %v4260
      %v4425 = vpop.f32.mrf.mxu0
      %v4426 = vadd.f32 0.0, %v4425
      %v4427 = vpop.f32.mrf.mxu0
      %4428 = vmatprep.mubr.f32.mxu0 0.0
      %4429 = vmatmul.mubr.f32.gmra.mxu0 %v4263
      %v4430 = vpop.f32.mrf.mxu0
      %v4431 = vadd.f32 0.0, %v4430
      %v4432 = vpop.f32.mrf.mxu0
      %4433 = vmatprep.mubr.f32.mxu0 0.0
      %4434 = vmatmul.mubr.f32.gmra.mxu0 %v4266
      %v4435 = vpop.f32.mrf.mxu0
      %v4436 = vadd.f32 0.0, %v4435
      %v4437 = vpop.f32.mrf.mxu0
      %4438 = vmatprep.mubr.f32.mxu0 0.0
      %4439 = vmatmul.mubr.f32.gmra.mxu0 %v4269
      %v4440 = vpop.f32.mrf.mxu0
      %v4441 = vadd.f32 0.0, %v4440
      %v4442 = vpop.f32.mrf.mxu0
      %4443 = vmatprep.mubr.f32.mxu0 0.0
      %4444 = vmatmul.mubr.f32.gmra.mxu0 %v4272
      %v4445 = vpop.f32.mrf.mxu0
      %v4446 = vadd.f32 0.0, %v4445
      %v4447 = vpop.f32.mrf.mxu0
      %4448 = vmatprep.mubr.f32.mxu0 0.0
      %4449 = vmatmul.mubr.f32.gmra.mxu0 %v4275
      %v4450 = vpop.f32.mrf.mxu0
      %v4451 = vadd.f32 0.0, %v4450
      %v4452 = vpop.f32.mrf.mxu0
      %4453 = vmatprep.mubr.f32.mxu0 0.0
      %4454 = vmatmul.mubr.f32.gmra.mxu0 %v4278
      %v4455 = vpop.f32.mrf.mxu0
      %v4456 = vadd.f32 0.0, %v4455
      %v4457 = vpop.f32.mrf.mxu0
      %4458 = vmatprep.mubr.f32.mxu0 0.0
      %4459 = vmatmul.mubr.f32.gmra.mxu0 %v4281
      %v4460 = vpop.f32.mrf.mxu0
      %v4461 = vadd.f32 0.0, %v4460
      %v4462 = vpop.f32.mrf.mxu0
      %4463 = vmatprep.mubr.f32.mxu0 0.0
      %4464 = vmatmul.mubr.f32.gmra.mxu0 %v4284
      %v4465 = vpop.f32.mrf.mxu0
      %v4466 = vadd.f32 0.0, %v4465
      %v4467 = vpop.f32.mrf.mxu0
      %4468 = vmatprep.mubr.f32.mxu0 0.0
      %4469 = vmatmul.mubr.f32.gmra.mxu0 %v4287
      %v4470 = vpop.f32.mrf.mxu0
      %v4471 = vadd.f32 0.0, %v4470
      %v4472 = vpop.f32.mrf.mxu0
      %4473 = vmatprep.mubr.f32.mxu0 0.0
      %4474 = vmatmul.mubr.f32.gmra.mxu0 %v4290
      %v4475 = vpop.f32.mrf.mxu0
      %v4476 = vadd.f32 0.0, %v4475
      %v4477 = vpop.f32.mrf.mxu0
      %4478 = vmatprep.mubr.f32.mxu0 0.0
      %4479 = vmatmul.mubr.f32.gmra.mxu0 %v4293
      %v4480 = vpop.f32.mrf.mxu0
      %v4481 = vadd.f32 0.0, %v4480
      %v4482 = vpop.f32.mrf.mxu0
      %4483 = vmatprep.mubr.f32.mxu0 0.0
      %4484 = vmatmul.mubr.f32.gmra.mxu0 %v4296
      %v4485 = vpop.f32.mrf.mxu0
      %v4486 = vadd.f32 0.0, %v4485
      %v4487 = vpop.f32.mrf.mxu0
      %4488 = vmatprep.mubr.f32.mxu0 0.0
      %4489 = vmatmul.mubr.f32.gmra.mxu0 %v4299
      %v4490 = vpop.f32.mrf.mxu0
      %v4491 = vadd.f32 0.0, %v4490
      %v4492 = vpop.f32.mrf.mxu0
      %4493 = vmatprep.mubr.f32.mxu0 0.0
      %4494 = vmatmul.mubr.f32.gmra.mxu0 %v4302
      %v4495 = vpop.f32.mrf.mxu0
      %v4496 = vadd.f32 0.0, %v4495
      %v4497 = vpop.f32.mrf.mxu0
      %4498 = vmatprep.mubr.f32.mxu0 0.0
      %4499 = vmatmul.mubr.f32.gmra.mxu0 %v4305
      %v4500 = vpop.f32.mrf.mxu0
      %v4501 = vadd.f32 0.0, %v4500
      %v4502 = vpop.f32.mrf.mxu0
      %4503 = vmatprep.mubr.f32.mxu0 0.0
      %4504 = vmatmul.mubr.f32.gmra.mxu0 %v4308
      %v4505 = vpop.f32.mrf.mxu0
      %v4506 = vadd.f32 0.0, %v4505
      %v4507 = vpop.f32.mrf.mxu0
      %4508 = vmatprep.mubr.f32.mxu0 0.0
      %4509 = vmatmul.mubr.f32.gmra.mxu0 %v4311
      %v4510 = vpop.f32.mrf.mxu0
      %v4511 = vadd.f32 0.0, %v4510
      %v4512 = vpop.f32.mrf.mxu0
      %4513 = vmatprep.mubr.f32.mxu0 0.0
      %4514 = vmatmul.mubr.f32.gmra.mxu0 %v4314
      %v4515 = vpop.f32.mrf.mxu0
      %v4516 = vadd.f32 0.0, %v4515
      %v4517 = vpop.f32.mrf.mxu0
      %4518 = vmatprep.mubr.f32.mxu0 0.0
      %4519 = vmatmul.mubr.f32.gmra.mxu0 %v4317
      %v4520 = vpop.f32.mrf.mxu0
      %v4521 = vadd.f32 0.0, %v4520
      %v4522 = vpop.f32.mrf.mxu0
      %4523 = vmatprep.mubr.f32.mxu0 0.0
      %4524 = vmatmul.mubr.f32.gmra.mxu0 %v4320
      %v4525 = vpop.f32.mrf.mxu0
      %v4526 = vadd.f32 0.0, %v4525
      %v4527 = vpop.f32.mrf.mxu0
      %4528 = vmatprep.mubr.f32.mxu0 0.0
      %4529 = vmatmul.mubr.f32.gmra.mxu0 %v4323
      %v4530 = vpop.f32.mrf.mxu0
      %v4531 = vadd.f32 0.0, %v4530
      %v4532 = vpop.f32.mrf.mxu0
      %4533 = vmatprep.mubr.f32.mxu0 0.0
      %4534 = vmatmul.mubr.f32.gmra.mxu0 %v4326
      %v4535 = vpop.f32.mrf.mxu0
      %v4536 = vadd.f32 0.0, %v4535
      %v4537 = vpop.f32.mrf.mxu0
      %4538 = vmatprep.mubr.f32.mxu0 0.0
      %4539 = vmatmul.mubr.f32.gmra.mxu0 %v4329
      %v4540 = vpop.f32.mrf.mxu0
      %v4541 = vadd.f32 0.0, %v4540
      %v4542 = vpop.f32.mrf.mxu0
      %4543 = vmatprep.mubr.f32.mxu0 0.0
      %4544 = vmatmul.mubr.f32.gmra.mxu0 %v4332
      %v4545 = vpop.f32.mrf.mxu0
      %v4546 = vadd.f32 0.0, %v4545
      %v4547 = vpop.f32.mrf.mxu0
      %4548 = vmatprep.mubr.f32.mxu0 0.0
      %4549 = vmatmul.mubr.f32.gmra.mxu0 %v1343
      %v4550 = vpop.f32.mrf.mxu0
      %v4551 = vadd.f32 0.0, %v4550
      %v4552 = vpop.f32.mrf.mxu0
      %4553 = vmatprep.mubr.f32.mxu0 0.0
      %4554 = vmatmul.mubr.f32.gmra.mxu0 %v1343
      %v4555 = vpop.f32.mrf.mxu0
      %v4556 = vadd.f32 0.0, %v4555
      %v4557 = vpop.f32.mrf.mxu0
      %4558 = vdwg.mxu0
      %v4559 = vadd.f32 %v4180, %v4401
      %v4560 = vadd.f32 %v4181, %v4406
      %v4561 = vadd.f32 %v4182, %v4411
      %v4562 = vadd.f32 %v4183, %v4416
      %v4563 = vadd.f32 %v4184, %v4421
      %v4564 = vadd.f32 %v4185, %v4426
      %v4565 = vadd.f32 %v4186, %v4431
      %v4566 = vadd.f32 %v4187, %v4436
      %v4567 = vadd.f32 %v4188, %v4441
      %v4568 = vadd.f32 %v4189, %v4446
      %v4569 = vadd.f32 %v4190, %v4451
      %v4570 = vadd.f32 %v4191, %v4456
      %v4571 = vadd.f32 %v4192, %v4461
      %v4572 = vadd.f32 %v4193, %v4466
      %v4573 = vadd.f32 %v4194, %v4471
      %v4574 = vadd.f32 %v4195, %v4476
      %v4575 = vadd.f32 %v4196, %v4481
      %v4576 = vadd.f32 %v4197, %v4486
      %v4577 = vadd.f32 %v4198, %v4491
      %v4578 = vadd.f32 %v4199, %v4496
      %v4579 = vadd.f32 %v4200, %v4501
      %v4580 = vadd.f32 %v4201, %v4506
      %v4581 = vadd.f32 %v4202, %v4511
      %v4582 = vadd.f32 %v4203, %v4516
      %v4583 = vadd.f32 %v4204, %v4521
      %v4584 = vadd.f32 %v4205, %v4526
      %v4585 = vadd.f32 %v4206, %v4531
      %v4586 = vadd.f32 %v4207, %v4536
      %v4587 = vadd.f32 %v4208, %v4541
      %v4588 = vadd.f32 %v4209, %v4546
      %v4589 = vadd.f32 %v4210, %v4551
      %v4590 = vadd.f32 %v4211, %v4556
      %v4591 = vld [vmem:[%s4] sm:$0x1]
      %v4593 = vlaneseq
      %v4594 = vshrl.u32 %v4593, 7
      %v4595 = vsub.s32 0, %v4594
      %v4596 = vrot.slane %v4591, %v4595
      %v4598 = vadd.f32 %v4559, %v4596
      %v4599 = vadd.f32 %v4560, %v4596
      %v4600 = vadd.f32 %v4561, %v4596
      %v4601 = vadd.f32 %v4562, %v4596
      %v4602 = vadd.f32 %v4563, %v4596
      %v4603 = vadd.f32 %v4564, %v4596
      %v4604 = vadd.f32 %v4565, %v4596
      %v4605 = vadd.f32 %v4566, %v4596
      %v4606 = vadd.f32 %v4567, %v4596
      %v4607 = vadd.f32 %v4568, %v4596
      %v4608 = vadd.f32 %v4569, %v4596
      %v4609 = vadd.f32 %v4570, %v4596
      %v4610 = vadd.f32 %v4571, %v4596
      %v4611 = vadd.f32 %v4572, %v4596
      %v4612 = vadd.f32 %v4573, %v4596
      %v4613 = vadd.f32 %v4574, %v4596
      %v4614 = vadd.f32 %v4575, %v4596
      %v4615 = vadd.f32 %v4576, %v4596
      %v4616 = vadd.f32 %v4577, %v4596
      %v4617 = vadd.f32 %v4578, %v4596
      %v4618 = vadd.f32 %v4579, %v4596
      %v4619 = vadd.f32 %v4580, %v4596
      %v4620 = vadd.f32 %v4581, %v4596
      %v4621 = vadd.f32 %v4582, %v4596
      %v4622 = vadd.f32 %v4583, %v4596
      %v4623 = vadd.f32 %v4584, %v4596
      %v4624 = vadd.f32 %v4585, %v4596
      %v4625 = vadd.f32 %v4586, %v4596
      %v4626 = vadd.f32 %v4587, %v4596
      %v4627 = vadd.f32 %v4588, %v4596
      %v4628 = vadd.f32 %v4589, %v4596
      %v4629 = vadd.f32 %v4590, %v4596
      %v4630 = vmax.f32 %v4598, 0.0
      %v4631 = vmax.f32 %v4599, 0.0
      %v4632 = vmax.f32 %v4600, 0.0
      %v4633 = vmax.f32 %v4601, 0.0
      %v4634 = vmax.f32 %v4602, 0.0
      %v4635 = vmax.f32 %v4603, 0.0
      %v4636 = vmax.f32 %v4604, 0.0
      %v4637 = vmax.f32 %v4605, 0.0
      %v4638 = vmax.f32 %v4606, 0.0
      %v4639 = vmax.f32 %v4607, 0.0
      %v4640 = vmax.f32 %v4608, 0.0
      %v4641 = vmax.f32 %v4609, 0.0
      %v4642 = vmax.f32 %v4610, 0.0
      %v4643 = vmax.f32 %v4611, 0.0
      %v4644 = vmax.f32 %v4612, 0.0
      %v4645 = vmax.f32 %v4613, 0.0
      %v4646 = vmax.f32 %v4614, 0.0
      %v4647 = vmax.f32 %v4615, 0.0
      %v4648 = vmax.f32 %v4616, 0.0
      %v4649 = vmax.f32 %v4617, 0.0
      %v4650 = vmax.f32 %v4618, 0.0
      %v4651 = vmax.f32 %v4619, 0.0
      %v4652 = vmax.f32 %v4620, 0.0
      %v4653 = vmax.f32 %v4621, 0.0
      %v4654 = vmax.f32 %v4622, 0.0
      %v4655 = vmax.f32 %v4623, 0.0
      %v4656 = vmax.f32 %v4624, 0.0
      %v4657 = vmax.f32 %v4625, 0.0
      %v4658 = vmax.f32 %v4626, 0.0
      %v4659 = vmax.f32 %v4627, 0.0
      %v4660 = vmax.f32 %v4628, 0.0
      %v4661 = vmax.f32 %v4629, 0.0
      %v4662 = vld [vmem:[%s5] sm:$0xff]
      %v4663 = vld [vmem:[%s6] sm:$0x1]
      %v4665 = vlaneseq
      %v4666 = vshrl.u32 %v4665, 7
      %v4667 = vsub.s32 0, %v4666
      %v4668 = vrot.slane %v4663, %v4667
      %v4671 = vsel %vm1341, %v4630, 0
      %v4674 = vsel %vm1341, %v4631, 0
      %v4677 = vsel %vm1341, %v4632, 0
      %v4680 = vsel %vm1341, %v4633, 0
      %v4683 = vsel %vm1341, %v4634, 0
      %v4686 = vsel %vm1341, %v4635, 0
      %v4689 = vsel %vm1341, %v4636, 0
      %v4692 = vsel %vm1341, %v4637, 0
      %v4695 = vsel %vm1341, %v4638, 0
      %v4698 = vsel %vm1341, %v4639, 0
      %v4701 = vsel %vm1341, %v4640, 0
      %v4704 = vsel %vm1341, %v4641, 0
      %v4707 = vsel %vm1341, %v4642, 0
      %v4710 = vsel %vm1341, %v4643, 0
      %v4713 = vsel %vm1341, %v4644, 0
      %v4716 = vsel %vm1341, %v4645, 0
      %v4719 = vsel %vm1341, %v4646, 0
      %v4722 = vsel %vm1341, %v4647, 0
      %v4725 = vsel %vm1341, %v4648, 0
      %v4728 = vsel %vm1341, %v4649, 0
      %v4731 = vsel %vm1341, %v4650, 0
      %v4734 = vsel %vm1341, %v4651, 0
      %v4737 = vsel %vm1341, %v4652, 0
      %v4740 = vsel %vm1341, %v4653, 0
      %v4743 = vsel %vm1341, %v4654, 0
      %v4746 = vsel %vm1341, %v4655, 0
      %v4749 = vsel %vm1341, %v4656, 0
      %v4752 = vsel %vm1341, %v4657, 0
      %v4755 = vsel %vm1341, %v4658, 0
      %v4758 = vsel %vm1341, %v4659, 0
      %v4761 = vsel %vm1341, %v4660, 0
      %v4764 = vsel %vm1341, %v4661, 0
      %4766 = vmatprep.subr.mxu0 0.0
      %4767 = vmatpush1.msra.mxu0 0.0
      %4768 = vmatprep.subr.mxu0 0.0
      %4769 = vmatpush1.msra.mxu0 0.0
      %4770 = vmatprep.subr.mxu0 0.0
      %4771 = vmatpush1.msra.mxu0 0.0
      %4772 = vmatprep.subr.mxu0 0.0
      %4773 = vmatpush1.msra.mxu0 0.0
      %4774 = vmatprep.subr.mxu0 0.0
      %4775 = vmatpush1.msra.mxu0 0.0
      %4776 = vmatprep.subr.mxu0 0.0
      %4777 = vmatpush1.msra.mxu0 0.0
      %4778 = vmatprep.subr.mxu0 0.0
      %4779 = vmatpush1.msra.mxu0 0.0
      %4780 = vmatprep.subr.mxu0 0.0
      %4781 = vmatpush1.msra.mxu0 0.0
      %4782 = vmatprep.subr.mxu0 0.0
      %4783 = vmatpush1.msra.mxu0 0.0
      %4784 = vmatprep.subr.mxu0 0.0
      %4785 = vmatpush1.msra.mxu0 0.0
      %4786 = vmatprep.subr.mxu0 0.0
      %4787 = vmatpush1.msra.mxu0 0.0
      %4788 = vmatprep.subr.mxu0 0.0
      %4789 = vmatpush1.msra.mxu0 0.0
      %4790 = vmatprep.subr.mxu0 0.0
      %4791 = vmatpush1.msra.mxu0 0.0
      %4792 = vmatprep.subr.mxu0 0.0
      %4793 = vmatpush1.msra.mxu0 0.0
      %4794 = vmatprep.subr.mxu0 0.0
      %4795 = vmatpush1.msra.mxu0 0.0
      %4796 = vmatprep.subr.mxu0 0.0
      %4797 = vmatpush1.msra.mxu0 %v4662
      %4798 = vmatprep.subr.mxu0 0.0
      %4799 = vmatpush2.msra.mxu0 0.0
      %4800 = vmatprep.subr.mxu0 0.0
      %4801 = vmatpush2.msra.mxu0 0.0
      %4802 = vmatprep.subr.mxu0 0.0
      %4803 = vmatpush2.msra.mxu0 0.0
      %4804 = vmatprep.subr.mxu0 0.0
      %4805 = vmatpush2.msra.mxu0 0.0
      %4806 = vmatprep.subr.mxu0 0.0
      %4807 = vmatpush2.msra.mxu0 0.0
      %4808 = vmatprep.subr.mxu0 0.0
      %4809 = vmatpush2.msra.mxu0 0.0
      %4810 = vmatprep.subr.mxu0 0.0
      %4811 = vmatpush2.msra.mxu0 0.0
      %4812 = vmatprep.subr.mxu0 0.0
      %4813 = vmatpush2.msra.mxu0 0.0
      %4814 = vmatprep.subr.mxu0 0.0
      %4815 = vmatpush2.msra.mxu0 0.0
      %4816 = vmatprep.subr.mxu0 0.0
      %4817 = vmatpush2.msra.mxu0 0.0
      %4818 = vmatprep.subr.mxu0 0.0
      %4819 = vmatpush2.msra.mxu0 0.0
      %4820 = vmatprep.subr.mxu0 0.0
      %4821 = vmatpush2.msra.mxu0 0.0
      %4822 = vmatprep.subr.mxu0 0.0
      %4823 = vmatpush2.msra.mxu0 0.0
      %4824 = vmatprep.subr.mxu0 0.0
      %4825 = vmatpush2.msra.mxu0 0.0
      %4826 = vmatprep.subr.mxu0 0.0
      %4827 = vmatpush2.msra.mxu0 0.0
      %4828 = vmatprep.subr.mxu0 0.0
      %4829 = vmatpush2.msra.mxu0 0.0
      %4830 = vmatprep.mubr.f32.mxu0 0.0
      %4831 = vmatmul.mubr.f32.gmra.mxu0 %v4671
      %v4832 = vpop.f32.mrf.mxu0
      %v4833 = vadd.f32 %v4668, %v4832
      %v4834 = vpop.f32.mrf.mxu0
      %4835 = vmatprep.mubr.f32.mxu0 0.0
      %4836 = vmatmul.mubr.f32.gmra.mxu0 %v4674
      %v4837 = vpop.f32.mrf.mxu0
      %v4838 = vadd.f32 %v4668, %v4837
      %v4839 = vpop.f32.mrf.mxu0
      %4840 = vmatprep.mubr.f32.mxu0 0.0
      %4841 = vmatmul.mubr.f32.gmra.mxu0 %v4677
      %v4842 = vpop.f32.mrf.mxu0
      %v4843 = vadd.f32 %v4668, %v4842
      %v4844 = vpop.f32.mrf.mxu0
      %4845 = vmatprep.mubr.f32.mxu0 0.0
      %4846 = vmatmul.mubr.f32.gmra.mxu0 %v4680
      %v4847 = vpop.f32.mrf.mxu0
      %v4848 = vadd.f32 %v4668, %v4847
      %v4849 = vpop.f32.mrf.mxu0
      %4850 = vmatprep.mubr.f32.mxu0 0.0
      %4851 = vmatmul.mubr.f32.gmra.mxu0 %v4683
      %v4852 = vpop.f32.mrf.mxu0
      %v4853 = vadd.f32 %v4668, %v4852
      %v4854 = vpop.f32.mrf.mxu0
      %4855 = vmatprep.mubr.f32.mxu0 0.0
      %4856 = vmatmul.mubr.f32.gmra.mxu0 %v4686
      %v4857 = vpop.f32.mrf.mxu0
      %v4858 = vadd.f32 %v4668, %v4857
      %v4859 = vpop.f32.mrf.mxu0
      %4860 = vmatprep.mubr.f32.mxu0 0.0
      %4861 = vmatmul.mubr.f32.gmra.mxu0 %v4689
      %v4862 = vpop.f32.mrf.mxu0
      %v4863 = vadd.f32 %v4668, %v4862
      %v4864 = vpop.f32.mrf.mxu0
      %4865 = vmatprep.mubr.f32.mxu0 0.0
      %4866 = vmatmul.mubr.f32.gmra.mxu0 %v4692
      %v4867 = vpop.f32.mrf.mxu0
      %v4868 = vadd.f32 %v4668, %v4867
      %v4869 = vpop.f32.mrf.mxu0
      %4870 = vmatprep.mubr.f32.mxu0 0.0
      %4871 = vmatmul.mubr.f32.gmra.mxu0 %v4695
      %v4872 = vpop.f32.mrf.mxu0
      %v4873 = vadd.f32 %v4668, %v4872
      %v4874 = vpop.f32.mrf.mxu0
      %4875 = vmatprep.mubr.f32.mxu0 0.0
      %4876 = vmatmul.mubr.f32.gmra.mxu0 %v4698
      %v4877 = vpop.f32.mrf.mxu0
      %v4878 = vadd.f32 %v4668, %v4877
      %v4879 = vpop.f32.mrf.mxu0
      %4880 = vmatprep.mubr.f32.mxu0 0.0
      %4881 = vmatmul.mubr.f32.gmra.mxu0 %v4701
      %v4882 = vpop.f32.mrf.mxu0
      %v4883 = vadd.f32 %v4668, %v4882
      %v4884 = vpop.f32.mrf.mxu0
      %4885 = vmatprep.mubr.f32.mxu0 0.0
      %4886 = vmatmul.mubr.f32.gmra.mxu0 %v4704
      %v4887 = vpop.f32.mrf.mxu0
      %v4888 = vadd.f32 %v4668, %v4887
      %v4889 = vpop.f32.mrf.mxu0
      %4890 = vmatprep.mubr.f32.mxu0 0.0
      %4891 = vmatmul.mubr.f32.gmra.mxu0 %v4707
      %v4892 = vpop.f32.mrf.mxu0
      %v4893 = vadd.f32 %v4668, %v4892
      %v4894 = vpop.f32.mrf.mxu0
      %4895 = vmatprep.mubr.f32.mxu0 0.0
      %4896 = vmatmul.mubr.f32.gmra.mxu0 %v4710
      %v4897 = vpop.f32.mrf.mxu0
      %v4898 = vadd.f32 %v4668, %v4897
      %v4899 = vpop.f32.mrf.mxu0
      %4900 = vmatprep.mubr.f32.mxu0 0.0
      %4901 = vmatmul.mubr.f32.gmra.mxu0 %v4713
      %v4902 = vpop.f32.mrf.mxu0
      %v4903 = vadd.f32 %v4668, %v4902
      %v4904 = vpop.f32.mrf.mxu0
      %4905 = vmatprep.mubr.f32.mxu0 0.0
      %4906 = vmatmul.mubr.f32.gmra.mxu0 %v4716
      %v4907 = vpop.f32.mrf.mxu0
      %v4908 = vadd.f32 %v4668, %v4907
      %v4909 = vpop.f32.mrf.mxu0
      %4910 = vmatprep.mubr.f32.mxu0 0.0
      %4911 = vmatmul.mubr.f32.gmra.mxu0 %v4719
      %v4912 = vpop.f32.mrf.mxu0
      %v4913 = vadd.f32 %v4668, %v4912
      %v4914 = vpop.f32.mrf.mxu0
      %4915 = vmatprep.mubr.f32.mxu0 0.0
      %4916 = vmatmul.mubr.f32.gmra.mxu0 %v4722
      %v4917 = vpop.f32.mrf.mxu0
      %v4918 = vadd.f32 %v4668, %v4917
      %v4919 = vpop.f32.mrf.mxu0
      %4920 = vmatprep.mubr.f32.mxu0 0.0
      %4921 = vmatmul.mubr.f32.gmra.mxu0 %v4725
      %v4922 = vpop.f32.mrf.mxu0
      %v4923 = vadd.f32 %v4668, %v4922
      %v4924 = vpop.f32.mrf.mxu0
      %4925 = vmatprep.mubr.f32.mxu0 0.0
      %4926 = vmatmul.mubr.f32.gmra.mxu0 %v4728
      %v4927 = vpop.f32.mrf.mxu0
      %v4928 = vadd.f32 %v4668, %v4927
      %v4929 = vpop.f32.mrf.mxu0
      %4930 = vmatprep.mubr.f32.mxu0 0.0
      %4931 = vmatmul.mubr.f32.gmra.mxu0 %v4731
      %v4932 = vpop.f32.mrf.mxu0
      %v4933 = vadd.f32 %v4668, %v4932
      %v4934 = vpop.f32.mrf.mxu0
      %4935 = vmatprep.mubr.f32.mxu0 0.0
      %4936 = vmatmul.mubr.f32.gmra.mxu0 %v4734
      %v4937 = vpop.f32.mrf.mxu0
      %v4938 = vadd.f32 %v4668, %v4937
      %v4939 = vpop.f32.mrf.mxu0
      %4940 = vmatprep.mubr.f32.mxu0 0.0
      %4941 = vmatmul.mubr.f32.gmra.mxu0 %v4737
      %v4942 = vpop.f32.mrf.mxu0
      %v4943 = vadd.f32 %v4668, %v4942
      %v4944 = vpop.f32.mrf.mxu0
      %4945 = vmatprep.mubr.f32.mxu0 0.0
      %4946 = vmatmul.mubr.f32.gmra.mxu0 %v4740
      %v4947 = vpop.f32.mrf.mxu0
      %v4948 = vadd.f32 %v4668, %v4947
      %v4949 = vpop.f32.mrf.mxu0
      %4950 = vmatprep.mubr.f32.mxu0 0.0
      %4951 = vmatmul.mubr.f32.gmra.mxu0 %v4743
      %v4952 = vpop.f32.mrf.mxu0
      %v4953 = vadd.f32 %v4668, %v4952
      %v4954 = vpop.f32.mrf.mxu0
      %4955 = vmatprep.mubr.f32.mxu0 0.0
      %4956 = vmatmul.mubr.f32.gmra.mxu0 %v4746
      %v4957 = vpop.f32.mrf.mxu0
      %v4958 = vadd.f32 %v4668, %v4957
      %v4959 = vpop.f32.mrf.mxu0
      %4960 = vmatprep.mubr.f32.mxu0 0.0
      %4961 = vmatmul.mubr.f32.gmra.mxu0 %v4749
      %v4962 = vpop.f32.mrf.mxu0
      %v4963 = vadd.f32 %v4668, %v4962
      %v4964 = vpop.f32.mrf.mxu0
      %4965 = vmatprep.mubr.f32.mxu0 0.0
      %4966 = vmatmul.mubr.f32.gmra.mxu0 %v4752
      %v4967 = vpop.f32.mrf.mxu0
      %v4968 = vadd.f32 %v4668, %v4967
      %v4969 = vpop.f32.mrf.mxu0
      %4970 = vmatprep.mubr.f32.mxu0 0.0
      %4971 = vmatmul.mubr.f32.gmra.mxu0 %v4755
      %v4972 = vpop.f32.mrf.mxu0
      %v4973 = vadd.f32 %v4668, %v4972
      %v4974 = vpop.f32.mrf.mxu0
      %4975 = vmatprep.mubr.f32.mxu0 0.0
      %4976 = vmatmul.mubr.f32.gmra.mxu0 %v4758
      %v4977 = vpop.f32.mrf.mxu0
      %v4978 = vadd.f32 %v4668, %v4977
      %v4979 = vpop.f32.mrf.mxu0
      %4980 = vmatprep.mubr.f32.mxu0 0.0
      %4981 = vmatmul.mubr.f32.gmra.mxu0 %v4761
      %v4982 = vpop.f32.mrf.mxu0
      %v4983 = vadd.f32 %v4668, %v4982
      %v4984 = vpop.f32.mrf.mxu0
      %4985 = vmatprep.mubr.f32.mxu0 0.0
      %4986 = vmatmul.mubr.f32.gmra.mxu0 %v4764
      %v4987 = vpop.f32.mrf.mxu0
      %v4988 = vadd.f32 %v4668, %v4987
      %v4989 = vpop.f32.mrf.mxu0
      %4990 = vdwg.mxu0
      %5023 = vrot.lane.b32.xlu0 %v484, 120
      %v5024 = vpop.permute.xlu0 %5023
      %5025 = vrot.lane.b32.xlu0 %v489, 120
      %v5026 = vpop.permute.xlu0 %5025
      %5027 = vrot.lane.b32.xlu0 %v494, 120
      %v5028 = vpop.permute.xlu0 %5027
      %5029 = vrot.lane.b32.xlu0 %v499, 120
      %v5030 = vpop.permute.xlu0 %5029
      %5031 = vrot.lane.b32.xlu0 %v504, 120
      %v5032 = vpop.permute.xlu0 %5031
      %5033 = vrot.lane.b32.xlu0 %v509, 120
      %v5034 = vpop.permute.xlu0 %5033
      %5035 = vrot.lane.b32.xlu0 %v514, 120
      %v5036 = vpop.permute.xlu0 %5035
      %5037 = vrot.lane.b32.xlu0 %v519, 120
      %v5038 = vpop.permute.xlu0 %5037
      %5039 = vrot.lane.b32.xlu0 %v524, 120
      %v5040 = vpop.permute.xlu0 %5039
      %5041 = vrot.lane.b32.xlu0 %v529, 120
      %v5042 = vpop.permute.xlu0 %5041
      %5043 = vrot.lane.b32.xlu0 %v534, 120
      %v5044 = vpop.permute.xlu0 %5043
      %5045 = vrot.lane.b32.xlu0 %v539, 120
      %v5046 = vpop.permute.xlu0 %5045
      %5047 = vrot.lane.b32.xlu0 %v544, 120
      %v5048 = vpop.permute.xlu0 %5047
      %5049 = vrot.lane.b32.xlu0 %v549, 120
      %v5050 = vpop.permute.xlu0 %5049
      %5051 = vrot.lane.b32.xlu0 %v554, 120
      %v5052 = vpop.permute.xlu0 %5051
      %5053 = vrot.lane.b32.xlu0 %v559, 120
      %v5054 = vpop.permute.xlu0 %5053
      %5055 = vrot.lane.b32.xlu0 %v564, 120
      %v5056 = vpop.permute.xlu0 %5055
      %5057 = vrot.lane.b32.xlu0 %v569, 120
      %v5058 = vpop.permute.xlu0 %5057
      %5059 = vrot.lane.b32.xlu0 %v574, 120
      %v5060 = vpop.permute.xlu0 %5059
      %5061 = vrot.lane.b32.xlu0 %v579, 120
      %v5062 = vpop.permute.xlu0 %5061
      %5063 = vrot.lane.b32.xlu0 %v584, 120
      %v5064 = vpop.permute.xlu0 %5063
      %5065 = vrot.lane.b32.xlu0 %v589, 120
      %v5066 = vpop.permute.xlu0 %5065
      %5067 = vrot.lane.b32.xlu0 %v594, 120
      %v5068 = vpop.permute.xlu0 %5067
      %5069 = vrot.lane.b32.xlu0 %v599, 120
      %v5070 = vpop.permute.xlu0 %5069
      %5071 = vrot.lane.b32.xlu0 %v604, 120
      %v5072 = vpop.permute.xlu0 %5071
      %5073 = vrot.lane.b32.xlu0 %v609, 120
      %v5074 = vpop.permute.xlu0 %5073
      %5075 = vrot.lane.b32.xlu0 %v614, 120
      %v5076 = vpop.permute.xlu0 %5075
      %5077 = vrot.lane.b32.xlu0 %v619, 120
      %v5078 = vpop.permute.xlu0 %5077
      %5079 = vrot.lane.b32.xlu0 %v624, 120
      %v5080 = vpop.permute.xlu0 %5079
      %5081 = vrot.lane.b32.xlu0 %v629, 120
      %v5082 = vpop.permute.xlu0 %5081
      %5083 = vrot.lane.b32.xlu0 %v634, 120
      %v5084 = vpop.permute.xlu0 %5083
      %5085 = vrot.lane.b32.xlu0 %v639, 120
      %v5086 = vpop.permute.xlu0 %5085
      %v5119 = vadd.f32 %v4833, %v5024
      %v5120 = vadd.f32 %v4838, %v5026
      %v5121 = vadd.f32 %v4843, %v5028
      %v5122 = vadd.f32 %v4848, %v5030
      %v5123 = vadd.f32 %v4853, %v5032
      %v5124 = vadd.f32 %v4858, %v5034
      %v5125 = vadd.f32 %v4863, %v5036
      %v5126 = vadd.f32 %v4868, %v5038
      %v5127 = vadd.f32 %v4873, %v5040
      %v5128 = vadd.f32 %v4878, %v5042
      %v5129 = vadd.f32 %v4883, %v5044
      %v5130 = vadd.f32 %v4888, %v5046
      %v5131 = vadd.f32 %v4893, %v5048
      %v5132 = vadd.f32 %v4898, %v5050
      %v5133 = vadd.f32 %v4903, %v5052
      %v5134 = vadd.f32 %v4908, %v5054
      %v5135 = vadd.f32 %v4913, %v5056
      %v5136 = vadd.f32 %v4918, %v5058
      %v5137 = vadd.f32 %v4923, %v5060
      %v5138 = vadd.f32 %v4928, %v5062
      %v5139 = vadd.f32 %v4933, %v5064
      %v5140 = vadd.f32 %v4938, %v5066
      %v5141 = vadd.f32 %v4943, %v5068
      %v5142 = vadd.f32 %v4948, %v5070
      %v5143 = vadd.f32 %v4953, %v5072
      %v5144 = vadd.f32 %v4958, %v5074
      %v5145 = vadd.f32 %v4963, %v5076
      %v5146 = vadd.f32 %v4968, %v5078
      %v5147 = vadd.f32 %v4973, %v5080
      %v5148 = vadd.f32 %v4978, %v5082
      %v5149 = vadd.f32 %v4983, %v5084
      %v5150 = vadd.f32 %v4988, %v5086
      %v5151 = vmax.f32 %v5119, 0.0
      %v5152 = vmax.f32 %v5120, 0.0
      %v5153 = vmax.f32 %v5121, 0.0
      %v5154 = vmax.f32 %v5122, 0.0
      %v5155 = vmax.f32 %v5123, 0.0
      %v5156 = vmax.f32 %v5124, 0.0
      %v5157 = vmax.f32 %v5125, 0.0
      %v5158 = vmax.f32 %v5126, 0.0
      %v5159 = vmax.f32 %v5127, 0.0
      %v5160 = vmax.f32 %v5128, 0.0
      %v5161 = vmax.f32 %v5129, 0.0
      %v5162 = vmax.f32 %v5130, 0.0
      %v5163 = vmax.f32 %v5131, 0.0
      %v5164 = vmax.f32 %v5132, 0.0
      %v5165 = vmax.f32 %v5133, 0.0
      %v5166 = vmax.f32 %v5134, 0.0
      %v5167 = vmax.f32 %v5135, 0.0
      %v5168 = vmax.f32 %v5136, 0.0
      %v5169 = vmax.f32 %v5137, 0.0
      %v5170 = vmax.f32 %v5138, 0.0
      %v5171 = vmax.f32 %v5139, 0.0
      %v5172 = vmax.f32 %v5140, 0.0
      %v5173 = vmax.f32 %v5141, 0.0
      %v5174 = vmax.f32 %v5142, 0.0
      %v5175 = vmax.f32 %v5143, 0.0
      %v5176 = vmax.f32 %v5144, 0.0
      %v5177 = vmax.f32 %v5145, 0.0
      %v5178 = vmax.f32 %v5146, 0.0
      %v5179 = vmax.f32 %v5147, 0.0
      %v5180 = vmax.f32 %v5148, 0.0
      %v5181 = vmax.f32 %v5149, 0.0
      %v5182 = vmax.f32 %v5150, 0.0
      %vm5183 = vcmask 261120
      %5184 = vst.msk [vmem:[%s278] sm:$0xff] %vm5183, %v5151
      %5185 = vst.msk [vmem:[%s278 + $0x8] sm:$0xff] %vm5183, %v5152
      %5186 = vst.msk [vmem:[%s278 + $0x10] sm:$0xff] %vm5183, %v5153
      %5187 = vst.msk [vmem:[%s278 + $0x18] sm:$0xff] %vm5183, %v5154
      %5188 = vst.msk [vmem:[%s278 + $0x20] sm:$0xff] %vm5183, %v5155
      %5189 = vst.msk [vmem:[%s278 + $0x28] sm:$0xff] %vm5183, %v5156
      %5190 = vst.msk [vmem:[%s278 + $0x30] sm:$0xff] %vm5183, %v5157
      %5191 = vst.msk [vmem:[%s278 + $0x38] sm:$0xff] %vm5183, %v5158
      %5192 = vst.msk [vmem:[%s278 + $0x40] sm:$0xff] %vm5183, %v5159
      %5193 = vst.msk [vmem:[%s278 + $0x48] sm:$0xff] %vm5183, %v5160
      %5194 = vst.msk [vmem:[%s278 + $0x50] sm:$0xff] %vm5183, %v5161
      %5195 = vst.msk [vmem:[%s278 + $0x58] sm:$0xff] %vm5183, %v5162
      %5196 = vst.msk [vmem:[%s278 + $0x60] sm:$0xff] %vm5183, %v5163
      %5197 = vst.msk [vmem:[%s278 + $0x68] sm:$0xff] %vm5183, %v5164
      %5198 = vst.msk [vmem:[%s278 + $0x70] sm:$0xff] %vm5183, %v5165
      %5199 = vst.msk [vmem:[%s278 + $0x78] sm:$0xff] %vm5183, %v5166
      %5200 = vst.msk [vmem:[%s278 + $0x80] sm:$0xff] %vm5183, %v5167
      %5201 = vst.msk [vmem:[%s278 + $0x88] sm:$0xff] %vm5183, %v5168
      %5202 = vst.msk [vmem:[%s278 + $0x90] sm:$0xff] %vm5183, %v5169
      %5203 = vst.msk [vmem:[%s278 + $0x98] sm:$0xff] %vm5183, %v5170
      %5204 = vst.msk [vmem:[%s278 + $0xa0] sm:$0xff] %vm5183, %v5171
      %5205 = vst.msk [vmem:[%s278 + $0xa8] sm:$0xff] %vm5183, %v5172
      %5206 = vst.msk [vmem:[%s278 + $0xb0] sm:$0xff] %vm5183, %v5173
      %5207 = vst.msk [vmem:[%s278 + $0xb8] sm:$0xff] %vm5183, %v5174
      %5208 = vst.msk [vmem:[%s278 + $0xc0] sm:$0xff] %vm5183, %v5175
      %5209 = vst.msk [vmem:[%s278 + $0xc8] sm:$0xff] %vm5183, %v5176
      %5210 = vst.msk [vmem:[%s278 + $0xd0] sm:$0xff] %vm5183, %v5177
      %5211 = vst.msk [vmem:[%s278 + $0xd8] sm:$0xff] %vm5183, %v5178
      %5212 = vst.msk [vmem:[%s278 + $0xe0] sm:$0xff] %vm5183, %v5179
      %5213 = vst.msk [vmem:[%s278 + $0xe8] sm:$0xff] %vm5183, %v5180
      %5214 = vst.msk [vmem:[%s278 + $0xf0] sm:$0xff] %vm5183, %v5181
      %5215 = vst.msk [vmem:[%s278 + $0xf8] sm:$0xff] %vm5183, %v5182
      %p5216 = scmp.lt.s32.totalorder %s18, 1
      %s5217 = scalar_select %p5216, %s18, 1
      %s5218 = smul.addr %s5217, 32
      %s5219 = smul.addr %s5218, 8
      %s5220 = scalar_lea.vmem %s7, %s5219
      // Predicated region
      $region49: #{tpu_custom_call.1} parent=47 // pred_check
        %p5221 = pneg %p188
      $region50: #{tpu_custom_call.1} parent=47 // pred_check_branch
        %5223 = sbr.rel (%p5221) target = $region52
      $region51: #{tpu_custom_call.1} parent=47 // pred_region
        _
      $region52: #{tpu_custom_call.1} parent=47 // pred_fallthru
        _
    $region48: #{tpu_custom_call.1} parent=5 // pred_fallthru
      _
    %p5224 = scmp.le.s32.totalorder 2, %s13
    // Predicated region
    $region53: #{tpu_custom_call.1} parent=5 // pred_check
      %p5225 = pneg %p5224
    $region54: #{tpu_custom_call.1} parent=5 // pred_check_branch
      %5227 = sbr.rel (%p5225) target = $region56
    $region55: #{tpu_custom_call.1} parent=5 // pred_region
      %s5228 = ssub.s32 %s13, 2
      // Predicated region
      $region57: #{tpu_custom_call.1} parent=55 // pred_check
        %p5229 = pneg %p194
      $region58: #{tpu_custom_call.1} parent=55 // pred_check_branch
        %5231 = sbr.rel (%p5229) target = $region60
      $region59: #{tpu_custom_call.1} parent=55 // pred_region
        %p5232 = scmp.lt.s32.totalorder %s19, 1
        %s5233 = scalar_select %p5232, %s19, 1
        %s5234 = smul.addr %s5233, 32
        %s5235 = smul.addr %s5234, 8
        %s5236 = scalar_lea.vmem %s7, %s5235
      $region60: #{tpu_custom_call.1} parent=55 // pred_fallthru
        _
    $region56: #{tpu_custom_call.1} parent=5 // pred_fallthru
      _
  $region6: #{tpu_custom_call.1} parent=0 // loop_footer
    %s17 = sadd.s32 1, %s13
  $region7: #{tpu_custom_call.1} parent=0 // loop_footer_branch
    %12 = sbr.rel target = $region3
  $region8: #{tpu_custom_call.1} parent=0 // loop_exit
    _

</llo_original>
